<compile_context>
chip_gen: v7x
topology: tpu7x:2x2x1
jax: 0.10.0
libtpu: 0.0.40
codegen_flags: <defaults>
</compile_context>

<pallas_src>
import jax
import jax.numpy as jnp
from jax.experimental import pallas as pl
from jax.experimental.pallas import tpu as pltpu

# ----------------------------- config -------------------------------------
VOCAB = 50
MAX_POS = 16
TYPE_VOCAB = 2
HIDDEN = 32          # embedding_size
NUM_HEADS = 4
HEAD_DIM = HIDDEN // NUM_HEADS
INTERMEDIATE = 64
NUM_LAYERS = 2
NUM_CLASSES = 3
FC_PAD = 128         # lane-dense padded classifier width (sliced back to NUM_CLASSES)
BATCH = 2
SEQ = 8
LN_EPS = 1e-12


# --------------------------- small helpers --------------------------------
def _layernorm(x, g, b, eps=LN_EPS):
    # x: (N, H), g/b: (1, H); float32 math.
    mu = jnp.mean(x, axis=-1, keepdims=True)
    var = jnp.mean((x - mu) ** 2, axis=-1, keepdims=True)
    return (x - mu) * jax.lax.rsqrt(var + eps) * g + b


def _gelu(x):
    # TODO(synk): HF BERT uses exact erf-GELU; tanh approximation used for TPU EUP lowering.
    return 0.5 * x * (1.0 + jnp.tanh(0.7978845608028654 * (x + 0.044715 * x * x * x)))


def _softmax_last(x):
    m = jnp.max(x, axis=-1, keepdims=True)
    e = jnp.exp(x - m)
    # approx reciprocal -> EUP vrcp slot, co-issues with VALU/MXU work.
    return e * pl.reciprocal(jnp.sum(e, axis=-1, keepdims=True), approx=True)


# ------------------------------ fused kernel --------------------------------
def bert_fused_kernel(emb_ref, mask_ref,
                      eg_ref, eb_ref,
                      wqkv_ref, bqkv_ref, wo_ref, bo_ref,
                      ln1g_ref, ln1b_ref, w1_ref, b1_ref,
                      w2_ref, b2_ref, ln2g_ref, ln2b_ref,
                      fcw_ref, fcb_ref,
                      out_ref):
    # One grid step == one batch element. All weights are VMEM-resident
    # (whole model << VMEM on every TPU generation).
    S, H, NH, DH = SEQ, HIDDEN, NUM_HEADS, HEAD_DIM
    scale = 1.0 / (DH ** 0.5)

    x = emb_ref[...]                       # (S, H) summed word+pos+type embeddings
    mask_b = mask_ref[...][None, :, :]     # (1, 1, S) additive mask, hoisted once

    # embedding LayerNorm
    h = _layernorm(x, eg_ref[...], eb_ref[...])
    h_prev = h

    for l in range(NUM_LAYERS):            # static unroll (2 layers)
        h_prev = h

        # ---- self attention: fused QKV projection (one matmul) ----
        qkv = (jnp.dot(h.astype(jnp.bfloat16), wqkv_ref[l],
                       preferred_element_type=jnp.float32) + bqkv_ref[l])   # (S, 3H) f32

        q_heads = jnp.stack([qkv[:, hh * DH:(hh + 1) * DH] for hh in range(NH)], 0)
        k_heads = jnp.stack([qkv[:, H + hh * DH:H + (hh + 1) * DH] for hh in range(NH)], 0)
        v_heads = jnp.stack([qkv[:, 2 * H + hh * DH:2 * H + (hh + 1) * DH] for hh in range(NH)], 0)
        qh = q_heads.astype(jnp.bfloat16)   # (NH, S, DH)
        kh = k_heads.astype(jnp.bfloat16)
        vh = v_heads.astype(jnp.bfloat16)

        # all heads in one batched contraction
        scores = jnp.einsum('hqd,hkd->hqk', qh, kh,
                            preferred_element_type=jnp.float32) * scale     # (NH, S, S)
        scores = scores + mask_b
        p = _softmax_last(scores)                                           # f32
        ctx = jnp.einsum('hqk,hkd->hqd', p.astype(jnp.bfloat16), vh,
                         preferred_element_type=jnp.float32)                # (NH, S, DH)

        # output projection: wo stored head-major as (NH, DH, H); batched matmul
        # + sum over heads avoids the lane-axis concatenate of head outputs.
        attn = jnp.einsum('hsd,hdk->hsk', ctx.astype(jnp.bfloat16), wo_ref[l],
                          preferred_element_type=jnp.float32).sum(axis=0) + bo_ref[l]
        h1 = _layernorm(attn + h, ln1g_ref[l], ln1b_ref[l])

        # ---- feed forward ----
        inter = _gelu(jnp.dot(h1.astype(jnp.bfloat16), w1_ref[l],
                              preferred_element_type=jnp.float32) + b1_ref[l])
        ffn = jnp.dot(inter.astype(jnp.bfloat16), w2_ref[l],
                      preferred_element_type=jnp.float32) + b2_ref[l]
        h = _layernorm(ffn + h1, ln2g_ref[l], ln2b_ref[l])

    # ---- pooling + classifier + sigmoid ----
    # Plain mean over all sequence positions (incl. pad tokens) exactly as the
    # PyTorch reference does; nn.Dropout is identity at inference time.
    x1 = jnp.mean(h, axis=0, keepdims=True)        # (1, H)  hidden_states[-1]
    x2 = jnp.mean(h_prev, axis=0, keepdims=True)   # (1, H)  hidden_states[-2]
    cat = jnp.concatenate([x1, x2], axis=-1)       # (1, 2H)
    logits = (jnp.dot(cat.astype(jnp.bfloat16), fcw_ref[...],
                      preferred_element_type=jnp.float32) + fcb_ref[...])   # (1, FC_PAD)
    out_ref[...] = jax.nn.sigmoid(logits)          # lane-dense (1, 128) store


# ------------------------- parameter initialization ------------------------
def init_params(key):
    def normal(key, shape, scale=0.02):
        return (scale * jax.random.normal(key, shape)).astype(jnp.float32)

    keys = iter(jax.random.split(key, 8 + NUM_LAYERS * 8))
    p = {
        'word_emb': normal(next(keys), (VOCAB, HIDDEN)),
        'pos_emb': normal(next(keys), (MAX_POS, HIDDEN)),
        'type_emb': normal(next(keys), (TYPE_VOCAB, HIDDEN)),
        'emb_ln_g': jnp.ones((1, HIDDEN), jnp.float32),
        'emb_ln_b': jnp.zeros((1, HIDDEN), jnp.float32),
        'layers': [],
        'fc_w': normal(next(keys), (2 * HIDDEN, NUM_CLASSES)),
        'fc_b': jnp.zeros((1, NUM_CLASSES), jnp.float32),
    }
    for _ in range(NUM_LAYERS):
        layer = {
            'wq': normal(next(keys), (HIDDEN, HIDDEN)),
            'bq': jnp.zeros((1, HIDDEN), jnp.float32),
            'wk': normal(next(keys), (HIDDEN, HIDDEN)),
            'bk': jnp.zeros((1, HIDDEN), jnp.float32),
            'wv': normal(next(keys), (HIDDEN, HIDDEN)),
            'bv': jnp.zeros((1, HIDDEN), jnp.float32),
            'wo': normal(next(keys), (HIDDEN, HIDDEN)),
            'bo': jnp.zeros((1, HIDDEN), jnp.float32),
            'ln1_g': jnp.ones((1, HIDDEN), jnp.float32),
            'ln1_b': jnp.zeros((1, HIDDEN), jnp.float32),
            'w1': normal(next(keys), (HIDDEN, INTERMEDIATE)),
            'b1': jnp.zeros((1, INTERMEDIATE), jnp.float32),
            'w2': normal(next(keys), (INTERMEDIATE, HIDDEN)),
            'b2': jnp.zeros((1, HIDDEN), jnp.float32),
            'ln2_g': jnp.ones((1, HIDDEN), jnp.float32),
            'ln2_b': jnp.zeros((1, HIDDEN), jnp.float32),
        }
        p['layers'].append(layer)
    return p


def pack_params(p):
    """Pack per-layer weights into stacked arrays; cast matmul weights to bf16;
    pad the classifier to a lane-dense 128-wide output."""
    layers = p['layers']

    def st(name):
        return jnp.stack([lp[name] for lp in layers], axis=0)

    packed = {
        'word_emb': p['word_emb'],
        'pos_emb': p['pos_emb'],
        'type_emb': p['type_emb'],
        'emb_ln_g': p['emb_ln_g'],
        'emb_ln_b': p['emb_ln_b'],
        # fused QKV: (L, H, 3H) bf16
        'wqkv': jnp.stack([jnp.concatenate([lp['wq'], lp['wk'], lp['wv']], axis=1)
                           for lp in layers], axis=0).astype(jnp.bfloat16),
        'bqkv': jnp.stack([jnp.concatenate([lp['bq'], lp['bk'], lp['bv']], axis=1)
                           for lp in layers], axis=0),                       # (L, 1, 3H) f32
        # output projection stored head-major: (L, NH, DH, H) bf16
        'wo': jnp.stack([lp['wo'].reshape(NUM_HEADS, HEAD_DIM, HIDDEN)
                         for lp in layers], axis=0).astype(jnp.bfloat16),
        'bo': st('bo'),
        'ln1_g': st('ln1_g'), 'ln1_b': st('ln1_b'),
        'w1': st('w1').astype(jnp.bfloat16), 'b1': st('b1'),
        'w2': st('w2').astype(jnp.bfloat16), 'b2': st('b2'),
        'ln2_g': st('ln2_g'), 'ln2_b': st('ln2_b'),
        # classifier padded to 128 lanes (extra lanes sliced off in the wrapper)
        'fc_w': jnp.pad(p['fc_w'], ((0, 0), (0, FC_PAD - NUM_CLASSES))).astype(jnp.bfloat16),
        'fc_b': jnp.pad(p['fc_b'], ((0, 0), (0, FC_PAD - NUM_CLASSES))),
    }
    return packed


# ------------------------------- forward ------------------------------------
@jax.jit
def bert_forward(params, token_ids, seg_ids):
    B, S = token_ids.shape

    # attention_mask = token_ids > 0  -> additive mask (B, 1, S)
    add_mask = ((token_ids <= 0).astype(jnp.float32) * -10000.0)[:, None, :]

    # TODO(synk): embedding-table gathers stay in plain JAX (jnp.take); a dynamic
    # per-token gather has no clean in-kernel equivalent at this scale.
    pos_ids = jnp.arange(S, dtype=jnp.int32)
    emb = (jnp.take(params['word_emb'], token_ids, axis=0)
           + jnp.take(params['type_emb'], seg_ids, axis=0)
           + params['pos_emb'][pos_ids][None, :, :])            # (B, S, H) f32

    weight_args = (
        params['emb_ln_g'], params['emb_ln_b'],
        params['wqkv'], params['bqkv'], params['wo'], params['bo'],
        params['ln1_g'], params['ln1_b'], params['w1'], params['b1'],
        params['w2'], params['b2'], params['ln2_g'], params['ln2_b'],
        params['fc_w'], params['fc_b'],
    )

    out_pad = pl.pallas_call(
        bert_fused_kernel,
        out_shape=jax.ShapeDtypeStruct((B, 1, FC_PAD), jnp.float32),
        grid=(B,),
        in_specs=[
            pl.BlockSpec((None, S, HIDDEN), lambda b: (b, 0, 0)),   # emb, per-batch
            pl.BlockSpec((None, 1, S), lambda b: (b, 0, 0)),        # additive mask
        ] + [pl.BlockSpec(memory_space=pltpu.MemorySpace.VMEM)] * len(weight_args),
        out_specs=pl.BlockSpec((None, 1, FC_PAD), lambda b: (b, 0, 0)),
        compiler_params=pltpu.CompilerParams(
            dimension_semantics=("parallel",)),   # batch axis can split across TCs (v7x)
    )(emb, add_mask, *weight_args)

    return out_pad[:, 0, :NUM_CLASSES]


# --------------------------------- main --------------------------------------
if __name__ == "__main__":
    key = jax.random.PRNGKey(0)
    pkey, tkey, skey = jax.random.split(key, 3)

    params = pack_params(init_params(pkey))

    token_ids = jax.random.randint(tkey, (BATCH, SEQ), 1, VOCAB, dtype=jnp.int32)
    # introduce padding tokens so the attention mask is exercised
    token_ids = token_ids.at[1, -2:].set(0)
    seg_ids = jnp.concatenate(
        [jnp.zeros((BATCH, SEQ // 2), jnp.int32),
         jnp.ones((BATCH, SEQ // 2), jnp.int32)], axis=1)

    out = bert_forward(params, token_ids, seg_ids)
    out = jax.block_until_ready(out)
    assert out.shape == (BATCH, NUM_CLASSES)
    assert bool(jnp.all(jnp.isfinite(out)))
    print("KERNEL_OK")
</pallas_src>

<mosaic_0001>
module attributes {stable_mosaic.version = 11 : i64} {
  func.func @bert_fused_kernel(%arg0: i32, %arg1: memref<1x8x32xf32, #tpu.memory_space<vmem>>, %arg2: memref<1x1x8xf32, #tpu.memory_space<vmem>>, %arg3: memref<1x32xf32, #tpu.memory_space<vmem>>, %arg4: memref<1x32xf32, #tpu.memory_space<vmem>>, %arg5: memref<2x32x96xbf16, #tpu.memory_space<vmem>>, %arg6: memref<2x1x96xf32, #tpu.memory_space<vmem>>, %arg7: memref<2x4x8x32xbf16, #tpu.memory_space<vmem>>, %arg8: memref<2x1x32xf32, #tpu.memory_space<vmem>>, %arg9: memref<2x1x32xf32, #tpu.memory_space<vmem>>, %arg10: memref<2x1x32xf32, #tpu.memory_space<vmem>>, %arg11: memref<2x32x64xbf16, #tpu.memory_space<vmem>>, %arg12: memref<2x1x64xf32, #tpu.memory_space<vmem>>, %arg13: memref<2x64x32xbf16, #tpu.memory_space<vmem>>, %arg14: memref<2x1x32xf32, #tpu.memory_space<vmem>>, %arg15: memref<2x1x32xf32, #tpu.memory_space<vmem>>, %arg16: memref<2x1x32xf32, #tpu.memory_space<vmem>>, %arg17: memref<64x128xbf16, #tpu.memory_space<vmem>>, %arg18: memref<1x128xf32, #tpu.memory_space<vmem>>, %arg19: memref<1x1x128xf32, #tpu.memory_space<vmem>>) attributes {dimension_semantics = [#tpu.dimension_semantics<parallel>], iteration_bounds = array<i64: 2>, scalar_prefetch = 0 : i64, scratch_operands = 0 : i64, tpu.core_type = #tpu.core_type<tc>, window_params = [{transform_indices = @transform_0, window_bounds = array<i64: 1, 8, 32>}, {transform_indices = @transform_1, window_bounds = array<i64: 1, 1, 8>}, {pipeline_mode = #tpu.pipeline_mode<synchronous>, transform_indices = @transform_2, window_bounds = array<i64: 1, 32>}, {pipeline_mode = #tpu.pipeline_mode<synchronous>, transform_indices = @transform_3, window_bounds = array<i64: 1, 32>}, {pipeline_mode = #tpu.pipeline_mode<synchronous>, transform_indices = @transform_4, window_bounds = array<i64: 2, 32, 96>}, {pipeline_mode = #tpu.pipeline_mode<synchronous>, transform_indices = @transform_5, window_bounds = array<i64: 2, 1, 96>}, {pipeline_mode = #tpu.pipeline_mode<synchronous>, transform_indices = @transform_6, window_bounds = array<i64: 2, 4, 8, 32>}, {pipeline_mode = #tpu.pipeline_mode<synchronous>, transform_indices = @transform_7, window_bounds = array<i64: 2, 1, 32>}, {pipeline_mode = #tpu.pipeline_mode<synchronous>, transform_indices = @transform_8, window_bounds = array<i64: 2, 1, 32>}, {pipeline_mode = #tpu.pipeline_mode<synchronous>, transform_indices = @transform_9, window_bounds = array<i64: 2, 1, 32>}, {pipeline_mode = #tpu.pipeline_mode<synchronous>, transform_indices = @transform_10, window_bounds = array<i64: 2, 32, 64>}, {pipeline_mode = #tpu.pipeline_mode<synchronous>, transform_indices = @transform_11, window_bounds = array<i64: 2, 1, 64>}, {pipeline_mode = #tpu.pipeline_mode<synchronous>, transform_indices = @transform_12, window_bounds = array<i64: 2, 64, 32>}, {pipeline_mode = #tpu.pipeline_mode<synchronous>, transform_indices = @transform_13, window_bounds = array<i64: 2, 1, 32>}, {pipeline_mode = #tpu.pipeline_mode<synchronous>, transform_indices = @transform_14, window_bounds = array<i64: 2, 1, 32>}, {pipeline_mode = #tpu.pipeline_mode<synchronous>, transform_indices = @transform_15, window_bounds = array<i64: 2, 1, 32>}, {pipeline_mode = #tpu.pipeline_mode<synchronous>, transform_indices = @transform_16, window_bounds = array<i64: 64, 128>}, {pipeline_mode = #tpu.pipeline_mode<synchronous>, transform_indices = @transform_17, window_bounds = array<i64: 1, 128>}, {transform_indices = @transform_18, window_bounds = array<i64: 1, 1, 128>}]} {
    %c0 = arith.constant 0 : index
    %c0_0 = arith.constant 0 : index
    %c0_1 = arith.constant 0 : index
    %0 = vector.load %arg1[%c0, %c0_0, %c0_1] : memref<1x8x32xf32, #tpu.memory_space<vmem>>, vector<1x8x32xf32>
    %1 = vector.shape_cast %0 : vector<1x8x32xf32> to vector<8x32xf32>
    %c0_2 = arith.constant 0 : index
    %c0_3 = arith.constant 0 : index
    %c0_4 = arith.constant 0 : index
    %2 = vector.load %arg2[%c0_2, %c0_3, %c0_4] : memref<1x1x8xf32, #tpu.memory_space<vmem>>, vector<1x1x8xf32>
    %3 = vector.shape_cast %2 : vector<1x1x8xf32> to vector<1x8xf32>
    %4 = vector.shape_cast %3 : vector<1x8xf32> to vector<1x1x8xf32>
    %c0_5 = arith.constant 0 : index
    %c0_6 = arith.constant 0 : index
    %5 = vector.load %arg3[%c0_5, %c0_6] : memref<1x32xf32, #tpu.memory_space<vmem>>, vector<1x32xf32>
    %c0_7 = arith.constant 0 : index
    %c0_8 = arith.constant 0 : index
    %6 = vector.load %arg4[%c0_7, %c0_8] : memref<1x32xf32, #tpu.memory_space<vmem>>, vector<1x32xf32>
    %cst = arith.constant dense<0.000000e+00> : vector<8xf32>
    %7 = vector.multi_reduction <add>, %1, %cst [1] : vector<8x32xf32> to vector<8xf32>
    %8 = vector.shape_cast %7 : vector<8xf32> to vector<8x1xf32>
    %cst_9 = arith.constant 3.200000e+01 : f32
    %9 = vector.broadcast %cst_9 : f32 to vector<8x1xf32>
    %10 = arith.divf %8, %9 : vector<8x1xf32>
    %11 = vector.broadcast %10 : vector<8x1xf32> to vector<8x32xf32>
    %12 = arith.subf %1, %11 : vector<8x32xf32>
    %13 = arith.mulf %12, %12 : vector<8x32xf32>
    %cst_10 = arith.constant dense<0.000000e+00> : vector<8xf32>
    %14 = vector.multi_reduction <add>, %13, %cst_10 [1] : vector<8x32xf32> to vector<8xf32>
    %15 = vector.shape_cast %14 : vector<8xf32> to vector<8x1xf32>
    %cst_11 = arith.constant 3.200000e+01 : f32
    %16 = vector.broadcast %cst_11 : f32 to vector<8x1xf32>
    %17 = arith.divf %15, %16 : vector<8x1xf32>
    %18 = vector.broadcast %10 : vector<8x1xf32> to vector<8x32xf32>
    %19 = arith.subf %1, %18 : vector<8x32xf32>
    %cst_12 = arith.constant 9.99999996E-13 : f32
    %20 = vector.broadcast %cst_12 : f32 to vector<8x1xf32>
    %21 = arith.addf %17, %20 : vector<8x1xf32>
    %22 = math.rsqrt %21 : vector<8x1xf32>
    %23 = vector.broadcast %22 : vector<8x1xf32> to vector<8x32xf32>
    %24 = arith.mulf %19, %23 : vector<8x32xf32>
    %25 = vector.broadcast %5 : vector<1x32xf32> to vector<8x32xf32>
    %26 = arith.mulf %24, %25 : vector<8x32xf32>
    %27 = vector.broadcast %6 : vector<1x32xf32> to vector<8x32xf32>
    %28 = arith.addf %26, %27 : vector<8x32xf32>
    %29 = arith.truncf %28 : vector<8x32xf32> to vector<8x32xbf16>
    %c0_13 = arith.constant 0 : index
    %c0_14 = arith.constant 0 : index
    %c0_15 = arith.constant 0 : index
    %30 = vector.load %arg5[%c0_13, %c0_14, %c0_15] : memref<2x32x96xbf16, #tpu.memory_space<vmem>>, vector<1x32x96xbf16>
    %31 = vector.shape_cast %30 : vector<1x32x96xbf16> to vector<32x96xbf16>
    %cst_16 = arith.constant dense<0.000000e+00> : vector<8x96xf32>
    %32 = tpu.matmul %29, %31, %cst_16 {dimension_numbers = #tpu.dot_dimension_numbers<[1], [0], [0], [1], [0, 0, 1, 1], [], []>} : vector<8x32xbf16>, vector<32x96xbf16>, vector<8x96xf32> -> vector<8x96xf32>
    %c0_17 = arith.constant 0 : index
    %c0_18 = arith.constant 0 : index
    %c0_19 = arith.constant 0 : index
    %33 = vector.load %arg6[%c0_17, %c0_18, %c0_19] : memref<2x1x96xf32, #tpu.memory_space<vmem>>, vector<1x1x96xf32>
    %34 = vector.shape_cast %33 : vector<1x1x96xf32> to vector<1x96xf32>
    %35 = vector.broadcast %34 : vector<1x96xf32> to vector<8x96xf32>
    %36 = arith.addf %32, %35 : vector<8x96xf32>
    %37 = vector.extract_strided_slice %36 {offsets = [0, 0], sizes = [8, 8], strides = [1, 1]} : vector<8x96xf32> to vector<8x8xf32>
    %38 = vector.extract_strided_slice %36 {offsets = [0, 8], sizes = [8, 8], strides = [1, 1]} : vector<8x96xf32> to vector<8x8xf32>
    %39 = vector.extract_strided_slice %36 {offsets = [0, 16], sizes = [8, 8], strides = [1, 1]} : vector<8x96xf32> to vector<8x8xf32>
    %40 = vector.extract_strided_slice %36 {offsets = [0, 24], sizes = [8, 8], strides = [1, 1]} : vector<8x96xf32> to vector<8x8xf32>
    %41 = vector.shape_cast %37 : vector<8x8xf32> to vector<1x8x8xf32>
    %42 = vector.shape_cast %38 : vector<8x8xf32> to vector<1x8x8xf32>
    %43 = vector.shape_cast %39 : vector<8x8xf32> to vector<1x8x8xf32>
    %44 = vector.shape_cast %40 : vector<8x8xf32> to vector<1x8x8xf32>
    %45 = tpu.concatenate %41, %42, %43, %44 in 0 : vector<1x8x8xf32>, vector<1x8x8xf32>, vector<1x8x8xf32>, vector<1x8x8xf32> -> vector<4x8x8xf32>
    %46 = vector.extract_strided_slice %36 {offsets = [0, 32], sizes = [8, 8], strides = [1, 1]} : vector<8x96xf32> to vector<8x8xf32>
    %47 = vector.extract_strided_slice %36 {offsets = [0, 40], sizes = [8, 8], strides = [1, 1]} : vector<8x96xf32> to vector<8x8xf32>
    %48 = vector.extract_strided_slice %36 {offsets = [0, 48], sizes = [8, 8], strides = [1, 1]} : vector<8x96xf32> to vector<8x8xf32>
    %49 = vector.extract_strided_slice %36 {offsets = [0, 56], sizes = [8, 8], strides = [1, 1]} : vector<8x96xf32> to vector<8x8xf32>
    %50 = vector.shape_cast %46 : vector<8x8xf32> to vector<1x8x8xf32>
    %51 = vector.shape_cast %47 : vector<8x8xf32> to vector<1x8x8xf32>
    %52 = vector.shape_cast %48 : vector<8x8xf32> to vector<1x8x8xf32>
    %53 = vector.shape_cast %49 : vector<8x8xf32> to vector<1x8x8xf32>
    %54 = tpu.concatenate %50, %51, %52, %53 in 0 : vector<1x8x8xf32>, vector<1x8x8xf32>, vector<1x8x8xf32>, vector<1x8x8xf32> -> vector<4x8x8xf32>
    %55 = vector.extract_strided_slice %36 {offsets = [0, 64], sizes = [8, 8], strides = [1, 1]} : vector<8x96xf32> to vector<8x8xf32>
    %56 = vector.extract_strided_slice %36 {offsets = [0, 72], sizes = [8, 8], strides = [1, 1]} : vector<8x96xf32> to vector<8x8xf32>
    %57 = vector.extract_strided_slice %36 {offsets = [0, 80], sizes = [8, 8], strides = [1, 1]} : vector<8x96xf32> to vector<8x8xf32>
    %58 = vector.extract_strided_slice %36 {offsets = [0, 88], sizes = [8, 8], strides = [1, 1]} : vector<8x96xf32> to vector<8x8xf32>
    %59 = vector.shape_cast %55 : vector<8x8xf32> to vector<1x8x8xf32>
    %60 = vector.shape_cast %56 : vector<8x8xf32> to vector<1x8x8xf32>
    %61 = vector.shape_cast %57 : vector<8x8xf32> to vector<1x8x8xf32>
    %62 = vector.shape_cast %58 : vector<8x8xf32> to vector<1x8x8xf32>
    %63 = tpu.concatenate %59, %60, %61, %62 in 0 : vector<1x8x8xf32>, vector<1x8x8xf32>, vector<1x8x8xf32>, vector<1x8x8xf32> -> vector<4x8x8xf32>
    %64 = arith.truncf %45 : vector<4x8x8xf32> to vector<4x8x8xbf16>
    %65 = arith.truncf %54 : vector<4x8x8xf32> to vector<4x8x8xbf16>
    %66 = arith.truncf %63 : vector<4x8x8xf32> to vector<4x8x8xbf16>
    "tpu.trace_start"() <{level = 10 : i32, message = "hqd,hkd->hqk"}> : () -> ()
    %cst_20 = arith.constant dense<0.000000e+00> : vector<4x8x8xf32>
    %67 = tpu.matmul %64, %65, %cst_20 {dimension_numbers = #tpu.dot_dimension_numbers<[2], [2], [1], [1], [0, 0, 0, 1, 1, 1], [0], [0]>} : vector<4x8x8xbf16>, vector<4x8x8xbf16>, vector<4x8x8xf32> -> vector<4x8x8xf32>
    "tpu.trace_stop"() : () -> ()
    %cst_21 = arith.constant 0.353553385 : f32
    %68 = vector.broadcast %cst_21 : f32 to vector<4x8x8xf32>
    %69 = arith.mulf %67, %68 : vector<4x8x8xf32>
    %70 = vector.broadcast %4 : vector<1x1x8xf32> to vector<4x8x8xf32>
    %71 = arith.addf %69, %70 : vector<4x8x8xf32>
    %cst_22 = arith.constant dense<0xFF800000> : vector<4x8xf32>
    %72 = vector.multi_reduction <maximumf>, %71, %cst_22 [2] : vector<4x8x8xf32> to vector<4x8xf32>
    %73 = vector.shape_cast %72 : vector<4x8xf32> to vector<4x8x1xf32>
    %74 = vector.broadcast %73 : vector<4x8x1xf32> to vector<4x8x8xf32>
    %75 = arith.subf %71, %74 : vector<4x8x8xf32>
    %76 = math.exp %75 : vector<4x8x8xf32>
    %cst_23 = arith.constant dense<0.000000e+00> : vector<4x8xf32>
    %77 = vector.multi_reduction <add>, %76, %cst_23 [2] : vector<4x8x8xf32> to vector<4x8xf32>
    %78 = vector.shape_cast %77 : vector<4x8xf32> to vector<4x8x1xf32>
    %79 = tpu.reciprocal %78 {approx = true} : vector<4x8x1xf32> -> vector<4x8x1xf32>
    %80 = vector.broadcast %79 : vector<4x8x1xf32> to vector<4x8x8xf32>
    %81 = arith.mulf %76, %80 : vector<4x8x8xf32>
    %82 = arith.truncf %81 : vector<4x8x8xf32> to vector<4x8x8xbf16>
    "tpu.trace_start"() <{level = 10 : i32, message = "hqk,hkd->hqd"}> : () -> ()
    %cst_24 = arith.constant dense<0.000000e+00> : vector<4x8x8xf32>
    %83 = tpu.matmul %82, %66, %cst_24 {dimension_numbers = #tpu.dot_dimension_numbers<[2], [1], [1], [2], [0, 0, 0, 1, 1, 2], [0], [0]>} : vector<4x8x8xbf16>, vector<4x8x8xbf16>, vector<4x8x8xf32> -> vector<4x8x8xf32>
    "tpu.trace_stop"() : () -> ()
    %84 = arith.truncf %83 : vector<4x8x8xf32> to vector<4x8x8xbf16>
    %c0_25 = arith.constant 0 : index
    %c0_26 = arith.constant 0 : index
    %c0_27 = arith.constant 0 : index
    %c0_28 = arith.constant 0 : index
    %85 = vector.load %arg7[%c0_25, %c0_26, %c0_27, %c0_28] : memref<2x4x8x32xbf16, #tpu.memory_space<vmem>>, vector<1x4x8x32xbf16>
    %86 = vector.shape_cast %85 : vector<1x4x8x32xbf16> to vector<4x8x32xbf16>
    "tpu.trace_start"() <{level = 10 : i32, message = "hsd,hdk->hsk"}> : () -> ()
    %cst_29 = arith.constant dense<0.000000e+00> : vector<4x8x32xf32>
    %87 = tpu.matmul %84, %86, %cst_29 {dimension_numbers = #tpu.dot_dimension_numbers<[2], [1], [1], [2], [0, 0, 0, 1, 1, 2], [0], [0]>} : vector<4x8x8xbf16>, vector<4x8x32xbf16>, vector<4x8x32xf32> -> vector<4x8x32xf32>
    "tpu.trace_stop"() : () -> ()
    %cst_30 = arith.constant dense<0.000000e+00> : vector<8x32xf32>
    %88 = vector.multi_reduction <add>, %87, %cst_30 [0] : vector<4x8x32xf32> to vector<8x32xf32>
    %c0_31 = arith.constant 0 : index
    %c0_32 = arith.constant 0 : index
    %c0_33 = arith.constant 0 : index
    %89 = vector.load %arg8[%c0_31, %c0_32, %c0_33] : memref<2x1x32xf32, #tpu.memory_space<vmem>>, vector<1x1x32xf32>
    %90 = vector.shape_cast %89 : vector<1x1x32xf32> to vector<1x32xf32>
    %91 = vector.broadcast %90 : vector<1x32xf32> to vector<8x32xf32>
    %92 = arith.addf %88, %91 : vector<8x32xf32>
    %93 = arith.addf %92, %28 : vector<8x32xf32>
    %c0_34 = arith.constant 0 : index
    %c0_35 = arith.constant 0 : index
    %c0_36 = arith.constant 0 : index
    %94 = vector.load %arg9[%c0_34, %c0_35, %c0_36] : memref<2x1x32xf32, #tpu.memory_space<vmem>>, vector<1x1x32xf32>
    %95 = vector.shape_cast %94 : vector<1x1x32xf32> to vector<1x32xf32>
    %c0_37 = arith.constant 0 : index
    %c0_38 = arith.constant 0 : index
    %c0_39 = arith.constant 0 : index
    %96 = vector.load %arg10[%c0_37, %c0_38, %c0_39] : memref<2x1x32xf32, #tpu.memory_space<vmem>>, vector<1x1x32xf32>
    %97 = vector.shape_cast %96 : vector<1x1x32xf32> to vector<1x32xf32>
    %cst_40 = arith.constant dense<0.000000e+00> : vector<8xf32>
    %98 = vector.multi_reduction <add>, %93, %cst_40 [1] : vector<8x32xf32> to vector<8xf32>
    %99 = vector.shape_cast %98 : vector<8xf32> to vector<8x1xf32>
    %cst_41 = arith.constant 3.200000e+01 : f32
    %100 = vector.broadcast %cst_41 : f32 to vector<8x1xf32>
    %101 = arith.divf %99, %100 : vector<8x1xf32>
    %102 = vector.broadcast %101 : vector<8x1xf32> to vector<8x32xf32>
    %103 = arith.subf %93, %102 : vector<8x32xf32>
    %104 = arith.mulf %103, %103 : vector<8x32xf32>
    %cst_42 = arith.constant dense<0.000000e+00> : vector<8xf32>
    %105 = vector.multi_reduction <add>, %104, %cst_42 [1] : vector<8x32xf32> to vector<8xf32>
    %106 = vector.shape_cast %105 : vector<8xf32> to vector<8x1xf32>
    %cst_43 = arith.constant 3.200000e+01 : f32
    %107 = vector.broadcast %cst_43 : f32 to vector<8x1xf32>
    %108 = arith.divf %106, %107 : vector<8x1xf32>
    %109 = vector.broadcast %101 : vector<8x1xf32> to vector<8x32xf32>
    %110 = arith.subf %93, %109 : vector<8x32xf32>
    %cst_44 = arith.constant 9.99999996E-13 : f32
    %111 = vector.broadcast %cst_44 : f32 to vector<8x1xf32>
    %112 = arith.addf %108, %111 : vector<8x1xf32>
    %113 = math.rsqrt %112 : vector<8x1xf32>
    %114 = vector.broadcast %113 : vector<8x1xf32> to vector<8x32xf32>
    %115 = arith.mulf %110, %114 : vector<8x32xf32>
    %116 = vector.broadcast %95 : vector<1x32xf32> to vector<8x32xf32>
    %117 = arith.mulf %115, %116 : vector<8x32xf32>
    %118 = vector.broadcast %97 : vector<1x32xf32> to vector<8x32xf32>
    %119 = arith.addf %117, %118 : vector<8x32xf32>
    %120 = arith.truncf %119 : vector<8x32xf32> to vector<8x32xbf16>
    %c0_45 = arith.constant 0 : index
    %c0_46 = arith.constant 0 : index
    %c0_47 = arith.constant 0 : index
    %121 = vector.load %arg11[%c0_45, %c0_46, %c0_47] : memref<2x32x64xbf16, #tpu.memory_space<vmem>>, vector<1x32x64xbf16>
    %122 = vector.shape_cast %121 : vector<1x32x64xbf16> to vector<32x64xbf16>
    %cst_48 = arith.constant dense<0.000000e+00> : vector<8x64xf32>
    %123 = tpu.matmul %120, %122, %cst_48 {dimension_numbers = #tpu.dot_dimension_numbers<[1], [0], [0], [1], [0, 0, 1, 1], [], []>} : vector<8x32xbf16>, vector<32x64xbf16>, vector<8x64xf32> -> vector<8x64xf32>
    %c0_49 = arith.constant 0 : index
    %c0_50 = arith.constant 0 : index
    %c0_51 = arith.constant 0 : index
    %124 = vector.load %arg12[%c0_49, %c0_50, %c0_51] : memref<2x1x64xf32, #tpu.memory_space<vmem>>, vector<1x1x64xf32>
    %125 = vector.shape_cast %124 : vector<1x1x64xf32> to vector<1x64xf32>
    %126 = vector.broadcast %125 : vector<1x64xf32> to vector<8x64xf32>
    %127 = arith.addf %123, %126 : vector<8x64xf32>
    %cst_52 = arith.constant 5.000000e-01 : f32
    %128 = vector.broadcast %cst_52 : f32 to vector<8x64xf32>
    %129 = arith.mulf %128, %127 : vector<8x64xf32>
    %cst_53 = arith.constant 4.471500e-02 : f32
    %130 = vector.broadcast %cst_53 : f32 to vector<8x64xf32>
    %131 = arith.mulf %130, %127 : vector<8x64xf32>
    %132 = arith.mulf %131, %127 : vector<8x64xf32>
    %133 = arith.mulf %132, %127 : vector<8x64xf32>
    %134 = arith.addf %127, %133 : vector<8x64xf32>
    %cst_54 = arith.constant 0.797884583 : f32
    %135 = vector.broadcast %cst_54 : f32 to vector<8x64xf32>
    %136 = arith.mulf %135, %134 : vector<8x64xf32>
    %137 = math.tanh %136 : vector<8x64xf32>
    %cst_55 = arith.constant 1.000000e+00 : f32
    %138 = vector.broadcast %cst_55 : f32 to vector<8x64xf32>
    %139 = arith.addf %138, %137 : vector<8x64xf32>
    %140 = arith.mulf %129, %139 : vector<8x64xf32>
    %141 = arith.truncf %140 : vector<8x64xf32> to vector<8x64xbf16>
    %c0_56 = arith.constant 0 : index
    %c0_57 = arith.constant 0 : index
    %c0_58 = arith.constant 0 : index
    %142 = vector.load %arg13[%c0_56, %c0_57, %c0_58] : memref<2x64x32xbf16, #tpu.memory_space<vmem>>, vector<1x64x32xbf16>
    %143 = vector.shape_cast %142 : vector<1x64x32xbf16> to vector<64x32xbf16>
    %cst_59 = arith.constant dense<0.000000e+00> : vector<8x32xf32>
    %144 = tpu.matmul %141, %143, %cst_59 {dimension_numbers = #tpu.dot_dimension_numbers<[1], [0], [0], [1], [0, 0, 1, 1], [], []>} : vector<8x64xbf16>, vector<64x32xbf16>, vector<8x32xf32> -> vector<8x32xf32>
    %c0_60 = arith.constant 0 : index
    %c0_61 = arith.constant 0 : index
    %c0_62 = arith.constant 0 : index
    %145 = vector.load %arg14[%c0_60, %c0_61, %c0_62] : memref<2x1x32xf32, #tpu.memory_space<vmem>>, vector<1x1x32xf32>
    %146 = vector.shape_cast %145 : vector<1x1x32xf32> to vector<1x32xf32>
    %147 = vector.broadcast %146 : vector<1x32xf32> to vector<8x32xf32>
    %148 = arith.addf %144, %147 : vector<8x32xf32>
    %149 = arith.addf %148, %119 : vector<8x32xf32>
    %c0_63 = arith.constant 0 : index
    %c0_64 = arith.constant 0 : index
    %c0_65 = arith.constant 0 : index
    %150 = vector.load %arg15[%c0_63, %c0_64, %c0_65] : memref<2x1x32xf32, #tpu.memory_space<vmem>>, vector<1x1x32xf32>
    %151 = vector.shape_cast %150 : vector<1x1x32xf32> to vector<1x32xf32>
    %c0_66 = arith.constant 0 : index
    %c0_67 = arith.constant 0 : index
    %c0_68 = arith.constant 0 : index
    %152 = vector.load %arg16[%c0_66, %c0_67, %c0_68] : memref<2x1x32xf32, #tpu.memory_space<vmem>>, vector<1x1x32xf32>
    %153 = vector.shape_cast %152 : vector<1x1x32xf32> to vector<1x32xf32>
    %cst_69 = arith.constant dense<0.000000e+00> : vector<8xf32>
    %154 = vector.multi_reduction <add>, %149, %cst_69 [1] : vector<8x32xf32> to vector<8xf32>
    %155 = vector.shape_cast %154 : vector<8xf32> to vector<8x1xf32>
    %cst_70 = arith.constant 3.200000e+01 : f32
    %156 = vector.broadcast %cst_70 : f32 to vector<8x1xf32>
    %157 = arith.divf %155, %156 : vector<8x1xf32>
    %158 = vector.broadcast %157 : vector<8x1xf32> to vector<8x32xf32>
    %159 = arith.subf %149, %158 : vector<8x32xf32>
    %160 = arith.mulf %159, %159 : vector<8x32xf32>
    %cst_71 = arith.constant dense<0.000000e+00> : vector<8xf32>
    %161 = vector.multi_reduction <add>, %160, %cst_71 [1] : vector<8x32xf32> to vector<8xf32>
    %162 = vector.shape_cast %161 : vector<8xf32> to vector<8x1xf32>
    %cst_72 = arith.constant 3.200000e+01 : f32
    %163 = vector.broadcast %cst_72 : f32 to vector<8x1xf32>
    %164 = arith.divf %162, %163 : vector<8x1xf32>
    %165 = vector.broadcast %157 : vector<8x1xf32> to vector<8x32xf32>
    %166 = arith.subf %149, %165 : vector<8x32xf32>
    %cst_73 = arith.constant 9.99999996E-13 : f32
    %167 = vector.broadcast %cst_73 : f32 to vector<8x1xf32>
    %168 = arith.addf %164, %167 : vector<8x1xf32>
    %169 = math.rsqrt %168 : vector<8x1xf32>
    %170 = vector.broadcast %169 : vector<8x1xf32> to vector<8x32xf32>
    %171 = arith.mulf %166, %170 : vector<8x32xf32>
    %172 = vector.broadcast %151 : vector<1x32xf32> to vector<8x32xf32>
    %173 = arith.mulf %171, %172 : vector<8x32xf32>
    %174 = vector.broadcast %153 : vector<1x32xf32> to vector<8x32xf32>
    %175 = arith.addf %173, %174 : vector<8x32xf32>
    %176 = arith.truncf %175 : vector<8x32xf32> to vector<8x32xbf16>
    %c1 = arith.constant 1 : index
    %c0_74 = arith.constant 0 : index
    %c0_75 = arith.constant 0 : index
    %177 = vector.load %arg5[%c1, %c0_74, %c0_75] : memref<2x32x96xbf16, #tpu.memory_space<vmem>>, vector<1x32x96xbf16>
    %178 = vector.shape_cast %177 : vector<1x32x96xbf16> to vector<32x96xbf16>
    %cst_76 = arith.constant dense<0.000000e+00> : vector<8x96xf32>
    %179 = tpu.matmul %176, %178, %cst_76 {dimension_numbers = #tpu.dot_dimension_numbers<[1], [0], [0], [1], [0, 0, 1, 1], [], []>} : vector<8x32xbf16>, vector<32x96xbf16>, vector<8x96xf32> -> vector<8x96xf32>
    %c1_77 = arith.constant 1 : index
    %c0_78 = arith.constant 0 : index
    %c0_79 = arith.constant 0 : index
    %180 = vector.load %arg6[%c1_77, %c0_78, %c0_79] : memref<2x1x96xf32, #tpu.memory_space<vmem>>, vector<1x1x96xf32>
    %181 = vector.shape_cast %180 : vector<1x1x96xf32> to vector<1x96xf32>
    %182 = vector.broadcast %181 : vector<1x96xf32> to vector<8x96xf32>
    %183 = arith.addf %179, %182 : vector<8x96xf32>
    %184 = vector.extract_strided_slice %183 {offsets = [0, 0], sizes = [8, 8], strides = [1, 1]} : vector<8x96xf32> to vector<8x8xf32>
    %185 = vector.extract_strided_slice %183 {offsets = [0, 8], sizes = [8, 8], strides = [1, 1]} : vector<8x96xf32> to vector<8x8xf32>
    %186 = vector.extract_strided_slice %183 {offsets = [0, 16], sizes = [8, 8], strides = [1, 1]} : vector<8x96xf32> to vector<8x8xf32>
    %187 = vector.extract_strided_slice %183 {offsets = [0, 24], sizes = [8, 8], strides = [1, 1]} : vector<8x96xf32> to vector<8x8xf32>
    %188 = vector.shape_cast %184 : vector<8x8xf32> to vector<1x8x8xf32>
    %189 = vector.shape_cast %185 : vector<8x8xf32> to vector<1x8x8xf32>
    %190 = vector.shape_cast %186 : vector<8x8xf32> to vector<1x8x8xf32>
    %191 = vector.shape_cast %187 : vector<8x8xf32> to vector<1x8x8xf32>
    %192 = tpu.concatenate %188, %189, %190, %191 in 0 : vector<1x8x8xf32>, vector<1x8x8xf32>, vector<1x8x8xf32>, vector<1x8x8xf32> -> vector<4x8x8xf32>
    %193 = vector.extract_strided_slice %183 {offsets = [0, 32], sizes = [8, 8], strides = [1, 1]} : vector<8x96xf32> to vector<8x8xf32>
    %194 = vector.extract_strided_slice %183 {offsets = [0, 40], sizes = [8, 8], strides = [1, 1]} : vector<8x96xf32> to vector<8x8xf32>
    %195 = vector.extract_strided_slice %183 {offsets = [0, 48], sizes = [8, 8], strides = [1, 1]} : vector<8x96xf32> to vector<8x8xf32>
    %196 = vector.extract_strided_slice %183 {offsets = [0, 56], sizes = [8, 8], strides = [1, 1]} : vector<8x96xf32> to vector<8x8xf32>
    %197 = vector.shape_cast %193 : vector<8x8xf32> to vector<1x8x8xf32>
    %198 = vector.shape_cast %194 : vector<8x8xf32> to vector<1x8x8xf32>
    %199 = vector.shape_cast %195 : vector<8x8xf32> to vector<1x8x8xf32>
    %200 = vector.shape_cast %196 : vector<8x8xf32> to vector<1x8x8xf32>
    %201 = tpu.concatenate %197, %198, %199, %200 in 0 : vector<1x8x8xf32>, vector<1x8x8xf32>, vector<1x8x8xf32>, vector<1x8x8xf32> -> vector<4x8x8xf32>
    %202 = vector.extract_strided_slice %183 {offsets = [0, 64], sizes = [8, 8], strides = [1, 1]} : vector<8x96xf32> to vector<8x8xf32>
    %203 = vector.extract_strided_slice %183 {offsets = [0, 72], sizes = [8, 8], strides = [1, 1]} : vector<8x96xf32> to vector<8x8xf32>
    %204 = vector.extract_strided_slice %183 {offsets = [0, 80], sizes = [8, 8], strides = [1, 1]} : vector<8x96xf32> to vector<8x8xf32>
    %205 = vector.extract_strided_slice %183 {offsets = [0, 88], sizes = [8, 8], strides = [1, 1]} : vector<8x96xf32> to vector<8x8xf32>
    %206 = vector.shape_cast %202 : vector<8x8xf32> to vector<1x8x8xf32>
    %207 = vector.shape_cast %203 : vector<8x8xf32> to vector<1x8x8xf32>
    %208 = vector.shape_cast %204 : vector<8x8xf32> to vector<1x8x8xf32>
    %209 = vector.shape_cast %205 : vector<8x8xf32> to vector<1x8x8xf32>
    %210 = tpu.concatenate %206, %207, %208, %209 in 0 : vector<1x8x8xf32>, vector<1x8x8xf32>, vector<1x8x8xf32>, vector<1x8x8xf32> -> vector<4x8x8xf32>
    %211 = arith.truncf %192 : vector<4x8x8xf32> to vector<4x8x8xbf16>
    %212 = arith.truncf %201 : vector<4x8x8xf32> to vector<4x8x8xbf16>
    %213 = arith.truncf %210 : vector<4x8x8xf32> to vector<4x8x8xbf16>
    "tpu.trace_start"() <{level = 10 : i32, message = "hqd,hkd->hqk"}> : () -> ()
    %cst_80 = arith.constant dense<0.000000e+00> : vector<4x8x8xf32>
    %214 = tpu.matmul %211, %212, %cst_80 {dimension_numbers = #tpu.dot_dimension_numbers<[2], [2], [1], [1], [0, 0, 0, 1, 1, 1], [0], [0]>} : vector<4x8x8xbf16>, vector<4x8x8xbf16>, vector<4x8x8xf32> -> vector<4x8x8xf32>
    "tpu.trace_stop"() : () -> ()
    %cst_81 = arith.constant 0.353553385 : f32
    %215 = vector.broadcast %cst_81 : f32 to vector<4x8x8xf32>
    %216 = arith.mulf %214, %215 : vector<4x8x8xf32>
    %217 = vector.broadcast %4 : vector<1x1x8xf32> to vector<4x8x8xf32>
    %218 = arith.addf %216, %217 : vector<4x8x8xf32>
    %cst_82 = arith.constant dense<0xFF800000> : vector<4x8xf32>
    %219 = vector.multi_reduction <maximumf>, %218, %cst_82 [2] : vector<4x8x8xf32> to vector<4x8xf32>
    %220 = vector.shape_cast %219 : vector<4x8xf32> to vector<4x8x1xf32>
    %221 = vector.broadcast %220 : vector<4x8x1xf32> to vector<4x8x8xf32>
    %222 = arith.subf %218, %221 : vector<4x8x8xf32>
    %223 = math.exp %222 : vector<4x8x8xf32>
    %cst_83 = arith.constant dense<0.000000e+00> : vector<4x8xf32>
    %224 = vector.multi_reduction <add>, %223, %cst_83 [2] : vector<4x8x8xf32> to vector<4x8xf32>
    %225 = vector.shape_cast %224 : vector<4x8xf32> to vector<4x8x1xf32>
    %226 = tpu.reciprocal %225 {approx = true} : vector<4x8x1xf32> -> vector<4x8x1xf32>
    %227 = vector.broadcast %226 : vector<4x8x1xf32> to vector<4x8x8xf32>
    %228 = arith.mulf %223, %227 : vector<4x8x8xf32>
    %229 = arith.truncf %228 : vector<4x8x8xf32> to vector<4x8x8xbf16>
    "tpu.trace_start"() <{level = 10 : i32, message = "hqk,hkd->hqd"}> : () -> ()
    %cst_84 = arith.constant dense<0.000000e+00> : vector<4x8x8xf32>
    %230 = tpu.matmul %229, %213, %cst_84 {dimension_numbers = #tpu.dot_dimension_numbers<[2], [1], [1], [2], [0, 0, 0, 1, 1, 2], [0], [0]>} : vector<4x8x8xbf16>, vector<4x8x8xbf16>, vector<4x8x8xf32> -> vector<4x8x8xf32>
    "tpu.trace_stop"() : () -> ()
    %231 = arith.truncf %230 : vector<4x8x8xf32> to vector<4x8x8xbf16>
    %c1_85 = arith.constant 1 : index
    %c0_86 = arith.constant 0 : index
    %c0_87 = arith.constant 0 : index
    %c0_88 = arith.constant 0 : index
    %232 = vector.load %arg7[%c1_85, %c0_86, %c0_87, %c0_88] : memref<2x4x8x32xbf16, #tpu.memory_space<vmem>>, vector<1x4x8x32xbf16>
    %233 = vector.shape_cast %232 : vector<1x4x8x32xbf16> to vector<4x8x32xbf16>
    "tpu.trace_start"() <{level = 10 : i32, message = "hsd,hdk->hsk"}> : () -> ()
    %cst_89 = arith.constant dense<0.000000e+00> : vector<4x8x32xf32>
    %234 = tpu.matmul %231, %233, %cst_89 {dimension_numbers = #tpu.dot_dimension_numbers<[2], [1], [1], [2], [0, 0, 0, 1, 1, 2], [0], [0]>} : vector<4x8x8xbf16>, vector<4x8x32xbf16>, vector<4x8x32xf32> -> vector<4x8x32xf32>
    "tpu.trace_stop"() : () -> ()
    %cst_90 = arith.constant dense<0.000000e+00> : vector<8x32xf32>
    %235 = vector.multi_reduction <add>, %234, %cst_90 [0] : vector<4x8x32xf32> to vector<8x32xf32>
    %c1_91 = arith.constant 1 : index
    %c0_92 = arith.constant 0 : index
    %c0_93 = arith.constant 0 : index
    %236 = vector.load %arg8[%c1_91, %c0_92, %c0_93] : memref<2x1x32xf32, #tpu.memory_space<vmem>>, vector<1x1x32xf32>
    %237 = vector.shape_cast %236 : vector<1x1x32xf32> to vector<1x32xf32>
    %238 = vector.broadcast %237 : vector<1x32xf32> to vector<8x32xf32>
    %239 = arith.addf %235, %238 : vector<8x32xf32>
    %240 = arith.addf %239, %175 : vector<8x32xf32>
    %c1_94 = arith.constant 1 : index
    %c0_95 = arith.constant 0 : index
    %c0_96 = arith.constant 0 : index
    %241 = vector.load %arg9[%c1_94, %c0_95, %c0_96] : memref<2x1x32xf32, #tpu.memory_space<vmem>>, vector<1x1x32xf32>
    %242 = vector.shape_cast %241 : vector<1x1x32xf32> to vector<1x32xf32>
    %c1_97 = arith.constant 1 : index
    %c0_98 = arith.constant 0 : index
    %c0_99 = arith.constant 0 : index
    %243 = vector.load %arg10[%c1_97, %c0_98, %c0_99] : memref<2x1x32xf32, #tpu.memory_space<vmem>>, vector<1x1x32xf32>
    %244 = vector.shape_cast %243 : vector<1x1x32xf32> to vector<1x32xf32>
    %cst_100 = arith.constant dense<0.000000e+00> : vector<8xf32>
    %245 = vector.multi_reduction <add>, %240, %cst_100 [1] : vector<8x32xf32> to vector<8xf32>
    %246 = vector.shape_cast %245 : vector<8xf32> to vector<8x1xf32>
    %cst_101 = arith.constant 3.200000e+01 : f32
    %247 = vector.broadcast %cst_101 : f32 to vector<8x1xf32>
    %248 = arith.divf %246, %247 : vector<8x1xf32>
    %249 = vector.broadcast %248 : vector<8x1xf32> to vector<8x32xf32>
    %250 = arith.subf %240, %249 : vector<8x32xf32>
    %251 = arith.mulf %250, %250 : vector<8x32xf32>
    %cst_102 = arith.constant dense<0.000000e+00> : vector<8xf32>
    %252 = vector.multi_reduction <add>, %251, %cst_102 [1] : vector<8x32xf32> to vector<8xf32>
    %253 = vector.shape_cast %252 : vector<8xf32> to vector<8x1xf32>
    %cst_103 = arith.constant 3.200000e+01 : f32
    %254 = vector.broadcast %cst_103 : f32 to vector<8x1xf32>
    %255 = arith.divf %253, %254 : vector<8x1xf32>
    %256 = vector.broadcast %248 : vector<8x1xf32> to vector<8x32xf32>
    %257 = arith.subf %240, %256 : vector<8x32xf32>
    %cst_104 = arith.constant 9.99999996E-13 : f32
    %258 = vector.broadcast %cst_104 : f32 to vector<8x1xf32>
    %259 = arith.addf %255, %258 : vector<8x1xf32>
    %260 = math.rsqrt %259 : vector<8x1xf32>
    %261 = vector.broadcast %260 : vector<8x1xf32> to vector<8x32xf32>
    %262 = arith.mulf %257, %261 : vector<8x32xf32>
    %263 = vector.broadcast %242 : vector<1x32xf32> to vector<8x32xf32>
    %264 = arith.mulf %262, %263 : vector<8x32xf32>
    %265 = vector.broadcast %244 : vector<1x32xf32> to vector<8x32xf32>
    %266 = arith.addf %264, %265 : vector<8x32xf32>
    %267 = arith.truncf %266 : vector<8x32xf32> to vector<8x32xbf16>
    %c1_105 = arith.constant 1 : index
    %c0_106 = arith.constant 0 : index
    %c0_107 = arith.constant 0 : index
    %268 = vector.load %arg11[%c1_105, %c0_106, %c0_107] : memref<2x32x64xbf16, #tpu.memory_space<vmem>>, vector<1x32x64xbf16>
    %269 = vector.shape_cast %268 : vector<1x32x64xbf16> to vector<32x64xbf16>
    %cst_108 = arith.constant dense<0.000000e+00> : vector<8x64xf32>
    %270 = tpu.matmul %267, %269, %cst_108 {dimension_numbers = #tpu.dot_dimension_numbers<[1], [0], [0], [1], [0, 0, 1, 1], [], []>} : vector<8x32xbf16>, vector<32x64xbf16>, vector<8x64xf32> -> vector<8x64xf32>
    %c1_109 = arith.constant 1 : index
    %c0_110 = arith.constant 0 : index
    %c0_111 = arith.constant 0 : index
    %271 = vector.load %arg12[%c1_109, %c0_110, %c0_111] : memref<2x1x64xf32, #tpu.memory_space<vmem>>, vector<1x1x64xf32>
    %272 = vector.shape_cast %271 : vector<1x1x64xf32> to vector<1x64xf32>
    %273 = vector.broadcast %272 : vector<1x64xf32> to vector<8x64xf32>
    %274 = arith.addf %270, %273 : vector<8x64xf32>
    %cst_112 = arith.constant 5.000000e-01 : f32
    %275 = vector.broadcast %cst_112 : f32 to vector<8x64xf32>
    %276 = arith.mulf %275, %274 : vector<8x64xf32>
    %cst_113 = arith.constant 4.471500e-02 : f32
    %277 = vector.broadcast %cst_113 : f32 to vector<8x64xf32>
    %278 = arith.mulf %277, %274 : vector<8x64xf32>
    %279 = arith.mulf %278, %274 : vector<8x64xf32>
    %280 = arith.mulf %279, %274 : vector<8x64xf32>
    %281 = arith.addf %274, %280 : vector<8x64xf32>
    %cst_114 = arith.constant 0.797884583 : f32
    %282 = vector.broadcast %cst_114 : f32 to vector<8x64xf32>
    %283 = arith.mulf %282, %281 : vector<8x64xf32>
    %284 = math.tanh %283 : vector<8x64xf32>
    %cst_115 = arith.constant 1.000000e+00 : f32
    %285 = vector.broadcast %cst_115 : f32 to vector<8x64xf32>
    %286 = arith.addf %285, %284 : vector<8x64xf32>
    %287 = arith.mulf %276, %286 : vector<8x64xf32>
    %288 = arith.truncf %287 : vector<8x64xf32> to vector<8x64xbf16>
    %c1_116 = arith.constant 1 : index
    %c0_117 = arith.constant 0 : index
    %c0_118 = arith.constant 0 : index
    %289 = vector.load %arg13[%c1_116, %c0_117, %c0_118] : memref<2x64x32xbf16, #tpu.memory_space<vmem>>, vector<1x64x32xbf16>
    %290 = vector.shape_cast %289 : vector<1x64x32xbf16> to vector<64x32xbf16>
    %cst_119 = arith.constant dense<0.000000e+00> : vector<8x32xf32>
    %291 = tpu.matmul %288, %290, %cst_119 {dimension_numbers = #tpu.dot_dimension_numbers<[1], [0], [0], [1], [0, 0, 1, 1], [], []>} : vector<8x64xbf16>, vector<64x32xbf16>, vector<8x32xf32> -> vector<8x32xf32>
    %c1_120 = arith.constant 1 : index
    %c0_121 = arith.constant 0 : index
    %c0_122 = arith.constant 0 : index
    %292 = vector.load %arg14[%c1_120, %c0_121, %c0_122] : memref<2x1x32xf32, #tpu.memory_space<vmem>>, vector<1x1x32xf32>
    %293 = vector.shape_cast %292 : vector<1x1x32xf32> to vector<1x32xf32>
    %294 = vector.broadcast %293 : vector<1x32xf32> to vector<8x32xf32>
    %295 = arith.addf %291, %294 : vector<8x32xf32>
    %296 = arith.addf %295, %266 : vector<8x32xf32>
    %c1_123 = arith.constant 1 : index
    %c0_124 = arith.constant 0 : index
    %c0_125 = arith.constant 0 : index
    %297 = vector.load %arg15[%c1_123, %c0_124, %c0_125] : memref<2x1x32xf32, #tpu.memory_space<vmem>>, vector<1x1x32xf32>
    %298 = vector.shape_cast %297 : vector<1x1x32xf32> to vector<1x32xf32>
    %c1_126 = arith.constant 1 : index
    %c0_127 = arith.constant 0 : index
    %c0_128 = arith.constant 0 : index
    %299 = vector.load %arg16[%c1_126, %c0_127, %c0_128] : memref<2x1x32xf32, #tpu.memory_space<vmem>>, vector<1x1x32xf32>
    %300 = vector.shape_cast %299 : vector<1x1x32xf32> to vector<1x32xf32>
    %cst_129 = arith.constant dense<0.000000e+00> : vector<8xf32>
    %301 = vector.multi_reduction <add>, %296, %cst_129 [1] : vector<8x32xf32> to vector<8xf32>
    %302 = vector.shape_cast %301 : vector<8xf32> to vector<8x1xf32>
    %cst_130 = arith.constant 3.200000e+01 : f32
    %303 = vector.broadcast %cst_130 : f32 to vector<8x1xf32>
    %304 = arith.divf %302, %303 : vector<8x1xf32>
    %305 = vector.broadcast %304 : vector<8x1xf32> to vector<8x32xf32>
    %306 = arith.subf %296, %305 : vector<8x32xf32>
    %307 = arith.mulf %306, %306 : vector<8x32xf32>
    %cst_131 = arith.constant dense<0.000000e+00> : vector<8xf32>
    %308 = vector.multi_reduction <add>, %307, %cst_131 [1] : vector<8x32xf32> to vector<8xf32>
    %309 = vector.shape_cast %308 : vector<8xf32> to vector<8x1xf32>
    %cst_132 = arith.constant 3.200000e+01 : f32
    %310 = vector.broadcast %cst_132 : f32 to vector<8x1xf32>
    %311 = arith.divf %309, %310 : vector<8x1xf32>
    %312 = vector.broadcast %304 : vector<8x1xf32> to vector<8x32xf32>
    %313 = arith.subf %296, %312 : vector<8x32xf32>
    %cst_133 = arith.constant 9.99999996E-13 : f32
    %314 = vector.broadcast %cst_133 : f32 to vector<8x1xf32>
    %315 = arith.addf %311, %314 : vector<8x1xf32>
    %316 = math.rsqrt %315 : vector<8x1xf32>
    %317 = vector.broadcast %316 : vector<8x1xf32> to vector<8x32xf32>
    %318 = arith.mulf %313, %317 : vector<8x32xf32>
    %319 = vector.broadcast %298 : vector<1x32xf32> to vector<8x32xf32>
    %320 = arith.mulf %318, %319 : vector<8x32xf32>
    %321 = vector.broadcast %300 : vector<1x32xf32> to vector<8x32xf32>
    %322 = arith.addf %320, %321 : vector<8x32xf32>
    %cst_134 = arith.constant dense<0.000000e+00> : vector<32xf32>
    %323 = vector.multi_reduction <add>, %322, %cst_134 [0] : vector<8x32xf32> to vector<32xf32>
    %324 = vector.shape_cast %323 : vector<32xf32> to vector<1x32xf32>
    %cst_135 = arith.constant 8.000000e+00 : f32
    %325 = vector.broadcast %cst_135 : f32 to vector<1x32xf32>
    %326 = arith.divf %324, %325 : vector<1x32xf32>
    %cst_136 = arith.constant dense<0.000000e+00> : vector<32xf32>
    %327 = vector.multi_reduction <add>, %175, %cst_136 [0] : vector<8x32xf32> to vector<32xf32>
    %328 = vector.shape_cast %327 : vector<32xf32> to vector<1x32xf32>
    %cst_137 = arith.constant 8.000000e+00 : f32
    %329 = vector.broadcast %cst_137 : f32 to vector<1x32xf32>
    %330 = arith.divf %328, %329 : vector<1x32xf32>
    %331 = tpu.concatenate %326, %330 in 1 : vector<1x32xf32>, vector<1x32xf32> -> vector<1x64xf32>
    %332 = arith.truncf %331 : vector<1x64xf32> to vector<1x64xbf16>
    %c0_138 = arith.constant 0 : index
    %c0_139 = arith.constant 0 : index
    %333 = vector.load %arg17[%c0_138, %c0_139] : memref<64x128xbf16, #tpu.memory_space<vmem>>, vector<64x128xbf16>
    %cst_140 = arith.constant dense<0.000000e+00> : vector<1x128xf32>
    %334 = tpu.matmul %332, %333, %cst_140 {dimension_numbers = #tpu.dot_dimension_numbers<[1], [0], [0], [1], [0, 0, 1, 1], [], []>} : vector<1x64xbf16>, vector<64x128xbf16>, vector<1x128xf32> -> vector<1x128xf32>
    %c0_141 = arith.constant 0 : index
    %c0_142 = arith.constant 0 : index
    %335 = vector.load %arg18[%c0_141, %c0_142] : memref<1x128xf32, #tpu.memory_space<vmem>>, vector<1x128xf32>
    %336 = arith.addf %334, %335 : vector<1x128xf32>
    %337 = arith.negf %336 : vector<1x128xf32>
    %338 = math.exp %337 : vector<1x128xf32>
    %cst_143 = arith.constant 1.000000e+00 : f32
    %339 = vector.broadcast %cst_143 : f32 to vector<1x128xf32>
    %340 = arith.addf %339, %338 : vector<1x128xf32>
    %341 = arith.divf %339, %340 : vector<1x128xf32>
    %c0_144 = arith.constant 0 : index
    %c0_145 = arith.constant 0 : index
    %c0_146 = arith.constant 0 : index
    %342 = vector.load %arg19[%c0_144, %c0_145, %c0_146] : memref<1x1x128xf32, #tpu.memory_space<vmem>>, vector<1x1x128xf32>
    %343 = vector.shape_cast %342 : vector<1x1x128xf32> to vector<1x128xf32>
    %344 = vector.shape_cast %341 : vector<1x128xf32> to vector<1x1x128xf32>
    tpu.vector_store %arg19[%c0_144, %c0_145, %c0_146], %344 {strides = array<i32>} : memref<1x1x128xf32, #tpu.memory_space<vmem>>, vector<1x1x128xf32>,
    return
  }
  func.func @transform_0(%arg0: i32) -> (i32, i32, i32) {
    %c0_i32 = arith.constant 0 : i32
    %c0_i32_0 = arith.constant 0 : i32
    %c0_i32_1 = arith.constant 0 : i32
    return %arg0, %c0_i32, %c0_i32_0 : i32, i32, i32
  }
  func.func @transform_1(%arg0: i32) -> (i32, i32, i32) {
    %c0_i32 = arith.constant 0 : i32
    %c0_i32_0 = arith.constant 0 : i32
    %c0_i32_1 = arith.constant 0 : i32
    return %arg0, %c0_i32, %c0_i32_0 : i32, i32, i32
  }
  func.func @transform_2(%arg0: i32) -> (i32, i32) {
    %c0_i32 = arith.constant 0 : i32
    %c0_i32_0 = arith.constant 0 : i32
    %c0_i32_1 = arith.constant 0 : i32
    return %c0_i32, %c0_i32_0 : i32, i32
  }
  func.func @transform_3(%arg0: i32) -> (i32, i32) {
    %c0_i32 = arith.constant 0 : i32
    %c0_i32_0 = arith.constant 0 : i32
    %c0_i32_1 = arith.constant 0 : i32
    return %c0_i32, %c0_i32_0 : i32, i32
  }
  func.func @transform_4(%arg0: i32) -> (i32, i32, i32) {
    %c0_i32 = arith.constant 0 : i32
    %c0_i32_0 = arith.constant 0 : i32
    %c0_i32_1 = arith.constant 0 : i32
    %c0_i32_2 = arith.constant 0 : i32
    return %c0_i32, %c0_i32_0, %c0_i32_1 : i32, i32, i32
  }
  func.func @transform_5(%arg0: i32) -> (i32, i32, i32) {
    %c0_i32 = arith.constant 0 : i32
    %c0_i32_0 = arith.constant 0 : i32
    %c0_i32_1 = arith.constant 0 : i32
    %c0_i32_2 = arith.constant 0 : i32
    return %c0_i32, %c0_i32_0, %c0_i32_1 : i32, i32, i32
  }
  func.func @transform_6(%arg0: i32) -> (i32, i32, i32, i32) {
    %c0_i32 = arith.constant 0 : i32
    %c0_i32_0 = arith.constant 0 : i32
    %c0_i32_1 = arith.constant 0 : i32
    %c0_i32_2 = arith.constant 0 : i32
    %c0_i32_3 = arith.constant 0 : i32
    return %c0_i32, %c0_i32_0, %c0_i32_1, %c0_i32_2 : i32, i32, i32, i32
  }
  func.func @transform_7(%arg0: i32) -> (i32, i32, i32) {
    %c0_i32 = arith.constant 0 : i32
    %c0_i32_0 = arith.constant 0 : i32
    %c0_i32_1 = arith.constant 0 : i32
    %c0_i32_2 = arith.constant 0 : i32
    return %c0_i32, %c0_i32_0, %c0_i32_1 : i32, i32, i32
  }
  func.func @transform_8(%arg0: i32) -> (i32, i32, i32) {
    %c0_i32 = arith.constant 0 : i32
    %c0_i32_0 = arith.constant 0 : i32
    %c0_i32_1 = arith.constant 0 : i32
    %c0_i32_2 = arith.constant 0 : i32
    return %c0_i32, %c0_i32_0, %c0_i32_1 : i32, i32, i32
  }
  func.func @transform_9(%arg0: i32) -> (i32, i32, i32) {
    %c0_i32 = arith.constant 0 : i32
    %c0_i32_0 = arith.constant 0 : i32
    %c0_i32_1 = arith.constant 0 : i32
    %c0_i32_2 = arith.constant 0 : i32
    return %c0_i32, %c0_i32_0, %c0_i32_1 : i32, i32, i32
  }
  func.func @transform_10(%arg0: i32) -> (i32, i32, i32) {
    %c0_i32 = arith.constant 0 : i32
    %c0_i32_0 = arith.constant 0 : i32
    %c0_i32_1 = arith.constant 0 : i32
    %c0_i32_2 = arith.constant 0 : i32
    return %c0_i32, %c0_i32_0, %c0_i32_1 : i32, i32, i32
  }
  func.func @transform_11(%arg0: i32) -> (i32, i32, i32) {
    %c0_i32 = arith.constant 0 : i32
    %c0_i32_0 = arith.constant 0 : i32
    %c0_i32_1 = arith.constant 0 : i32
    %c0_i32_2 = arith.constant 0 : i32
    return %c0_i32, %c0_i32_0, %c0_i32_1 : i32, i32, i32
  }
  func.func @transform_12(%arg0: i32) -> (i32, i32, i32) {
    %c0_i32 = arith.constant 0 : i32
    %c0_i32_0 = arith.constant 0 : i32
    %c0_i32_1 = arith.constant 0 : i32
    %c0_i32_2 = arith.constant 0 : i32
    return %c0_i32, %c0_i32_0, %c0_i32_1 : i32, i32, i32
  }
  func.func @transform_13(%arg0: i32) -> (i32, i32, i32) {
    %c0_i32 = arith.constant 0 : i32
    %c0_i32_0 = arith.constant 0 : i32
    %c0_i32_1 = arith.constant 0 : i32
    %c0_i32_2 = arith.constant 0 : i32
    return %c0_i32, %c0_i32_0, %c0_i32_1 : i32, i32, i32
  }
  func.func @transform_14(%arg0: i32) -> (i32, i32, i32) {
    %c0_i32 = arith.constant 0 : i32
    %c0_i32_0 = arith.constant 0 : i32
    %c0_i32_1 = arith.constant 0 : i32
    %c0_i32_2 = arith.constant 0 : i32
    return %c0_i32, %c0_i32_0, %c0_i32_1 : i32, i32, i32
  }
  func.func @transform_15(%arg0: i32) -> (i32, i32, i32) {
    %c0_i32 = arith.constant 0 : i32
    %c0_i32_0 = arith.constant 0 : i32
    %c0_i32_1 = arith.constant 0 : i32
    %c0_i32_2 = arith.constant 0 : i32
    return %c0_i32, %c0_i32_0, %c0_i32_1 : i32, i32, i32
  }
  func.func @transform_16(%arg0: i32) -> (i32, i32) {
    %c0_i32 = arith.constant 0 : i32
    %c0_i32_0 = arith.constant 0 : i32
    %c0_i32_1 = arith.constant 0 : i32
    return %c0_i32, %c0_i32_0 : i32, i32
  }
  func.func @transform_17(%arg0: i32) -> (i32, i32) {
    %c0_i32 = arith.constant 0 : i32
    %c0_i32_0 = arith.constant 0 : i32
    %c0_i32_1 = arith.constant 0 : i32
    return %c0_i32, %c0_i32_0 : i32, i32
  }
  func.func @transform_18(%arg0: i32) -> (i32, i32, i32) {
    %c0_i32 = arith.constant 0 : i32
    %c0_i32_0 = arith.constant 0 : i32
    %c0_i32_1 = arith.constant 0 : i32
    return %arg0, %c0_i32, %c0_i32_0 : i32, i32, i32
  }
}

</mosaic_0001>

<llo_original>
// kernel: bert_forward.1
$region0: #{bert_forward.1}
  #allocation0 [shape = 'u32[]', space=smem, size = 0x4, offset = 0x4, fixed_abs, tag = 'smem constant byte address 0x4 - core index']
  #allocation1 [shape = 'u32[144,128]{1,0:T(1,128)}', space=vmem, size = 0x12000, scoped, tag = 'internal scratch']
  %s0 = inlined_call_operand.vmem [shape: f32[2,8,32], index: 0, kind: input, shape index: {}]
  %s1 = inlined_call_operand.vmem [shape: f32[2,1,8], index: 1, kind: input, shape index: {}]
  %s2 = inlined_call_operand.vmem [shape: f32[1,32], index: 2, kind: input, shape index: {}]
  %s3 = inlined_call_operand.vmem [shape: f32[1,32], index: 3, kind: input, shape index: {}]
  %s4 = inlined_call_operand.vmem [shape: bf16[2,32,96], index: 4, kind: input, shape index: {}]
  %s5 = inlined_call_operand.vmem [shape: f32[2,1,96], index: 5, kind: input, shape index: {}]
  %s6 = inlined_call_operand.vmem [shape: bf16[2,4,8,32], index: 6, kind: input, shape index: {}]
  %s7 = inlined_call_operand.vmem [shape: f32[2,1,32], index: 7, kind: input, shape index: {}]
  %s8 = inlined_call_operand.vmem [shape: f32[2,1,32], index: 8, kind: input, shape index: {}]
  %s9 = inlined_call_operand.vmem [shape: f32[2,1,32], index: 9, kind: input, shape index: {}]
  %s10 = inlined_call_operand.vmem [shape: bf16[2,32,64], index: 10, kind: input, shape index: {}]
  %s11 = inlined_call_operand.vmem [shape: f32[2,1,64], index: 11, kind: input, shape index: {}]
  %s12 = inlined_call_operand.vmem [shape: bf16[2,64,32], index: 12, kind: input, shape index: {}]
  %s13 = inlined_call_operand.vmem [shape: f32[2,1,32], index: 13, kind: input, shape index: {}]
  %s14 = inlined_call_operand.vmem [shape: f32[2,1,32], index: 14, kind: input, shape index: {}]
  %s15 = inlined_call_operand.vmem [shape: f32[2,1,32], index: 15, kind: input, shape index: {}]
  %s16 = inlined_call_operand.vmem [shape: bf16[64,128], index: 16, kind: input, shape index: {}]
  %s17 = inlined_call_operand.vmem [shape: f32[1,128], index: 17, kind: input, shape index: {}]
  %s18 = inlined_call_operand.hbm [shape: f32[2,1,128], index: 18, kind: output, shape index: {}]
  %s19 = sld [smem:[#allocation0]]
  $region105: #{bert_forward.1} parent=0
    _
  %s21 = ssub.s32 1, %s19
  %s22 = scalar_select 0, %s21, %s19
  $region1: #{bert_forward.1} parent=0
    #allocation2 [shape = 'u8[1024]{0}', space=vmem, size = 0x400, scoped, tag = 'output window, operand 0']
    #allocation3 [shape = 's32[2]{0}', space=sflag, size = 0x8, scoped, tag = 'scoped memory for bert_forward.1']
    %23 = vsyncpa [#allocation3], 0
    %s24 = scalar_lea.sflag [#allocation3], 1
    %25 = vsyncpa %s24, 0
    loop: start=0, step=1, limit=4
    $region2: #{bert_forward.1} parent=1 // loop_pre_header
      _
    $region3: #{bert_forward.1} parent=1 // loop_header
      %s27 = sphi 0, %s31
      %p28 = scmp.ge.s32.totalorder %s27, 4
      %s37 = sphi 0, %s39
      %s40 = sphi 0, %s37
      %s41 = sphi 0, %s40
      %s57 = sphi 0, %s41
      %s63 = sphi 0, %s65
      %s66 = sphi 0, %s63
      %s67 = sphi 0, %s66
      %s83 = sphi 0, %s67
      %s87 = sphi 0, %s87
      %s89 = sphi 0, %s87
      %s90 = sphi 0, %s89
      %s104 = sphi 0, %s90
      %s108 = sphi 0, %s108
      %s110 = sphi 0, %s108
      %s111 = sphi 0, %s110
      %s125 = sphi 0, %s111
      %s129 = sphi 0, %s129
      %s131 = sphi 0, %s129
      %s132 = sphi 0, %s131
      %s146 = sphi 0, %s132
      %s150 = sphi 0, %s150
      %s152 = sphi 0, %s150
      %s153 = sphi 0, %s152
      %s167 = sphi 0, %s153
      %s171 = sphi 0, %s171
      %s173 = sphi 0, %s171
      %s174 = sphi 0, %s173
      %s188 = sphi 0, %s174
      %s192 = sphi 0, %s192
      %s194 = sphi 0, %s192
      %s195 = sphi 0, %s194
      %s209 = sphi 0, %s195
      %s213 = sphi 0, %s213
      %s215 = sphi 0, %s213
      %s216 = sphi 0, %s215
      %s230 = sphi 0, %s216
      %s234 = sphi 0, %s234
      %s236 = sphi 0, %s234
      %s237 = sphi 0, %s236
      %s251 = sphi 0, %s237
      %s255 = sphi 0, %s255
      %s257 = sphi 0, %s255
      %s258 = sphi 0, %s257
      %s272 = sphi 0, %s258
      %s276 = sphi 0, %s276
      %s278 = sphi 0, %s276
      %s279 = sphi 0, %s278
      %s293 = sphi 0, %s279
      %s297 = sphi 0, %s297
      %s299 = sphi 0, %s297
      %s300 = sphi 0, %s299
      %s314 = sphi 0, %s300
      %s318 = sphi 0, %s318
      %s320 = sphi 0, %s318
      %s321 = sphi 0, %s320
      %s335 = sphi 0, %s321
      %s339 = sphi 0, %s339
      %s341 = sphi 0, %s339
      %s342 = sphi 0, %s341
      %s356 = sphi 0, %s342
      %s360 = sphi 0, %s360
      %s362 = sphi 0, %s360
      %s363 = sphi 0, %s362
      %s377 = sphi 0, %s363
      %s381 = sphi 0, %s381
      %s383 = sphi 0, %s381
      %s384 = sphi 0, %s383
      %s398 = sphi 0, %s384
      %s402 = sphi 0, %s402
      %s404 = sphi 0, %s402
      %s405 = sphi 0, %s404
      %s419 = sphi 0, %s405
      %s425 = sphi 0, %s427
      %s428 = sphi 0, %s425
      %s429 = sphi 0, %s428
      %s445 = sphi 0, %s429
    $region4: #{bert_forward.1} parent=1 // loop_header_branch
      %30 = sbr.rel (%p28) target = $region8
    $region5: #{bert_forward.1} parent=1 // loop_body
      %s32 = ssub.s32 %s27, 1
      %s33 = ssub.s32 %s27, 2
      %s34 = sadd.s32 %s27, 1
      %s35 = ssub.s32 %s27, %s34
      %p36 = scmp.eq.s32.totalorder %s35, 0
      %s38 = sadd.s32 %s37, 1
      %s39 = scalar_select %p36, %s37, %s38
      %p42 = pneg %p36
      %p43 = scmp.eq.s32.totalorder %s27, 1
      %p44 = por %p42, %p43
      %p45 = scmp.ne.s32.totalorder %s37, %s40
      %p46 = scmp.eq.s32.totalorder %s27, 0
      %p47 = por %p45, %p46
      %p48 = scmp.ne.s32.totalorder %s37, %s40
      %p49 = scmp.eq.s32.totalorder %s32, 1
      %p50 = por %p48, %p49
      %p51 = scmp.ne.s32.totalorder %s40, %s41
      %p52 = scmp.eq.s32.totalorder %s32, 0
      %p53 = por %p51, %p52
      %p54 = scmp.ne.s32.totalorder %s40, %s41
      %p55 = scmp.eq.s32.totalorder %s33, 1
      %p56 = por %p54, %p55
      %p58 = scmp.ne.s32.totalorder %s41, %s57
      %p59 = scmp.eq.s32.totalorder %s33, 0
      %p60 = por %p58, %p59
      %s61 = ssub.s32 %s27, %s34
      %p62 = scmp.eq.s32.totalorder %s61, 0
      %s64 = sadd.s32 %s63, 1
      %s65 = scalar_select %p62, %s63, %s64
      %p68 = pneg %p62
      %p69 = scmp.eq.s32.totalorder %s27, 1
      %p70 = por %p68, %p69
      %p71 = scmp.ne.s32.totalorder %s63, %s66
      %p72 = scmp.eq.s32.totalorder %s27, 0
      %p73 = por %p71, %p72
      %p74 = scmp.ne.s32.totalorder %s63, %s66
      %p75 = scmp.eq.s32.totalorder %s32, 1
      %p76 = por %p74, %p75
      %p77 = scmp.ne.s32.totalorder %s66, %s67
      %p78 = scmp.eq.s32.totalorder %s32, 0
      %p79 = por %p77, %p78
      %p80 = scmp.ne.s32.totalorder %s66, %s67
      %p81 = scmp.eq.s32.totalorder %s33, 1
      %p82 = por %p80, %p81
      %p84 = scmp.ne.s32.totalorder %s67, %s83
      %p85 = scmp.eq.s32.totalorder %s33, 0
      %p86 = por %p84, %p85
      %s88 = sadd.s32 %s87, 1
      %p91 = scmp.eq.s32.totalorder %s27, 1
      %p92 = scmp.ne.s32.totalorder %s87, %s89
      %p93 = scmp.eq.s32.totalorder %s27, 0
      %p94 = por %p92, %p93
      %p95 = scmp.ne.s32.totalorder %s87, %s89
      %p96 = scmp.eq.s32.totalorder %s32, 1
      %p97 = por %p95, %p96
      %p98 = scmp.ne.s32.totalorder %s89, %s90
      %p99 = scmp.eq.s32.totalorder %s32, 0
      %p100 = por %p98, %p99
      %p101 = scmp.ne.s32.totalorder %s89, %s90
      %p102 = scmp.eq.s32.totalorder %s33, 1
      %p103 = por %p101, %p102
      %p105 = scmp.ne.s32.totalorder %s90, %s104
      %p106 = scmp.eq.s32.totalorder %s33, 0
      %p107 = por %p105, %p106
      %s109 = sadd.s32 %s108, 1
      %p112 = scmp.eq.s32.totalorder %s27, 1
      %p113 = scmp.ne.s32.totalorder %s108, %s110
      %p114 = scmp.eq.s32.totalorder %s27, 0
      %p115 = por %p113, %p114
      %p116 = scmp.ne.s32.totalorder %s108, %s110
      %p117 = scmp.eq.s32.totalorder %s32, 1
      %p118 = por %p116, %p117
      %p119 = scmp.ne.s32.totalorder %s110, %s111
      %p120 = scmp.eq.s32.totalorder %s32, 0
      %p121 = por %p119, %p120
      %p122 = scmp.ne.s32.totalorder %s110, %s111
      %p123 = scmp.eq.s32.totalorder %s33, 1
      %p124 = por %p122, %p123
      %p126 = scmp.ne.s32.totalorder %s111, %s125
      %p127 = scmp.eq.s32.totalorder %s33, 0
      %p128 = por %p126, %p127
      %s130 = sadd.s32 %s129, 1
      %p133 = scmp.eq.s32.totalorder %s27, 1
      %p134 = scmp.ne.s32.totalorder %s129, %s131
      %p135 = scmp.eq.s32.totalorder %s27, 0
      %p136 = por %p134, %p135
      %p137 = scmp.ne.s32.totalorder %s129, %s131
      %p138 = scmp.eq.s32.totalorder %s32, 1
      %p139 = por %p137, %p138
      %p140 = scmp.ne.s32.totalorder %s131, %s132
      %p141 = scmp.eq.s32.totalorder %s32, 0
      %p142 = por %p140, %p141
      %p143 = scmp.ne.s32.totalorder %s131, %s132
      %p144 = scmp.eq.s32.totalorder %s33, 1
      %p145 = por %p143, %p144
      %p147 = scmp.ne.s32.totalorder %s132, %s146
      %p148 = scmp.eq.s32.totalorder %s33, 0
      %p149 = por %p147, %p148
      %s151 = sadd.s32 %s150, 1
      %p154 = scmp.eq.s32.totalorder %s27, 1
      %p155 = scmp.ne.s32.totalorder %s150, %s152
      %p156 = scmp.eq.s32.totalorder %s27, 0
      %p157 = por %p155, %p156
      %p158 = scmp.ne.s32.totalorder %s150, %s152
      %p159 = scmp.eq.s32.totalorder %s32, 1
      %p160 = por %p158, %p159
      %p161 = scmp.ne.s32.totalorder %s152, %s153
      %p162 = scmp.eq.s32.totalorder %s32, 0
      %p163 = por %p161, %p162
      %p164 = scmp.ne.s32.totalorder %s152, %s153
      %p165 = scmp.eq.s32.totalorder %s33, 1
      %p166 = por %p164, %p165
      %p168 = scmp.ne.s32.totalorder %s153, %s167
      %p169 = scmp.eq.s32.totalorder %s33, 0
      %p170 = por %p168, %p169
      %s172 = sadd.s32 %s171, 1
      %p175 = scmp.eq.s32.totalorder %s27, 1
      %p176 = scmp.ne.s32.totalorder %s171, %s173
      %p177 = scmp.eq.s32.totalorder %s27, 0
      %p178 = por %p176, %p177
      %p179 = scmp.ne.s32.totalorder %s171, %s173
      %p180 = scmp.eq.s32.totalorder %s32, 1
      %p181 = por %p179, %p180
      %p182 = scmp.ne.s32.totalorder %s173, %s174
      %p183 = scmp.eq.s32.totalorder %s32, 0
      %p184 = por %p182, %p183
      %p185 = scmp.ne.s32.totalorder %s173, %s174
      %p186 = scmp.eq.s32.totalorder %s33, 1
      %p187 = por %p185, %p186
      %p189 = scmp.ne.s32.totalorder %s174, %s188
      %p190 = scmp.eq.s32.totalorder %s33, 0
      %p191 = por %p189, %p190
      %s193 = sadd.s32 %s192, 1
      %p196 = scmp.eq.s32.totalorder %s27, 1
      %p197 = scmp.ne.s32.totalorder %s192, %s194
      %p198 = scmp.eq.s32.totalorder %s27, 0
      %p199 = por %p197, %p198
      %p200 = scmp.ne.s32.totalorder %s192, %s194
      %p201 = scmp.eq.s32.totalorder %s32, 1
      %p202 = por %p200, %p201
      %p203 = scmp.ne.s32.totalorder %s194, %s195
      %p204 = scmp.eq.s32.totalorder %s32, 0
      %p205 = por %p203, %p204
      %p206 = scmp.ne.s32.totalorder %s194, %s195
      %p207 = scmp.eq.s32.totalorder %s33, 1
      %p208 = por %p206, %p207
      %p210 = scmp.ne.s32.totalorder %s195, %s209
      %p211 = scmp.eq.s32.totalorder %s33, 0
      %p212 = por %p210, %p211
      %s214 = sadd.s32 %s213, 1
      %p217 = scmp.eq.s32.totalorder %s27, 1
      %p218 = scmp.ne.s32.totalorder %s213, %s215
      %p219 = scmp.eq.s32.totalorder %s27, 0
      %p220 = por %p218, %p219
      %p221 = scmp.ne.s32.totalorder %s213, %s215
      %p222 = scmp.eq.s32.totalorder %s32, 1
      %p223 = por %p221, %p222
      %p224 = scmp.ne.s32.totalorder %s215, %s216
      %p225 = scmp.eq.s32.totalorder %s32, 0
      %p226 = por %p224, %p225
      %p227 = scmp.ne.s32.totalorder %s215, %s216
      %p228 = scmp.eq.s32.totalorder %s33, 1
      %p229 = por %p227, %p228
      %p231 = scmp.ne.s32.totalorder %s216, %s230
      %p232 = scmp.eq.s32.totalorder %s33, 0
      %p233 = por %p231, %p232
      %s235 = sadd.s32 %s234, 1
      %p238 = scmp.eq.s32.totalorder %s27, 1
      %p239 = scmp.ne.s32.totalorder %s234, %s236
      %p240 = scmp.eq.s32.totalorder %s27, 0
      %p241 = por %p239, %p240
      %p242 = scmp.ne.s32.totalorder %s234, %s236
      %p243 = scmp.eq.s32.totalorder %s32, 1
      %p244 = por %p242, %p243
      %p245 = scmp.ne.s32.totalorder %s236, %s237
      %p246 = scmp.eq.s32.totalorder %s32, 0
      %p247 = por %p245, %p246
      %p248 = scmp.ne.s32.totalorder %s236, %s237
      %p249 = scmp.eq.s32.totalorder %s33, 1
      %p250 = por %p248, %p249
      %p252 = scmp.ne.s32.totalorder %s237, %s251
      %p253 = scmp.eq.s32.totalorder %s33, 0
      %p254 = por %p252, %p253
      %s256 = sadd.s32 %s255, 1
      %p259 = scmp.eq.s32.totalorder %s27, 1
      %p260 = scmp.ne.s32.totalorder %s255, %s257
      %p261 = scmp.eq.s32.totalorder %s27, 0
      %p262 = por %p260, %p261
      %p263 = scmp.ne.s32.totalorder %s255, %s257
      %p264 = scmp.eq.s32.totalorder %s32, 1
      %p265 = por %p263, %p264
      %p266 = scmp.ne.s32.totalorder %s257, %s258
      %p267 = scmp.eq.s32.totalorder %s32, 0
      %p268 = por %p266, %p267
      %p269 = scmp.ne.s32.totalorder %s257, %s258
      %p270 = scmp.eq.s32.totalorder %s33, 1
      %p271 = por %p269, %p270
      %p273 = scmp.ne.s32.totalorder %s258, %s272
      %p274 = scmp.eq.s32.totalorder %s33, 0
      %p275 = por %p273, %p274
      %s277 = sadd.s32 %s276, 1
      %p280 = scmp.eq.s32.totalorder %s27, 1
      %p281 = scmp.ne.s32.totalorder %s276, %s278
      %p282 = scmp.eq.s32.totalorder %s27, 0
      %p283 = por %p281, %p282
      %p284 = scmp.ne.s32.totalorder %s276, %s278
      %p285 = scmp.eq.s32.totalorder %s32, 1
      %p286 = por %p284, %p285
      %p287 = scmp.ne.s32.totalorder %s278, %s279
      %p288 = scmp.eq.s32.totalorder %s32, 0
      %p289 = por %p287, %p288
      %p290 = scmp.ne.s32.totalorder %s278, %s279
      %p291 = scmp.eq.s32.totalorder %s33, 1
      %p292 = por %p290, %p291
      %p294 = scmp.ne.s32.totalorder %s279, %s293
      %p295 = scmp.eq.s32.totalorder %s33, 0
      %p296 = por %p294, %p295
      %s298 = sadd.s32 %s297, 1
      %p301 = scmp.eq.s32.totalorder %s27, 1
      %p302 = scmp.ne.s32.totalorder %s297, %s299
      %p303 = scmp.eq.s32.totalorder %s27, 0
      %p304 = por %p302, %p303
      %p305 = scmp.ne.s32.totalorder %s297, %s299
      %p306 = scmp.eq.s32.totalorder %s32, 1
      %p307 = por %p305, %p306
      %p308 = scmp.ne.s32.totalorder %s299, %s300
      %p309 = scmp.eq.s32.totalorder %s32, 0
      %p310 = por %p308, %p309
      %p311 = scmp.ne.s32.totalorder %s299, %s300
      %p312 = scmp.eq.s32.totalorder %s33, 1
      %p313 = por %p311, %p312
      %p315 = scmp.ne.s32.totalorder %s300, %s314
      %p316 = scmp.eq.s32.totalorder %s33, 0
      %p317 = por %p315, %p316
      %s319 = sadd.s32 %s318, 1
      %p322 = scmp.eq.s32.totalorder %s27, 1
      %p323 = scmp.ne.s32.totalorder %s318, %s320
      %p324 = scmp.eq.s32.totalorder %s27, 0
      %p325 = por %p323, %p324
      %p326 = scmp.ne.s32.totalorder %s318, %s320
      %p327 = scmp.eq.s32.totalorder %s32, 1
      %p328 = por %p326, %p327
      %p329 = scmp.ne.s32.totalorder %s320, %s321
      %p330 = scmp.eq.s32.totalorder %s32, 0
      %p331 = por %p329, %p330
      %p332 = scmp.ne.s32.totalorder %s320, %s321
      %p333 = scmp.eq.s32.totalorder %s33, 1
      %p334 = por %p332, %p333
      %p336 = scmp.ne.s32.totalorder %s321, %s335
      %p337 = scmp.eq.s32.totalorder %s33, 0
      %p338 = por %p336, %p337
      %s340 = sadd.s32 %s339, 1
      %p343 = scmp.eq.s32.totalorder %s27, 1
      %p344 = scmp.ne.s32.totalorder %s339, %s341
      %p345 = scmp.eq.s32.totalorder %s27, 0
      %p346 = por %p344, %p345
      %p347 = scmp.ne.s32.totalorder %s339, %s341
      %p348 = scmp.eq.s32.totalorder %s32, 1
      %p349 = por %p347, %p348
      %p350 = scmp.ne.s32.totalorder %s341, %s342
      %p351 = scmp.eq.s32.totalorder %s32, 0
      %p352 = por %p350, %p351
      %p353 = scmp.ne.s32.totalorder %s341, %s342
      %p354 = scmp.eq.s32.totalorder %s33, 1
      %p355 = por %p353, %p354
      %p357 = scmp.ne.s32.totalorder %s342, %s356
      %p358 = scmp.eq.s32.totalorder %s33, 0
      %p359 = por %p357, %p358
      %s361 = sadd.s32 %s360, 1
      %p364 = scmp.eq.s32.totalorder %s27, 1
      %p365 = scmp.ne.s32.totalorder %s360, %s362
      %p366 = scmp.eq.s32.totalorder %s27, 0
      %p367 = por %p365, %p366
      %p368 = scmp.ne.s32.totalorder %s360, %s362
      %p369 = scmp.eq.s32.totalorder %s32, 1
      %p370 = por %p368, %p369
      %p371 = scmp.ne.s32.totalorder %s362, %s363
      %p372 = scmp.eq.s32.totalorder %s32, 0
      %p373 = por %p371, %p372
      %p374 = scmp.ne.s32.totalorder %s362, %s363
      %p375 = scmp.eq.s32.totalorder %s33, 1
      %p376 = por %p374, %p375
      %p378 = scmp.ne.s32.totalorder %s363, %s377
      %p379 = scmp.eq.s32.totalorder %s33, 0
      %p380 = por %p378, %p379
      %s382 = sadd.s32 %s381, 1
      %p385 = scmp.eq.s32.totalorder %s27, 1
      %p386 = scmp.ne.s32.totalorder %s381, %s383
      %p387 = scmp.eq.s32.totalorder %s27, 0
      %p388 = por %p386, %p387
      %p389 = scmp.ne.s32.totalorder %s381, %s383
      %p390 = scmp.eq.s32.totalorder %s32, 1
      %p391 = por %p389, %p390
      %p392 = scmp.ne.s32.totalorder %s383, %s384
      %p393 = scmp.eq.s32.totalorder %s32, 0
      %p394 = por %p392, %p393
      %p395 = scmp.ne.s32.totalorder %s383, %s384
      %p396 = scmp.eq.s32.totalorder %s33, 1
      %p397 = por %p395, %p396
      %p399 = scmp.ne.s32.totalorder %s384, %s398
      %p400 = scmp.eq.s32.totalorder %s33, 0
      %p401 = por %p399, %p400
      %s403 = sadd.s32 %s402, 1
      %p406 = scmp.eq.s32.totalorder %s27, 1
      %p407 = scmp.ne.s32.totalorder %s402, %s404
      %p408 = scmp.eq.s32.totalorder %s27, 0
      %p409 = por %p407, %p408
      %p410 = scmp.ne.s32.totalorder %s402, %s404
      %p411 = scmp.eq.s32.totalorder %s32, 1
      %p412 = por %p410, %p411
      %p413 = scmp.ne.s32.totalorder %s404, %s405
      %p414 = scmp.eq.s32.totalorder %s32, 0
      %p415 = por %p413, %p414
      %p416 = scmp.ne.s32.totalorder %s404, %s405
      %p417 = scmp.eq.s32.totalorder %s33, 1
      %p418 = por %p416, %p417
      %p420 = scmp.ne.s32.totalorder %s405, %s419
      %p421 = scmp.eq.s32.totalorder %s33, 0
      %p422 = por %p420, %p421
      %s423 = ssub.s32 %s27, %s34
      %p424 = scmp.eq.s32.totalorder %s423, 0
      %s426 = sadd.s32 %s425, 1
      %s427 = scalar_select %p424, %s425, %s426
      %p430 = pneg %p424
      %p431 = scmp.eq.s32.totalorder %s27, 1
      %p432 = por %p430, %p431
      %p433 = scmp.ne.s32.totalorder %s425, %s428
      %p434 = scmp.eq.s32.totalorder %s27, 0
      %p435 = por %p433, %p434
      %p436 = scmp.ne.s32.totalorder %s425, %s428
      %p437 = scmp.eq.s32.totalorder %s32, 1
      %p438 = por %p436, %p437
      %p439 = scmp.ne.s32.totalorder %s428, %s429
      %p440 = scmp.eq.s32.totalorder %s32, 0
      %p441 = por %p439, %p440
      %p442 = scmp.ne.s32.totalorder %s428, %s429
      %p443 = scmp.eq.s32.totalorder %s33, 1
      %p444 = por %p442, %p443
      %p446 = scmp.ne.s32.totalorder %s429, %s445
      %p447 = scmp.eq.s32.totalorder %s33, 0
      %p448 = por %p446, %p447
      %p449 = scmp.le.s32.totalorder 1, %s27
      %p450 = scmp.lt.s32.totalorder %s27, 3
      %p451 = pnand %p449, %p450
      %p452 = pneg %p451
      // Predicated region
      $region9: #{bert_forward.1} parent=5 // pred_check
        _
      $region10: #{bert_forward.1} parent=5 // pred_check_branch
        %454 = sbr.rel (%p451) target = $region12
      $region11: #{bert_forward.1} parent=5 // pred_region
        %s455 = ssub.s32 %s27, 1
        // Predicated region
        $region13: #{bert_forward.1} parent=11 // pred_check
          %p456 = pneg %p100
        $region14: #{bert_forward.1} parent=11 // pred_check_branch
          %458 = sbr.rel (%p456) target = $region16
        $region15: #{bert_forward.1} parent=11 // pred_region
          _
        $region16: #{bert_forward.1} parent=11 // pred_fallthru
          _
        // Predicated region
        $region17: #{bert_forward.1} parent=11 // pred_check
          %p459 = pneg %p121
        $region18: #{bert_forward.1} parent=11 // pred_check_branch
          %461 = sbr.rel (%p459) target = $region20
        $region19: #{bert_forward.1} parent=11 // pred_region
          _
        $region20: #{bert_forward.1} parent=11 // pred_fallthru
          _
        // Predicated region
        $region21: #{bert_forward.1} parent=11 // pred_check
          %p462 = pneg %p142
        $region22: #{bert_forward.1} parent=11 // pred_check_branch
          %464 = sbr.rel (%p462) target = $region24
        $region23: #{bert_forward.1} parent=11 // pred_region
          _
        $region24: #{bert_forward.1} parent=11 // pred_fallthru
          _
        // Predicated region
        $region25: #{bert_forward.1} parent=11 // pred_check
          %p465 = pneg %p163
        $region26: #{bert_forward.1} parent=11 // pred_check_branch
          %467 = sbr.rel (%p465) target = $region28
        $region27: #{bert_forward.1} parent=11 // pred_region
          _
        $region28: #{bert_forward.1} parent=11 // pred_fallthru
          _
        // Predicated region
        $region29: #{bert_forward.1} parent=11 // pred_check
          %p468 = pneg %p184
        $region30: #{bert_forward.1} parent=11 // pred_check_branch
          %470 = sbr.rel (%p468) target = $region32
        $region31: #{bert_forward.1} parent=11 // pred_region
          _
        $region32: #{bert_forward.1} parent=11 // pred_fallthru
          _
        // Predicated region
        $region33: #{bert_forward.1} parent=11 // pred_check
          %p471 = pneg %p205
        $region34: #{bert_forward.1} parent=11 // pred_check_branch
          %473 = sbr.rel (%p471) target = $region36
        $region35: #{bert_forward.1} parent=11 // pred_region
          _
        $region36: #{bert_forward.1} parent=11 // pred_fallthru
          _
        // Predicated region
        $region37: #{bert_forward.1} parent=11 // pred_check
          %p474 = pneg %p226
        $region38: #{bert_forward.1} parent=11 // pred_check_branch
          %476 = sbr.rel (%p474) target = $region40
        $region39: #{bert_forward.1} parent=11 // pred_region
          _
        $region40: #{bert_forward.1} parent=11 // pred_fallthru
          _
        // Predicated region
        $region41: #{bert_forward.1} parent=11 // pred_check
          %p477 = pneg %p247
        $region42: #{bert_forward.1} parent=11 // pred_check_branch
          %479 = sbr.rel (%p477) target = $region44
        $region43: #{bert_forward.1} parent=11 // pred_region
          _
        $region44: #{bert_forward.1} parent=11 // pred_fallthru
          _
        // Predicated region
        $region45: #{bert_forward.1} parent=11 // pred_check
          %p480 = pneg %p268
        $region46: #{bert_forward.1} parent=11 // pred_check_branch
          %482 = sbr.rel (%p480) target = $region48
        $region47: #{bert_forward.1} parent=11 // pred_region
          _
        $region48: #{bert_forward.1} parent=11 // pred_fallthru
          _
        // Predicated region
        $region49: #{bert_forward.1} parent=11 // pred_check
          %p483 = pneg %p289
        $region50: #{bert_forward.1} parent=11 // pred_check_branch
          %485 = sbr.rel (%p483) target = $region52
        $region51: #{bert_forward.1} parent=11 // pred_region
          _
        $region52: #{bert_forward.1} parent=11 // pred_fallthru
          _
        // Predicated region
        $region53: #{bert_forward.1} parent=11 // pred_check
          %p486 = pneg %p310
        $region54: #{bert_forward.1} parent=11 // pred_check_branch
          %488 = sbr.rel (%p486) target = $region56
        $region55: #{bert_forward.1} parent=11 // pred_region
          _
        $region56: #{bert_forward.1} parent=11 // pred_fallthru
          _
        // Predicated region
        $region57: #{bert_forward.1} parent=11 // pred_check
          %p489 = pneg %p331
        $region58: #{bert_forward.1} parent=11 // pred_check_branch
          %491 = sbr.rel (%p489) target = $region60
        $region59: #{bert_forward.1} parent=11 // pred_region
          _
        $region60: #{bert_forward.1} parent=11 // pred_fallthru
          _
        // Predicated region
        $region61: #{bert_forward.1} parent=11 // pred_check
          %p492 = pneg %p352
        $region62: #{bert_forward.1} parent=11 // pred_check_branch
          %494 = sbr.rel (%p492) target = $region64
        $region63: #{bert_forward.1} parent=11 // pred_region
          _
        $region64: #{bert_forward.1} parent=11 // pred_fallthru
          _
        // Predicated region
        $region65: #{bert_forward.1} parent=11 // pred_check
          %p495 = pneg %p373
        $region66: #{bert_forward.1} parent=11 // pred_check_branch
          %497 = sbr.rel (%p495) target = $region68
        $region67: #{bert_forward.1} parent=11 // pred_region
          _
        $region68: #{bert_forward.1} parent=11 // pred_fallthru
          _
        // Predicated region
        $region69: #{bert_forward.1} parent=11 // pred_check
          %p498 = pneg %p394
        $region70: #{bert_forward.1} parent=11 // pred_check_branch
          %500 = sbr.rel (%p498) target = $region72
        $region71: #{bert_forward.1} parent=11 // pred_region
          _
        $region72: #{bert_forward.1} parent=11 // pred_fallthru
          _
        // Predicated region
        $region73: #{bert_forward.1} parent=11 // pred_check
          %p501 = pneg %p415
        $region74: #{bert_forward.1} parent=11 // pred_check_branch
          %503 = sbr.rel (%p501) target = $region76
        $region75: #{bert_forward.1} parent=11 // pred_region
          _
        $region76: #{bert_forward.1} parent=11 // pred_fallthru
          _
      $region12: #{bert_forward.1} parent=5 // pred_fallthru
        _
      %p504 = scmp.lt.s32.totalorder %s27, 2
      // Predicated region
      $region77: #{bert_forward.1} parent=5 // pred_check
        %p505 = pneg %p504
      $region78: #{bert_forward.1} parent=5 // pred_check_branch
        %507 = sbr.rel (%p505) target = $region80
      $region79: #{bert_forward.1} parent=5 // pred_region
        // Predicated region
        $region81: #{bert_forward.1} parent=79 // pred_check
          %p508 = pneg %p47
        $region82: #{bert_forward.1} parent=79 // pred_check_branch
          %510 = sbr.rel (%p508) target = $region84
        $region83: #{bert_forward.1} parent=79 // pred_region
          %p511 = scmp.lt.s32.totalorder %s27, 1
          %s512 = scalar_select %p511, %s27, 1
          %s513 = smul.addr %s512, 8
          %s514 = scalar_lea.vmem %s0, %s513
        $region84: #{bert_forward.1} parent=79 // pred_fallthru
          _
        // Predicated region
        $region85: #{bert_forward.1} parent=79 // pred_check
          %p515 = pneg %p73
        $region86: #{bert_forward.1} parent=79 // pred_check_branch
          %517 = sbr.rel (%p515) target = $region88
        $region87: #{bert_forward.1} parent=79 // pred_region
          %p518 = scmp.lt.s32.totalorder %s27, 1
          %s519 = scalar_select %p518, %s27, 1
          %s520 = scalar_lea.vmem %s1, %s519
        $region88: #{bert_forward.1} parent=79 // pred_fallthru
          _
      $region80: #{bert_forward.1} parent=5 // pred_fallthru
        _
      %p521 = scmp.le.s32.totalorder 1, %s27
      %p522 = scmp.lt.s32.totalorder %s27, 3
      %p523 = pnand %p521, %p522
      %p524 = pneg %p523
      // Predicated region
      $region89: #{bert_forward.1} parent=5 // pred_check
        _
      $region90: #{bert_forward.1} parent=5 // pred_check_branch
        %526 = sbr.rel (%p523) target = $region92
      $region91: #{bert_forward.1} parent=5 // pred_region
        %s527 = ssub.s32 %s27, 1
        %p528 = scmp.lt.s32.totalorder %s32, 1
        %s529 = scalar_select %p528, %s32, 1
        %s530 = smul.addr %s529, 8
        %s531 = scalar_lea.vmem %s0, %s530
        %p532 = pneg %p53
        %p533 = pneg %p50
        %p534 = scmp.lt.s32.totalorder %s32, 1
        %s535 = scalar_select %p534, %s32, 1
        %s536 = scalar_lea.vmem %s1, %s535
        %p537 = pneg %p79
        %p538 = pneg %p76
        %p539 = pneg %p100
        %p540 = pneg %p97
        %p541 = pneg %p121
        %p542 = pneg %p118
        %p543 = pneg %p142
        %p544 = pneg %p139
        %p545 = pneg %p163
        %p546 = pneg %p160
        %p547 = pneg %p184
        %p548 = pneg %p181
        %p549 = pneg %p205
        %p550 = pneg %p202
        %p551 = pneg %p226
        %p552 = pneg %p223
        %p553 = pneg %p247
        %p554 = pneg %p244
        %p555 = pneg %p268
        %p556 = pneg %p265
        %p557 = pneg %p289
        %p558 = pneg %p286
        %p559 = pneg %p310
        %p560 = pneg %p307
        %p561 = pneg %p331
        %p562 = pneg %p328
        %p563 = pneg %p352
        %p564 = pneg %p349
        %p565 = pneg %p373
        %p566 = pneg %p370
        %p567 = pneg %p394
        %p568 = pneg %p391
        %p569 = pneg %p415
        %p570 = pneg %p412
        %p571 = pneg %p441
        %p572 = pneg %p438
        %s573 = sand.u32 %s428, 1
        %s574 = scalar_lea.sflag [#allocation3], %s573
        %s575 = sand.u32 %s428, 1
        %s576 = scalar_lea.vmem [#allocation2], %s575
        %p577 = scmp.lt.s32.totalorder %s32, 1
        %s578 = scalar_select %p577, %s32, 1
        %s579 = smul.addr %s578, 8
        %s580 = scalar_lea.vmem %s0, %s579
        %p581 = scmp.lt.s32.totalorder %s32, 1
        %s582 = scalar_select %p581, %s32, 1
        %s583 = scalar_lea.vmem %s1, %s582
        %v585 = vld [vmem:[%s580] sm:$0xff]
        %v586 = vld [vmem:[%s583] sm:$0x1]
        %v587 = vld [vmem:[%s2] sm:$0x1]
        %v588 = vld [vmem:[%s3] sm:$0x1]
        %vm589 = vcmask 261120
        %v590 = vsel %vm589, %v585, 0.0
        %591 = vadd.xlane.f32.xlu0 %v590
        %v592 = vpop.xlane.xlu0 %591
        %v593 = vrcp.pop 32.0
        %v594 = vmul.f32 %v592, %v593
        %v595 = vsub.f32 %v585, %v594
        %v596 = vmul.f32 %v595, %v595
        %v597 = vsel %vm589, %v596, 0.0
        %598 = vadd.xlane.f32.xlu0 %v597
        %v599 = vpop.xlane.xlu0 %598
        %v600 = vmul.f32 %v599, %v593
        %v601 = vadd.f32 %v600, 1e-12
        %v602 = vrsqrt.pop %v601
        %v603 = vmul.f32 %v595, %v602
        %v605 = vlaneseq
        %v606 = vshrl.u32 %v605, 7
        %v607 = vsub.s32 0, %v606
        %v608 = vrot.slane %v587, %v607
        %v610 = vmul.f32 %v603, %v608
        %v612 = vlaneseq
        %v613 = vshrl.u32 %v612, 7
        %v614 = vsub.s32 0, %v613
        %v615 = vrot.slane %v588, %v614
        %v617 = vadd.f32 %v610, %v615
        %v618 = vpack.c.bf16 %v617, %v617
        %v619 = vld [vmem:[%s4] sm:$0xf]
        %v620 = vld [vmem:[%s4 + $0x4] sm:$0xf]
        %v621 = vld [vmem:[%s4 + $0x8] sm:$0xf]
        %v622 = vld [vmem:[%s4 + $0xc] sm:$0xf]
        %v623 = vld [vmem:[%s5] sm:$0x1]
        %v625 = vlaneseq
        %v626 = vshrl.u32 %v625, 7
        %v627 = vsub.s32 0, %v626
        %v628 = vrot.slane %v623, %v627
        %v634 = vunpack.c.l.b16 %v619
        %v635 = vunpack.c.l.b16 %v620
        %v636 = vunpack.c.l.b16 %v621
        %v637 = vunpack.c.l.b16 %v622
        %v638 = vpack.c.b16 %v635, %v634
        %v639 = vpack.c.b16 %v637, %v636
        %v643 = vsel %vm589, %v618, 0
        %645 = vmatprep.subr.bf16.mxu0 0
        %646 = vmatpush1.bf16.msra.mxu0 %v638
        %647 = vmatprep.subr.bf16.mxu0 0
        %648 = vmatpush1.bf16.msra.mxu0 %v639
        %649 = vmatprep.subr.bf16.mxu0 0
        %650 = vmatpush1.bf16.msra.mxu0 0
        %651 = vmatprep.subr.bf16.mxu0 0
        %652 = vmatpush1.bf16.msra.mxu0 0
        %653 = vmatprep.subr.bf16.mxu0 0
        %654 = vmatpush1.bf16.msra.mxu0 0
        %655 = vmatprep.subr.bf16.mxu0 0
        %656 = vmatpush1.bf16.msra.mxu0 0
        %657 = vmatprep.subr.bf16.mxu0 0
        %658 = vmatpush1.bf16.msra.mxu0 0
        %659 = vmatprep.subr.bf16.mxu0 0
        %660 = vmatpush1.bf16.msra.mxu0 0
        %661 = vmatprep.subr.bf16.mxu0 0
        %662 = vmatpush1.bf16.msra.mxu0 0
        %663 = vmatprep.subr.bf16.mxu0 0
        %664 = vmatpush1.bf16.msra.mxu0 0
        %665 = vmatprep.subr.bf16.mxu0 0
        %666 = vmatpush1.bf16.msra.mxu0 0
        %667 = vmatprep.subr.bf16.mxu0 0
        %668 = vmatpush1.bf16.msra.mxu0 0
        %669 = vmatprep.subr.bf16.mxu0 0
        %670 = vmatpush1.bf16.msra.mxu0 0
        %671 = vmatprep.subr.bf16.mxu0 0
        %672 = vmatpush1.bf16.msra.mxu0 0
        %673 = vmatprep.subr.bf16.mxu0 0
        %674 = vmatpush1.bf16.msra.mxu0 0
        %675 = vmatprep.subr.bf16.mxu0 0
        %676 = vmatpush1.bf16.msra.mxu0 0
        %677 = vmatprep.mubr.bf16.mxu0 0
        %678 = vmatmul.mubr.bf16.gmra.mrb[0].mxu0 %v643
        %v679 = vpop.f32.mrb[0].mxu0
        %v680 = vadd.f32 %v628, %v679
        %v681 = vpop.f32.mrb[0].mxu0
        %v682 = vpop.f32.mrb[0].mxu0
        %v683 = vpop.f32.mrb[0].mxu0
        %684 = vdwg.mxu0
        %686 = vrot.lane.b32.xlu0 %v680, 120
        %v687 = vpop.permute.xlu0 %686
        %689 = vrot.lane.b32.xlu0 %v680, 112
        %v690 = vpop.permute.xlu0 %689
        %692 = vrot.lane.b32.xlu0 %v680, 104
        %v693 = vpop.permute.xlu0 %692
        %v695 = vpack.c.bf16 %v680, %v680
        %v696 = vpack.c.bf16 %v687, %v687
        %v697 = vpack.c.bf16 %v690, %v690
        %v698 = vpack.c.bf16 %v693, %v693
        %700 = vrot.lane.b32.xlu0 %v695, 96
        %v701 = vpop.permute.xlu0 %700
        %vm702 = vcmask 64512
        %v704 = vsel %vm702, %v695, 0
        %v707 = vsel %vm702, %v701, 0
        %709 = vmatprep.subr.bf16.mxu0 0
        %710 = vmatpush1.bf16.xpose.msra.mxu0 %v707
        %711 = vmatprep.subr.bf16.mxu0 0
        %712 = vmatpush1.bf16.xpose.msra.mxu0 0
        %713 = vmatprep.subr.bf16.mxu0 0
        %714 = vmatpush1.bf16.xpose.msra.mxu0 0
        %715 = vmatprep.subr.bf16.mxu0 0
        %716 = vmatpush1.bf16.xpose.msra.mxu0 0
        %717 = vmatprep.subr.bf16.mxu0 0
        %718 = vmatpush1.bf16.xpose.msra.mxu0 0
        %719 = vmatprep.subr.bf16.mxu0 0
        %720 = vmatpush1.bf16.xpose.msra.mxu0 0
        %721 = vmatprep.subr.bf16.mxu0 0
        %722 = vmatpush1.bf16.xpose.msra.mxu0 0
        %723 = vmatprep.subr.bf16.mxu0 0
        %724 = vmatpush1.bf16.xpose.msra.mxu0 0
        %725 = vmatprep.subr.bf16.mxu0 0
        %726 = vmatpush1.bf16.xpose.msra.mxu0 0
        %727 = vmatprep.subr.bf16.mxu0 0
        %728 = vmatpush1.bf16.xpose.msra.mxu0 0
        %729 = vmatprep.subr.bf16.mxu0 0
        %730 = vmatpush1.bf16.xpose.msra.mxu0 0
        %731 = vmatprep.subr.bf16.mxu0 0
        %732 = vmatpush1.bf16.xpose.msra.mxu0 0
        %733 = vmatprep.subr.bf16.mxu0 0
        %734 = vmatpush1.bf16.xpose.msra.mxu0 0
        %735 = vmatprep.subr.bf16.mxu0 0
        %736 = vmatpush1.bf16.xpose.msra.mxu0 0
        %737 = vmatprep.subr.bf16.mxu0 0
        %738 = vmatpush1.bf16.xpose.msra.mxu0 0
        %739 = vmatprep.subr.bf16.mxu0 0
        %740 = vmatpush1.bf16.xpose.msra.mxu0 0
        %741 = vmatprep.mubr.bf16.mxu0 0
        %742 = vmatmul.mubr.bf16.gmra.mrb[0].mxu0 %v704
        %v743 = vpop.f32.mrb[0].mxu0
        %v744 = vadd.f32 0.0, %v743
        %v745 = vpop.f32.mrb[0].mxu0
        %v746 = vpop.f32.mrb[0].mxu0
        %v747 = vpop.f32.mrb[0].mxu0
        %748 = vdwg.mxu0
        %750 = vrot.lane.b32.xlu0 %v696, 96
        %v751 = vpop.permute.xlu0 %750
        %v753 = vsel %vm702, %v696, 0
        %v756 = vsel %vm702, %v751, 0
        %758 = vmatprep.subr.bf16.mxu0 0
        %759 = vmatpush1.bf16.xpose.msra.mxu0 %v756
        %760 = vmatprep.subr.bf16.mxu0 0
        %761 = vmatpush1.bf16.xpose.msra.mxu0 0
        %762 = vmatprep.subr.bf16.mxu0 0
        %763 = vmatpush1.bf16.xpose.msra.mxu0 0
        %764 = vmatprep.subr.bf16.mxu0 0
        %765 = vmatpush1.bf16.xpose.msra.mxu0 0
        %766 = vmatprep.subr.bf16.mxu0 0
        %767 = vmatpush1.bf16.xpose.msra.mxu0 0
        %768 = vmatprep.subr.bf16.mxu0 0
        %769 = vmatpush1.bf16.xpose.msra.mxu0 0
        %770 = vmatprep.subr.bf16.mxu0 0
        %771 = vmatpush1.bf16.xpose.msra.mxu0 0
        %772 = vmatprep.subr.bf16.mxu0 0
        %773 = vmatpush1.bf16.xpose.msra.mxu0 0
        %774 = vmatprep.subr.bf16.mxu0 0
        %775 = vmatpush1.bf16.xpose.msra.mxu0 0
        %776 = vmatprep.subr.bf16.mxu0 0
        %777 = vmatpush1.bf16.xpose.msra.mxu0 0
        %778 = vmatprep.subr.bf16.mxu0 0
        %779 = vmatpush1.bf16.xpose.msra.mxu0 0
        %780 = vmatprep.subr.bf16.mxu0 0
        %781 = vmatpush1.bf16.xpose.msra.mxu0 0
        %782 = vmatprep.subr.bf16.mxu0 0
        %783 = vmatpush1.bf16.xpose.msra.mxu0 0
        %784 = vmatprep.subr.bf16.mxu0 0
        %785 = vmatpush1.bf16.xpose.msra.mxu0 0
        %786 = vmatprep.subr.bf16.mxu0 0
        %787 = vmatpush1.bf16.xpose.msra.mxu0 0
        %788 = vmatprep.subr.bf16.mxu0 0
        %789 = vmatpush1.bf16.xpose.msra.mxu0 0
        %790 = vmatprep.mubr.bf16.mxu0 0
        %791 = vmatmul.mubr.bf16.gmra.mrb[0].mxu0 %v753
        %v792 = vpop.f32.mrb[0].mxu0
        %v793 = vadd.f32 0.0, %v792
        %v794 = vpop.f32.mrb[0].mxu0
        %v795 = vpop.f32.mrb[0].mxu0
        %v796 = vpop.f32.mrb[0].mxu0
        %797 = vdwg.mxu0
        %799 = vrot.lane.b32.xlu0 %v697, 96
        %v800 = vpop.permute.xlu0 %799
        %v802 = vsel %vm702, %v697, 0
        %v805 = vsel %vm702, %v800, 0
        %807 = vmatprep.subr.bf16.mxu0 0
        %808 = vmatpush1.bf16.xpose.msra.mxu0 %v805
        %809 = vmatprep.subr.bf16.mxu0 0
        %810 = vmatpush1.bf16.xpose.msra.mxu0 0
        %811 = vmatprep.subr.bf16.mxu0 0
        %812 = vmatpush1.bf16.xpose.msra.mxu0 0
        %813 = vmatprep.subr.bf16.mxu0 0
        %814 = vmatpush1.bf16.xpose.msra.mxu0 0
        %815 = vmatprep.subr.bf16.mxu0 0
        %816 = vmatpush1.bf16.xpose.msra.mxu0 0
        %817 = vmatprep.subr.bf16.mxu0 0
        %818 = vmatpush1.bf16.xpose.msra.mxu0 0
        %819 = vmatprep.subr.bf16.mxu0 0
        %820 = vmatpush1.bf16.xpose.msra.mxu0 0
        %821 = vmatprep.subr.bf16.mxu0 0
        %822 = vmatpush1.bf16.xpose.msra.mxu0 0
        %823 = vmatprep.subr.bf16.mxu0 0
        %824 = vmatpush1.bf16.xpose.msra.mxu0 0
        %825 = vmatprep.subr.bf16.mxu0 0
        %826 = vmatpush1.bf16.xpose.msra.mxu0 0
        %827 = vmatprep.subr.bf16.mxu0 0
        %828 = vmatpush1.bf16.xpose.msra.mxu0 0
        %829 = vmatprep.subr.bf16.mxu0 0
        %830 = vmatpush1.bf16.xpose.msra.mxu0 0
        %831 = vmatprep.subr.bf16.mxu0 0
        %832 = vmatpush1.bf16.xpose.msra.mxu0 0
        %833 = vmatprep.subr.bf16.mxu0 0
        %834 = vmatpush1.bf16.xpose.msra.mxu0 0
        %835 = vmatprep.subr.bf16.mxu0 0
        %836 = vmatpush1.bf16.xpose.msra.mxu0 0
        %837 = vmatprep.subr.bf16.mxu0 0
        %838 = vmatpush1.bf16.xpose.msra.mxu0 0
        %839 = vmatprep.mubr.bf16.mxu0 0
        %840 = vmatmul.mubr.bf16.gmra.mrb[0].mxu0 %v802
        %v841 = vpop.f32.mrb[0].mxu0
        %v842 = vadd.f32 0.0, %v841
        %v843 = vpop.f32.mrb[0].mxu0
        %v844 = vpop.f32.mrb[0].mxu0
        %v845 = vpop.f32.mrb[0].mxu0
        %846 = vdwg.mxu0
        %848 = vrot.lane.b32.xlu0 %v698, 96
        %v849 = vpop.permute.xlu0 %848
        %v851 = vsel %vm702, %v698, 0
        %v854 = vsel %vm702, %v849, 0
        %856 = vmatprep.subr.bf16.mxu0 0
        %857 = vmatpush1.bf16.xpose.msra.mxu0 %v854
        %858 = vmatprep.subr.bf16.mxu0 0
        %859 = vmatpush1.bf16.xpose.msra.mxu0 0
        %860 = vmatprep.subr.bf16.mxu0 0
        %861 = vmatpush1.bf16.xpose.msra.mxu0 0
        %862 = vmatprep.subr.bf16.mxu0 0
        %863 = vmatpush1.bf16.xpose.msra.mxu0 0
        %864 = vmatprep.subr.bf16.mxu0 0
        %865 = vmatpush1.bf16.xpose.msra.mxu0 0
        %866 = vmatprep.subr.bf16.mxu0 0
        %867 = vmatpush1.bf16.xpose.msra.mxu0 0
        %868 = vmatprep.subr.bf16.mxu0 0
        %869 = vmatpush1.bf16.xpose.msra.mxu0 0
        %870 = vmatprep.subr.bf16.mxu0 0
        %871 = vmatpush1.bf16.xpose.msra.mxu0 0
        %872 = vmatprep.subr.bf16.mxu0 0
        %873 = vmatpush1.bf16.xpose.msra.mxu0 0
        %874 = vmatprep.subr.bf16.mxu0 0
        %875 = vmatpush1.bf16.xpose.msra.mxu0 0
        %876 = vmatprep.subr.bf16.mxu0 0
        %877 = vmatpush1.bf16.xpose.msra.mxu0 0
        %878 = vmatprep.subr.bf16.mxu0 0
        %879 = vmatpush1.bf16.xpose.msra.mxu0 0
        %880 = vmatprep.subr.bf16.mxu0 0
        %881 = vmatpush1.bf16.xpose.msra.mxu0 0
        %882 = vmatprep.subr.bf16.mxu0 0
        %883 = vmatpush1.bf16.xpose.msra.mxu0 0
        %884 = vmatprep.subr.bf16.mxu0 0
        %885 = vmatpush1.bf16.xpose.msra.mxu0 0
        %886 = vmatprep.subr.bf16.mxu0 0
        %887 = vmatpush1.bf16.xpose.msra.mxu0 0
        %888 = vmatprep.mubr.bf16.mxu0 0
        %889 = vmatmul.mubr.bf16.gmra.mrb[0].mxu0 %v851
        %v890 = vpop.f32.mrb[0].mxu0
        %v891 = vadd.f32 0.0, %v890
        %v892 = vpop.f32.mrb[0].mxu0
        %v893 = vpop.f32.mrb[0].mxu0
        %v894 = vpop.f32.mrb[0].mxu0
        %895 = vdwg.mxu0
        %v896 = vmul.f32 %v744, 0.35355338
        %v897 = vmul.f32 %v793, 0.35355338
        %v898 = vmul.f32 %v842, 0.35355338
        %v899 = vmul.f32 %v891, 0.35355338
        %v901 = vlaneseq
        %v902 = vshrl.u32 %v901, 7
        %v903 = vsub.s32 0, %v902
        %v904 = vrot.slane %v586, %v903
        %v906 = vadd.f32 %v896, %v904
        %v907 = vadd.f32 %v897, %v904
        %v908 = vadd.f32 %v898, %v904
        %v909 = vadd.f32 %v899, %v904
        %v910 = vsel %vm702, %v906, -inf
        %911 = vmax.xlane.f32.xlu0 %v910
        %v912 = vpop.xlane.xlu0 %911
        %v913 = vsel %vm702, %v907, -inf
        %914 = vmax.xlane.f32.xlu0 %v913
        %v915 = vpop.xlane.xlu0 %914
        %v916 = vsel %vm702, %v908, -inf
        %917 = vmax.xlane.f32.xlu0 %v916
        %v918 = vpop.xlane.xlu0 %917
        %v919 = vsel %vm702, %v909, -inf
        %920 = vmax.xlane.f32.xlu0 %v919
        %v921 = vpop.xlane.xlu0 %920
        %v922 = vsub.f32 %v906, %v912
        %v923 = vsub.f32 %v907, %v915
        %v924 = vsub.f32 %v908, %v918
        %v925 = vsub.f32 %v909, %v921
        %v926 = vmul.f32 %v922, 1.442695
        %v927 = vpow.pop %v926
        %v928 = vmul.f32 %v923, 1.442695
        %v929 = vpow.pop %v928
        %v930 = vmul.f32 %v924, 1.442695
        %v931 = vpow.pop %v930
        %v932 = vmul.f32 %v925, 1.442695
        %v933 = vpow.pop %v932
        %v934 = vsel %vm702, %v927, 0.0
        %935 = vadd.xlane.f32.xlu0 %v934
        %v936 = vpop.xlane.xlu0 %935
        %v937 = vsel %vm702, %v929, 0.0
        %938 = vadd.xlane.f32.xlu0 %v937
        %v939 = vpop.xlane.xlu0 %938
        %v940 = vsel %vm702, %v931, 0.0
        %941 = vadd.xlane.f32.xlu0 %v940
        %v942 = vpop.xlane.xlu0 %941
        %v943 = vsel %vm702, %v933, 0.0
        %944 = vadd.xlane.f32.xlu0 %v943
        %v945 = vpop.xlane.xlu0 %944
        %v946 = vrcp.pop %v936
        %v947 = vrcp.pop %v939
        %v948 = vrcp.pop %v942
        %v949 = vrcp.pop %v945
        %v950 = vmul.f32 %v927, %v946
        %v951 = vmul.f32 %v929, %v947
        %v952 = vmul.f32 %v931, %v948
        %v953 = vmul.f32 %v933, %v949
        %v954 = vpack.c.bf16 %v950, %v950
        %v955 = vpack.c.bf16 %v951, %v951
        %v956 = vpack.c.bf16 %v952, %v952
        %v957 = vpack.c.bf16 %v953, %v953
        %958 = vrot.lane.b32.xlu0 %v695, 64
        %v959 = vpop.permute.xlu0 %958
        %v961 = vsel %vm702, %v954, 0
        %vm963 = vcmask 1043456
        %v965 = vsel %vm963, %v959, 0
        %967 = vmatprep.subr.bf16.mxu0 0
        %968 = vmatpush1.bf16.msra.mxu0 %v965
        %969 = vmatprep.subr.bf16.mxu0 0
        %970 = vmatpush1.bf16.msra.mxu0 0
        %971 = vmatprep.subr.bf16.mxu0 0
        %972 = vmatpush1.bf16.msra.mxu0 0
        %973 = vmatprep.subr.bf16.mxu0 0
        %974 = vmatpush1.bf16.msra.mxu0 0
        %975 = vmatprep.subr.bf16.mxu0 0
        %976 = vmatpush1.bf16.msra.mxu0 0
        %977 = vmatprep.subr.bf16.mxu0 0
        %978 = vmatpush1.bf16.msra.mxu0 0
        %979 = vmatprep.subr.bf16.mxu0 0
        %980 = vmatpush1.bf16.msra.mxu0 0
        %981 = vmatprep.subr.bf16.mxu0 0
        %982 = vmatpush1.bf16.msra.mxu0 0
        %983 = vmatprep.subr.bf16.mxu0 0
        %984 = vmatpush1.bf16.msra.mxu0 0
        %985 = vmatprep.subr.bf16.mxu0 0
        %986 = vmatpush1.bf16.msra.mxu0 0
        %987 = vmatprep.subr.bf16.mxu0 0
        %988 = vmatpush1.bf16.msra.mxu0 0
        %989 = vmatprep.subr.bf16.mxu0 0
        %990 = vmatpush1.bf16.msra.mxu0 0
        %991 = vmatprep.subr.bf16.mxu0 0
        %992 = vmatpush1.bf16.msra.mxu0 0
        %993 = vmatprep.subr.bf16.mxu0 0
        %994 = vmatpush1.bf16.msra.mxu0 0
        %995 = vmatprep.subr.bf16.mxu0 0
        %996 = vmatpush1.bf16.msra.mxu0 0
        %997 = vmatprep.subr.bf16.mxu0 0
        %998 = vmatpush1.bf16.msra.mxu0 0
        %999 = vmatprep.mubr.bf16.mxu0 0
        %1000 = vmatmul.mubr.bf16.gmra.mrb[0].mxu0 %v961
        %v1001 = vpop.f32.mrb[0].mxu0
        %v1002 = vadd.f32 0.0, %v1001
        %v1003 = vpop.f32.mrb[0].mxu0
        %v1004 = vpop.f32.mrb[0].mxu0
        %v1005 = vpop.f32.mrb[0].mxu0
        %1006 = vdwg.mxu0
        %1007 = vrot.lane.b32.xlu0 %v696, 64
        %v1008 = vpop.permute.xlu0 %1007
        %v1010 = vsel %vm702, %v955, 0
        %v1013 = vsel %vm963, %v1008, 0
        %1015 = vmatprep.subr.bf16.mxu0 0
        %1016 = vmatpush1.bf16.msra.mxu0 %v1013
        %1017 = vmatprep.subr.bf16.mxu0 0
        %1018 = vmatpush1.bf16.msra.mxu0 0
        %1019 = vmatprep.subr.bf16.mxu0 0
        %1020 = vmatpush1.bf16.msra.mxu0 0
        %1021 = vmatprep.subr.bf16.mxu0 0
        %1022 = vmatpush1.bf16.msra.mxu0 0
        %1023 = vmatprep.subr.bf16.mxu0 0
        %1024 = vmatpush1.bf16.msra.mxu0 0
        %1025 = vmatprep.subr.bf16.mxu0 0
        %1026 = vmatpush1.bf16.msra.mxu0 0
        %1027 = vmatprep.subr.bf16.mxu0 0
        %1028 = vmatpush1.bf16.msra.mxu0 0
        %1029 = vmatprep.subr.bf16.mxu0 0
        %1030 = vmatpush1.bf16.msra.mxu0 0
        %1031 = vmatprep.subr.bf16.mxu0 0
        %1032 = vmatpush1.bf16.msra.mxu0 0
        %1033 = vmatprep.subr.bf16.mxu0 0
        %1034 = vmatpush1.bf16.msra.mxu0 0
        %1035 = vmatprep.subr.bf16.mxu0 0
        %1036 = vmatpush1.bf16.msra.mxu0 0
        %1037 = vmatprep.subr.bf16.mxu0 0
        %1038 = vmatpush1.bf16.msra.mxu0 0
        %1039 = vmatprep.subr.bf16.mxu0 0
        %1040 = vmatpush1.bf16.msra.mxu0 0
        %1041 = vmatprep.subr.bf16.mxu0 0
        %1042 = vmatpush1.bf16.msra.mxu0 0
        %1043 = vmatprep.subr.bf16.mxu0 0
        %1044 = vmatpush1.bf16.msra.mxu0 0
        %1045 = vmatprep.subr.bf16.mxu0 0
        %1046 = vmatpush1.bf16.msra.mxu0 0
        %1047 = vmatprep.mubr.bf16.mxu0 0
        %1048 = vmatmul.mubr.bf16.gmra.mrb[0].mxu0 %v1010
        %v1049 = vpop.f32.mrb[0].mxu0
        %v1050 = vadd.f32 0.0, %v1049
        %v1051 = vpop.f32.mrb[0].mxu0
        %v1052 = vpop.f32.mrb[0].mxu0
        %v1053 = vpop.f32.mrb[0].mxu0
        %1054 = vdwg.mxu0
        %1055 = vrot.lane.b32.xlu0 %v697, 64
        %v1056 = vpop.permute.xlu0 %1055
        %v1058 = vsel %vm702, %v956, 0
        %v1061 = vsel %vm963, %v1056, 0
        %1063 = vmatprep.subr.bf16.mxu0 0
        %1064 = vmatpush1.bf16.msra.mxu0 %v1061
        %1065 = vmatprep.subr.bf16.mxu0 0
        %1066 = vmatpush1.bf16.msra.mxu0 0
        %1067 = vmatprep.subr.bf16.mxu0 0
        %1068 = vmatpush1.bf16.msra.mxu0 0
        %1069 = vmatprep.subr.bf16.mxu0 0
        %1070 = vmatpush1.bf16.msra.mxu0 0
        %1071 = vmatprep.subr.bf16.mxu0 0
        %1072 = vmatpush1.bf16.msra.mxu0 0
        %1073 = vmatprep.subr.bf16.mxu0 0
        %1074 = vmatpush1.bf16.msra.mxu0 0
        %1075 = vmatprep.subr.bf16.mxu0 0
        %1076 = vmatpush1.bf16.msra.mxu0 0
        %1077 = vmatprep.subr.bf16.mxu0 0
        %1078 = vmatpush1.bf16.msra.mxu0 0
        %1079 = vmatprep.subr.bf16.mxu0 0
        %1080 = vmatpush1.bf16.msra.mxu0 0
        %1081 = vmatprep.subr.bf16.mxu0 0
        %1082 = vmatpush1.bf16.msra.mxu0 0
        %1083 = vmatprep.subr.bf16.mxu0 0
        %1084 = vmatpush1.bf16.msra.mxu0 0
        %1085 = vmatprep.subr.bf16.mxu0 0
        %1086 = vmatpush1.bf16.msra.mxu0 0
        %1087 = vmatprep.subr.bf16.mxu0 0
        %1088 = vmatpush1.bf16.msra.mxu0 0
        %1089 = vmatprep.subr.bf16.mxu0 0
        %1090 = vmatpush1.bf16.msra.mxu0 0
        %1091 = vmatprep.subr.bf16.mxu0 0
        %1092 = vmatpush1.bf16.msra.mxu0 0
        %1093 = vmatprep.subr.bf16.mxu0 0
        %1094 = vmatpush1.bf16.msra.mxu0 0
        %1095 = vmatprep.mubr.bf16.mxu0 0
        %1096 = vmatmul.mubr.bf16.gmra.mrb[0].mxu0 %v1058
        %v1097 = vpop.f32.mrb[0].mxu0
        %v1098 = vadd.f32 0.0, %v1097
        %v1099 = vpop.f32.mrb[0].mxu0
        %v1100 = vpop.f32.mrb[0].mxu0
        %v1101 = vpop.f32.mrb[0].mxu0
        %1102 = vdwg.mxu0
        %1103 = vrot.lane.b32.xlu0 %v698, 64
        %v1104 = vpop.permute.xlu0 %1103
        %v1106 = vsel %vm702, %v957, 0
        %v1109 = vsel %vm963, %v1104, 0
        %1111 = vmatprep.subr.bf16.mxu0 0
        %1112 = vmatpush1.bf16.msra.mxu0 %v1109
        %1113 = vmatprep.subr.bf16.mxu0 0
        %1114 = vmatpush1.bf16.msra.mxu0 0
        %1115 = vmatprep.subr.bf16.mxu0 0
        %1116 = vmatpush1.bf16.msra.mxu0 0
        %1117 = vmatprep.subr.bf16.mxu0 0
        %1118 = vmatpush1.bf16.msra.mxu0 0
        %1119 = vmatprep.subr.bf16.mxu0 0
        %1120 = vmatpush1.bf16.msra.mxu0 0
        %1121 = vmatprep.subr.bf16.mxu0 0
        %1122 = vmatpush1.bf16.msra.mxu0 0
        %1123 = vmatprep.subr.bf16.mxu0 0
        %1124 = vmatpush1.bf16.msra.mxu0 0
        %1125 = vmatprep.subr.bf16.mxu0 0
        %1126 = vmatpush1.bf16.msra.mxu0 0
        %1127 = vmatprep.subr.bf16.mxu0 0
        %1128 = vmatpush1.bf16.msra.mxu0 0
        %1129 = vmatprep.subr.bf16.mxu0 0
        %1130 = vmatpush1.bf16.msra.mxu0 0
        %1131 = vmatprep.subr.bf16.mxu0 0
        %1132 = vmatpush1.bf16.msra.mxu0 0
        %1133 = vmatprep.subr.bf16.mxu0 0
        %1134 = vmatpush1.bf16.msra.mxu0 0
        %1135 = vmatprep.subr.bf16.mxu0 0
        %1136 = vmatpush1.bf16.msra.mxu0 0
        %1137 = vmatprep.subr.bf16.mxu0 0
        %1138 = vmatpush1.bf16.msra.mxu0 0
        %1139 = vmatprep.subr.bf16.mxu0 0
        %1140 = vmatpush1.bf16.msra.mxu0 0
        %1141 = vmatprep.subr.bf16.mxu0 0
        %1142 = vmatpush1.bf16.msra.mxu0 0
        %1143 = vmatprep.mubr.bf16.mxu0 0
        %1144 = vmatmul.mubr.bf16.gmra.mrb[0].mxu0 %v1106
        %v1145 = vpop.f32.mrb[0].mxu0
        %v1146 = vadd.f32 0.0, %v1145
        %v1147 = vpop.f32.mrb[0].mxu0
        %v1148 = vpop.f32.mrb[0].mxu0
        %v1149 = vpop.f32.mrb[0].mxu0
        %1150 = vdwg.mxu0
        %v1151 = vpack.c.bf16 %v1002, %v1002
        %v1152 = vpack.c.bf16 %v1050, %v1050
        %v1153 = vpack.c.bf16 %v1098, %v1098
        %v1154 = vpack.c.bf16 %v1146, %v1146
        %v1155 = vld [vmem:[%s6] sm:$0xf]
        %v1156 = vld [vmem:[%s6 + $0x4] sm:$0xf]
        %v1157 = vld [vmem:[%s6 + $0x8] sm:$0xf]
        %v1158 = vld [vmem:[%s6 + $0xc] sm:$0xf]
        %v1160 = vsel %vm702, %v1151, 0
        %v1163 = vsel %vm963, %v1155, 0
        %1165 = vmatprep.subr.bf16.mxu0 0
        %1166 = vmatpush1.bf16.msra.mxu0 %v1163
        %1167 = vmatprep.subr.bf16.mxu0 0
        %1168 = vmatpush1.bf16.msra.mxu0 0
        %1169 = vmatprep.subr.bf16.mxu0 0
        %1170 = vmatpush1.bf16.msra.mxu0 0
        %1171 = vmatprep.subr.bf16.mxu0 0
        %1172 = vmatpush1.bf16.msra.mxu0 0
        %1173 = vmatprep.subr.bf16.mxu0 0
        %1174 = vmatpush1.bf16.msra.mxu0 0
        %1175 = vmatprep.subr.bf16.mxu0 0
        %1176 = vmatpush1.bf16.msra.mxu0 0
        %1177 = vmatprep.subr.bf16.mxu0 0
        %1178 = vmatpush1.bf16.msra.mxu0 0
        %1179 = vmatprep.subr.bf16.mxu0 0
        %1180 = vmatpush1.bf16.msra.mxu0 0
        %1181 = vmatprep.subr.bf16.mxu0 0
        %1182 = vmatpush1.bf16.msra.mxu0 0
        %1183 = vmatprep.subr.bf16.mxu0 0
        %1184 = vmatpush1.bf16.msra.mxu0 0
        %1185 = vmatprep.subr.bf16.mxu0 0
        %1186 = vmatpush1.bf16.msra.mxu0 0
        %1187 = vmatprep.subr.bf16.mxu0 0
        %1188 = vmatpush1.bf16.msra.mxu0 0
        %1189 = vmatprep.subr.bf16.mxu0 0
        %1190 = vmatpush1.bf16.msra.mxu0 0
        %1191 = vmatprep.subr.bf16.mxu0 0
        %1192 = vmatpush1.bf16.msra.mxu0 0
        %1193 = vmatprep.subr.bf16.mxu0 0
        %1194 = vmatpush1.bf16.msra.mxu0 0
        %1195 = vmatprep.subr.bf16.mxu0 0
        %1196 = vmatpush1.bf16.msra.mxu0 0
        %1197 = vmatprep.mubr.bf16.mxu0 0
        %1198 = vmatmul.mubr.bf16.gmra.mrb[0].mxu0 %v1160
        %v1199 = vpop.f32.mrb[0].mxu0
        %v1200 = vadd.f32 0.0, %v1199
        %v1201 = vpop.f32.mrb[0].mxu0
        %v1202 = vpop.f32.mrb[0].mxu0
        %v1203 = vpop.f32.mrb[0].mxu0
        %1204 = vdwg.mxu0
        %v1206 = vsel %vm702, %v1152, 0
        %v1209 = vsel %vm963, %v1156, 0
        %1211 = vmatprep.subr.bf16.mxu0 0
        %1212 = vmatpush1.bf16.msra.mxu0 %v1209
        %1213 = vmatprep.subr.bf16.mxu0 0
        %1214 = vmatpush1.bf16.msra.mxu0 0
        %1215 = vmatprep.subr.bf16.mxu0 0
        %1216 = vmatpush1.bf16.msra.mxu0 0
        %1217 = vmatprep.subr.bf16.mxu0 0
        %1218 = vmatpush1.bf16.msra.mxu0 0
        %1219 = vmatprep.subr.bf16.mxu0 0
        %1220 = vmatpush1.bf16.msra.mxu0 0
        %1221 = vmatprep.subr.bf16.mxu0 0
        %1222 = vmatpush1.bf16.msra.mxu0 0
        %1223 = vmatprep.subr.bf16.mxu0 0
        %1224 = vmatpush1.bf16.msra.mxu0 0
        %1225 = vmatprep.subr.bf16.mxu0 0
        %1226 = vmatpush1.bf16.msra.mxu0 0
        %1227 = vmatprep.subr.bf16.mxu0 0
        %1228 = vmatpush1.bf16.msra.mxu0 0
        %1229 = vmatprep.subr.bf16.mxu0 0
        %1230 = vmatpush1.bf16.msra.mxu0 0
        %1231 = vmatprep.subr.bf16.mxu0 0
        %1232 = vmatpush1.bf16.msra.mxu0 0
        %1233 = vmatprep.subr.bf16.mxu0 0
        %1234 = vmatpush1.bf16.msra.mxu0 0
        %1235 = vmatprep.subr.bf16.mxu0 0
        %1236 = vmatpush1.bf16.msra.mxu0 0
        %1237 = vmatprep.subr.bf16.mxu0 0
        %1238 = vmatpush1.bf16.msra.mxu0 0
        %1239 = vmatprep.subr.bf16.mxu0 0
        %1240 = vmatpush1.bf16.msra.mxu0 0
        %1241 = vmatprep.subr.bf16.mxu0 0
        %1242 = vmatpush1.bf16.msra.mxu0 0
        %1243 = vmatprep.mubr.bf16.mxu0 0
        %1244 = vmatmul.mubr.bf16.gmra.mrb[0].mxu0 %v1206
        %v1245 = vpop.f32.mrb[0].mxu0
        %v1246 = vadd.f32 0.0, %v1245
        %v1247 = vpop.f32.mrb[0].mxu0
        %v1248 = vpop.f32.mrb[0].mxu0
        %v1249 = vpop.f32.mrb[0].mxu0
        %1250 = vdwg.mxu0
        %v1252 = vsel %vm702, %v1153, 0
        %v1255 = vsel %vm963, %v1157, 0
        %1257 = vmatprep.subr.bf16.mxu0 0
        %1258 = vmatpush1.bf16.msra.mxu0 %v1255
        %1259 = vmatprep.subr.bf16.mxu0 0
        %1260 = vmatpush1.bf16.msra.mxu0 0
        %1261 = vmatprep.subr.bf16.mxu0 0
        %1262 = vmatpush1.bf16.msra.mxu0 0
        %1263 = vmatprep.subr.bf16.mxu0 0
        %1264 = vmatpush1.bf16.msra.mxu0 0
        %1265 = vmatprep.subr.bf16.mxu0 0
        %1266 = vmatpush1.bf16.msra.mxu0 0
        %1267 = vmatprep.subr.bf16.mxu0 0
        %1268 = vmatpush1.bf16.msra.mxu0 0
        %1269 = vmatprep.subr.bf16.mxu0 0
        %1270 = vmatpush1.bf16.msra.mxu0 0
        %1271 = vmatprep.subr.bf16.mxu0 0
        %1272 = vmatpush1.bf16.msra.mxu0 0
        %1273 = vmatprep.subr.bf16.mxu0 0
        %1274 = vmatpush1.bf16.msra.mxu0 0
        %1275 = vmatprep.subr.bf16.mxu0 0
        %1276 = vmatpush1.bf16.msra.mxu0 0
        %1277 = vmatprep.subr.bf16.mxu0 0
        %1278 = vmatpush1.bf16.msra.mxu0 0
        %1279 = vmatprep.subr.bf16.mxu0 0
        %1280 = vmatpush1.bf16.msra.mxu0 0
        %1281 = vmatprep.subr.bf16.mxu0 0
        %1282 = vmatpush1.bf16.msra.mxu0 0
        %1283 = vmatprep.subr.bf16.mxu0 0
        %1284 = vmatpush1.bf16.msra.mxu0 0
        %1285 = vmatprep.subr.bf16.mxu0 0
        %1286 = vmatpush1.bf16.msra.mxu0 0
        %1287 = vmatprep.subr.bf16.mxu0 0
        %1288 = vmatpush1.bf16.msra.mxu0 0
        %1289 = vmatprep.mubr.bf16.mxu0 0
        %1290 = vmatmul.mubr.bf16.gmra.mrb[0].mxu0 %v1252
        %v1291 = vpop.f32.mrb[0].mxu0
        %v1292 = vadd.f32 0.0, %v1291
        %v1293 = vpop.f32.mrb[0].mxu0
        %v1294 = vpop.f32.mrb[0].mxu0
        %v1295 = vpop.f32.mrb[0].mxu0
        %1296 = vdwg.mxu0
        %v1298 = vsel %vm702, %v1154, 0
        %v1301 = vsel %vm963, %v1158, 0
        %1303 = vmatprep.subr.bf16.mxu0 0
        %1304 = vmatpush1.bf16.msra.mxu0 %v1301
        %1305 = vmatprep.subr.bf16.mxu0 0
        %1306 = vmatpush1.bf16.msra.mxu0 0
        %1307 = vmatprep.subr.bf16.mxu0 0
        %1308 = vmatpush1.bf16.msra.mxu0 0
        %1309 = vmatprep.subr.bf16.mxu0 0
        %1310 = vmatpush1.bf16.msra.mxu0 0
        %1311 = vmatprep.subr.bf16.mxu0 0
        %1312 = vmatpush1.bf16.msra.mxu0 0
        %1313 = vmatprep.subr.bf16.mxu0 0
        %1314 = vmatpush1.bf16.msra.mxu0 0
        %1315 = vmatprep.subr.bf16.mxu0 0
        %1316 = vmatpush1.bf16.msra.mxu0 0
        %1317 = vmatprep.subr.bf16.mxu0 0
        %1318 = vmatpush1.bf16.msra.mxu0 0
        %1319 = vmatprep.subr.bf16.mxu0 0
        %1320 = vmatpush1.bf16.msra.mxu0 0
        %1321 = vmatprep.subr.bf16.mxu0 0
        %1322 = vmatpush1.bf16.msra.mxu0 0
        %1323 = vmatprep.subr.bf16.mxu0 0
        %1324 = vmatpush1.bf16.msra.mxu0 0
        %1325 = vmatprep.subr.bf16.mxu0 0
        %1326 = vmatpush1.bf16.msra.mxu0 0
        %1327 = vmatprep.subr.bf16.mxu0 0
        %1328 = vmatpush1.bf16.msra.mxu0 0
        %1329 = vmatprep.subr.bf16.mxu0 0
        %1330 = vmatpush1.bf16.msra.mxu0 0
        %1331 = vmatprep.subr.bf16.mxu0 0
        %1332 = vmatpush1.bf16.msra.mxu0 0
        %1333 = vmatprep.subr.bf16.mxu0 0
        %1334 = vmatpush1.bf16.msra.mxu0 0
        %1335 = vmatprep.mubr.bf16.mxu0 0
        %1336 = vmatmul.mubr.bf16.gmra.mrb[0].mxu0 %v1298
        %v1337 = vpop.f32.mrb[0].mxu0
        %v1338 = vadd.f32 0.0, %v1337
        %v1339 = vpop.f32.mrb[0].mxu0
        %v1340 = vpop.f32.mrb[0].mxu0
        %v1341 = vpop.f32.mrb[0].mxu0
        %1342 = vdwg.mxu0
        %v1343 = vsel %vm589, %v1200, 0.0
        %v1344 = vsel %vm589, %v1246, 0.0
        %v1345 = vadd.f32 %v1343, %v1344
        %v1346 = vsel %vm589, %v1292, 0.0
        %v1347 = vadd.f32 %v1345, %v1346
        %v1348 = vsel %vm589, %v1338, 0.0
        %v1349 = vadd.f32 %v1347, %v1348
        %v1350 = vld [vmem:[%s7] sm:$0x1]
        %v1352 = vlaneseq
        %v1353 = vshrl.u32 %v1352, 7
        %v1354 = vsub.s32 0, %v1353
        %v1355 = vrot.slane %v1350, %v1354
        %v1357 = vadd.f32 %v1349, %v1355
        %v1358 = vadd.f32 %v1357, %v617
        %v1359 = vld [vmem:[%s8] sm:$0x1]
        %v1360 = vld [vmem:[%s9] sm:$0x1]
        %v1361 = vsel %vm589, %v1358, 0.0
        %1362 = vadd.xlane.f32.xlu0 %v1361
        %v1363 = vpop.xlane.xlu0 %1362
        %v1364 = vmul.f32 %v1363, %v593
        %v1365 = vsub.f32 %v1358, %v1364
        %v1366 = vmul.f32 %v1365, %v1365
        %v1367 = vsel %vm589, %v1366, 0.0
        %1368 = vadd.xlane.f32.xlu0 %v1367
        %v1369 = vpop.xlane.xlu0 %1368
        %v1370 = vmul.f32 %v1369, %v593
        %v1371 = vadd.f32 %v1370, 1e-12
        %v1372 = vrsqrt.pop %v1371
        %v1373 = vmul.f32 %v1365, %v1372
        %v1375 = vlaneseq
        %v1376 = vshrl.u32 %v1375, 7
        %v1377 = vsub.s32 0, %v1376
        %v1378 = vrot.slane %v1359, %v1377
        %v1380 = vmul.f32 %v1373, %v1378
        %v1382 = vlaneseq
        %v1383 = vshrl.u32 %v1382, 7
        %v1384 = vsub.s32 0, %v1383
        %v1385 = vrot.slane %v1360, %v1384
        %v1387 = vadd.f32 %v1380, %v1385
        %v1388 = vpack.c.bf16 %v1387, %v1387
        %v1389 = vld [vmem:[%s10] sm:$0xf]
        %v1390 = vld [vmem:[%s10 + $0x4] sm:$0xf]
        %v1391 = vld [vmem:[%s10 + $0x8] sm:$0xf]
        %v1392 = vld [vmem:[%s10 + $0xc] sm:$0xf]
        %v1393 = vld [vmem:[%s11] sm:$0x1]
        %v1395 = vlaneseq
        %v1396 = vshrl.u32 %v1395, 7
        %v1397 = vsub.s32 0, %v1396
        %v1398 = vrot.slane %v1393, %v1397
        %v1404 = vunpack.c.l.b16 %v1389
        %v1405 = vunpack.c.l.b16 %v1390
        %v1406 = vunpack.c.l.b16 %v1391
        %v1407 = vunpack.c.l.b16 %v1392
        %v1408 = vpack.c.b16 %v1405, %v1404
        %v1409 = vpack.c.b16 %v1407, %v1406
        %v1413 = vsel %vm589, %v1388, 0
        %1415 = vmatprep.subr.bf16.mxu0 0
        %1416 = vmatpush1.bf16.msra.mxu0 %v1408
        %1417 = vmatprep.subr.bf16.mxu0 0
        %1418 = vmatpush1.bf16.msra.mxu0 %v1409
        %1419 = vmatprep.subr.bf16.mxu0 0
        %1420 = vmatpush1.bf16.msra.mxu0 0
        %1421 = vmatprep.subr.bf16.mxu0 0
        %1422 = vmatpush1.bf16.msra.mxu0 0
        %1423 = vmatprep.subr.bf16.mxu0 0
        %1424 = vmatpush1.bf16.msra.mxu0 0
        %1425 = vmatprep.subr.bf16.mxu0 0
        %1426 = vmatpush1.bf16.msra.mxu0 0
        %1427 = vmatprep.subr.bf16.mxu0 0
        %1428 = vmatpush1.bf16.msra.mxu0 0
        %1429 = vmatprep.subr.bf16.mxu0 0
        %1430 = vmatpush1.bf16.msra.mxu0 0
        %1431 = vmatprep.subr.bf16.mxu0 0
        %1432 = vmatpush1.bf16.msra.mxu0 0
        %1433 = vmatprep.subr.bf16.mxu0 0
        %1434 = vmatpush1.bf16.msra.mxu0 0
        %1435 = vmatprep.subr.bf16.mxu0 0
        %1436 = vmatpush1.bf16.msra.mxu0 0
        %1437 = vmatprep.subr.bf16.mxu0 0
        %1438 = vmatpush1.bf16.msra.mxu0 0
        %1439 = vmatprep.subr.bf16.mxu0 0
        %1440 = vmatpush1.bf16.msra.mxu0 0
        %1441 = vmatprep.subr.bf16.mxu0 0
        %1442 = vmatpush1.bf16.msra.mxu0 0
        %1443 = vmatprep.subr.bf16.mxu0 0
        %1444 = vmatpush1.bf16.msra.mxu0 0
        %1445 = vmatprep.subr.bf16.mxu0 0
        %1446 = vmatpush1.bf16.msra.mxu0 0
        %1447 = vmatprep.mubr.bf16.mxu0 0
        %1448 = vmatmul.mubr.bf16.gmra.mrb[0].mxu0 %v1413
        %v1449 = vpop.f32.mrb[0].mxu0
        %v1450 = vadd.f32 %v1398, %v1449
        %v1451 = vpop.f32.mrb[0].mxu0
        %v1452 = vpop.f32.mrb[0].mxu0
        %v1453 = vpop.f32.mrb[0].mxu0
        %1454 = vdwg.mxu0
        %v1455 = vmul.f32 %v1450, 0.5
        %v1456 = vmul.f32 %v1450, 0.044715
        %v1457 = vmul.f32 %v1456, %v1450
        %v1458 = vmul.f32 %v1457, %v1450
        %v1459 = vadd.f32 %v1450, %v1458
        %v1460 = vmul.f32 %v1459, 0.7978846
        %v1461 = vtanh.pop %v1460
        %v1462 = vadd.f32 %v1461, 1.0
        %v1463 = vmul.f32 %v1455, %v1462
        %v1464 = vpack.c.bf16 %v1463, %v1463
        %v1465 = vld [vmem:[%s12] sm:$0xf]
        %v1466 = vld [vmem:[%s12 + $0x4] sm:$0xf]
        %v1467 = vld [vmem:[%s12 + $0x8] sm:$0xf]
        %v1468 = vld [vmem:[%s12 + $0xc] sm:$0xf]
        %v1469 = vld [vmem:[%s12 + $0x10] sm:$0xf]
        %v1470 = vld [vmem:[%s12 + $0x14] sm:$0xf]
        %v1471 = vld [vmem:[%s12 + $0x18] sm:$0xf]
        %v1472 = vld [vmem:[%s12 + $0x1c] sm:$0xf]
        %v1473 = vld [vmem:[%s13] sm:$0x1]
        %v1475 = vlaneseq
        %v1476 = vshrl.u32 %v1475, 7
        %v1477 = vsub.s32 0, %v1476
        %v1478 = vrot.slane %v1473, %v1477
        %v1488 = vunpack.c.l.b16 %v1465
        %v1489 = vunpack.c.l.b16 %v1466
        %v1490 = vunpack.c.l.b16 %v1467
        %v1491 = vunpack.c.l.b16 %v1468
        %v1492 = vunpack.c.l.b16 %v1469
        %v1493 = vunpack.c.l.b16 %v1470
        %v1494 = vunpack.c.l.b16 %v1471
        %v1495 = vunpack.c.l.b16 %v1472
        %v1496 = vpack.c.b16 %v1489, %v1488
        %v1497 = vpack.c.b16 %v1491, %v1490
        %v1498 = vpack.c.b16 %v1493, %v1492
        %v1499 = vpack.c.b16 %v1495, %v1494
        %vm1504 = vcmask 523264
        %v1506 = vsel %vm1504, %v1464, 0
        %1508 = vmatprep.subr.bf16.mxu0 0
        %1509 = vmatpush1.bf16.msra.mxu0 %v1496
        %1510 = vmatprep.subr.bf16.mxu0 0
        %1511 = vmatpush1.bf16.msra.mxu0 %v1497
        %1512 = vmatprep.subr.bf16.mxu0 0
        %1513 = vmatpush1.bf16.msra.mxu0 %v1498
        %1514 = vmatprep.subr.bf16.mxu0 0
        %1515 = vmatpush1.bf16.msra.mxu0 %v1499
        %1516 = vmatprep.subr.bf16.mxu0 0
        %1517 = vmatpush1.bf16.msra.mxu0 0
        %1518 = vmatprep.subr.bf16.mxu0 0
        %1519 = vmatpush1.bf16.msra.mxu0 0
        %1520 = vmatprep.subr.bf16.mxu0 0
        %1521 = vmatpush1.bf16.msra.mxu0 0
        %1522 = vmatprep.subr.bf16.mxu0 0
        %1523 = vmatpush1.bf16.msra.mxu0 0
        %1524 = vmatprep.subr.bf16.mxu0 0
        %1525 = vmatpush1.bf16.msra.mxu0 0
        %1526 = vmatprep.subr.bf16.mxu0 0
        %1527 = vmatpush1.bf16.msra.mxu0 0
        %1528 = vmatprep.subr.bf16.mxu0 0
        %1529 = vmatpush1.bf16.msra.mxu0 0
        %1530 = vmatprep.subr.bf16.mxu0 0
        %1531 = vmatpush1.bf16.msra.mxu0 0
        %1532 = vmatprep.subr.bf16.mxu0 0
        %1533 = vmatpush1.bf16.msra.mxu0 0
        %1534 = vmatprep.subr.bf16.mxu0 0
        %1535 = vmatpush1.bf16.msra.mxu0 0
        %1536 = vmatprep.subr.bf16.mxu0 0
        %1537 = vmatpush1.bf16.msra.mxu0 0
        %1538 = vmatprep.subr.bf16.mxu0 0
        %1539 = vmatpush1.bf16.msra.mxu0 0
        %1540 = vmatprep.mubr.bf16.mxu0 0
        %1541 = vmatmul.mubr.bf16.gmra.mrb[0].mxu0 %v1506
        %v1542 = vpop.f32.mrb[0].mxu0
        %v1543 = vadd.f32 %v1478, %v1542
        %v1544 = vpop.f32.mrb[0].mxu0
        %v1545 = vpop.f32.mrb[0].mxu0
        %v1546 = vpop.f32.mrb[0].mxu0
        %1547 = vdwg.mxu0
        %v1548 = vadd.f32 %v1543, %v1387
        %v1549 = vld [vmem:[%s14] sm:$0x1]
        %v1550 = vld [vmem:[%s15] sm:$0x1]
        %v1551 = vsel %vm589, %v1548, 0.0
        %1552 = vadd.xlane.f32.xlu0 %v1551
        %v1553 = vpop.xlane.xlu0 %1552
        %v1554 = vmul.f32 %v1553, %v593
        %v1555 = vsub.f32 %v1548, %v1554
        %v1556 = vmul.f32 %v1555, %v1555
        %v1557 = vsel %vm589, %v1556, 0.0
        %1558 = vadd.xlane.f32.xlu0 %v1557
        %v1559 = vpop.xlane.xlu0 %1558
        %v1560 = vmul.f32 %v1559, %v593
        %v1561 = vadd.f32 %v1560, 1e-12
        %v1562 = vrsqrt.pop %v1561
        %v1563 = vmul.f32 %v1555, %v1562
        %v1565 = vlaneseq
        %v1566 = vshrl.u32 %v1565, 7
        %v1567 = vsub.s32 0, %v1566
        %v1568 = vrot.slane %v1549, %v1567
        %v1570 = vmul.f32 %v1563, %v1568
        %v1572 = vlaneseq
        %v1573 = vshrl.u32 %v1572, 7
        %v1574 = vsub.s32 0, %v1573
        %v1575 = vrot.slane %v1550, %v1574
        %v1577 = vadd.f32 %v1570, %v1575
        %v1578 = vpack.c.bf16 %v1577, %v1577
        %s1579 = scalar_lea.vmem %s4, 16
        %v1580 = vld [vmem:[%s1579] sm:$0xf]
        %v1581 = vld [vmem:[%s1579 + $0x4] sm:$0xf]
        %v1582 = vld [vmem:[%s1579 + $0x8] sm:$0xf]
        %v1583 = vld [vmem:[%s1579 + $0xc] sm:$0xf]
        %s1584 = scalar_lea.vmem %s5, 1
        %v1585 = vld [vmem:[%s1584] sm:$0x1]
        %v1587 = vlaneseq
        %v1588 = vshrl.u32 %v1587, 7
        %v1589 = vsub.s32 0, %v1588
        %v1590 = vrot.slane %v1585, %v1589
        %v1596 = vunpack.c.l.b16 %v1580
        %v1597 = vunpack.c.l.b16 %v1581
        %v1598 = vunpack.c.l.b16 %v1582
        %v1599 = vunpack.c.l.b16 %v1583
        %v1600 = vpack.c.b16 %v1597, %v1596
        %v1601 = vpack.c.b16 %v1599, %v1598
        %v1605 = vsel %vm589, %v1578, 0
        %1607 = vmatprep.subr.bf16.mxu0 0
        %1608 = vmatpush1.bf16.msra.mxu0 %v1600
        %1609 = vmatprep.subr.bf16.mxu0 0
        %1610 = vmatpush1.bf16.msra.mxu0 %v1601
        %1611 = vmatprep.subr.bf16.mxu0 0
        %1612 = vmatpush1.bf16.msra.mxu0 0
        %1613 = vmatprep.subr.bf16.mxu0 0
        %1614 = vmatpush1.bf16.msra.mxu0 0
        %1615 = vmatprep.subr.bf16.mxu0 0
        %1616 = vmatpush1.bf16.msra.mxu0 0
        %1617 = vmatprep.subr.bf16.mxu0 0
        %1618 = vmatpush1.bf16.msra.mxu0 0
        %1619 = vmatprep.subr.bf16.mxu0 0
        %1620 = vmatpush1.bf16.msra.mxu0 0
        %1621 = vmatprep.subr.bf16.mxu0 0
        %1622 = vmatpush1.bf16.msra.mxu0 0
        %1623 = vmatprep.subr.bf16.mxu0 0
        %1624 = vmatpush1.bf16.msra.mxu0 0
        %1625 = vmatprep.subr.bf16.mxu0 0
        %1626 = vmatpush1.bf16.msra.mxu0 0
        %1627 = vmatprep.subr.bf16.mxu0 0
        %1628 = vmatpush1.bf16.msra.mxu0 0
        %1629 = vmatprep.subr.bf16.mxu0 0
        %1630 = vmatpush1.bf16.msra.mxu0 0
        %1631 = vmatprep.subr.bf16.mxu0 0
        %1632 = vmatpush1.bf16.msra.mxu0 0
        %1633 = vmatprep.subr.bf16.mxu0 0
        %1634 = vmatpush1.bf16.msra.mxu0 0
        %1635 = vmatprep.subr.bf16.mxu0 0
        %1636 = vmatpush1.bf16.msra.mxu0 0
        %1637 = vmatprep.subr.bf16.mxu0 0
        %1638 = vmatpush1.bf16.msra.mxu0 0
        %1639 = vmatprep.mubr.bf16.mxu0 0
        %1640 = vmatmul.mubr.bf16.gmra.mrb[0].mxu0 %v1605
        %v1641 = vpop.f32.mrb[0].mxu0
        %v1642 = vadd.f32 %v1590, %v1641
        %v1643 = vpop.f32.mrb[0].mxu0
        %v1644 = vpop.f32.mrb[0].mxu0
        %v1645 = vpop.f32.mrb[0].mxu0
        %1646 = vdwg.mxu0
        %1648 = vrot.lane.b32.xlu0 %v1642, 120
        %v1649 = vpop.permute.xlu0 %1648
        %1651 = vrot.lane.b32.xlu0 %v1642, 112
        %v1652 = vpop.permute.xlu0 %1651
        %1654 = vrot.lane.b32.xlu0 %v1642, 104
        %v1655 = vpop.permute.xlu0 %1654
        %v1657 = vpack.c.bf16 %v1642, %v1642
        %v1658 = vpack.c.bf16 %v1649, %v1649
        %v1659 = vpack.c.bf16 %v1652, %v1652
        %v1660 = vpack.c.bf16 %v1655, %v1655
        %1662 = vrot.lane.b32.xlu0 %v1657, 96
        %v1663 = vpop.permute.xlu0 %1662
        %v1665 = vsel %vm702, %v1657, 0
        %v1668 = vsel %vm702, %v1663, 0
        %1670 = vmatprep.subr.bf16.mxu0 0
        %1671 = vmatpush1.bf16.xpose.msra.mxu0 %v1668
        %1672 = vmatprep.subr.bf16.mxu0 0
        %1673 = vmatpush1.bf16.xpose.msra.mxu0 0
        %1674 = vmatprep.subr.bf16.mxu0 0
        %1675 = vmatpush1.bf16.xpose.msra.mxu0 0
        %1676 = vmatprep.subr.bf16.mxu0 0
        %1677 = vmatpush1.bf16.xpose.msra.mxu0 0
        %1678 = vmatprep.subr.bf16.mxu0 0
        %1679 = vmatpush1.bf16.xpose.msra.mxu0 0
        %1680 = vmatprep.subr.bf16.mxu0 0
        %1681 = vmatpush1.bf16.xpose.msra.mxu0 0
        %1682 = vmatprep.subr.bf16.mxu0 0
        %1683 = vmatpush1.bf16.xpose.msra.mxu0 0
        %1684 = vmatprep.subr.bf16.mxu0 0
        %1685 = vmatpush1.bf16.xpose.msra.mxu0 0
        %1686 = vmatprep.subr.bf16.mxu0 0
        %1687 = vmatpush1.bf16.xpose.msra.mxu0 0
        %1688 = vmatprep.subr.bf16.mxu0 0
        %1689 = vmatpush1.bf16.xpose.msra.mxu0 0
        %1690 = vmatprep.subr.bf16.mxu0 0
        %1691 = vmatpush1.bf16.xpose.msra.mxu0 0
        %1692 = vmatprep.subr.bf16.mxu0 0
        %1693 = vmatpush1.bf16.xpose.msra.mxu0 0
        %1694 = vmatprep.subr.bf16.mxu0 0
        %1695 = vmatpush1.bf16.xpose.msra.mxu0 0
        %1696 = vmatprep.subr.bf16.mxu0 0
        %1697 = vmatpush1.bf16.xpose.msra.mxu0 0
        %1698 = vmatprep.subr.bf16.mxu0 0
        %1699 = vmatpush1.bf16.xpose.msra.mxu0 0
        %1700 = vmatprep.subr.bf16.mxu0 0
        %1701 = vmatpush1.bf16.xpose.msra.mxu0 0
        %1702 = vmatprep.mubr.bf16.mxu0 0
        %1703 = vmatmul.mubr.bf16.gmra.mrb[0].mxu0 %v1665
        %v1704 = vpop.f32.mrb[0].mxu0
        %v1705 = vadd.f32 0.0, %v1704
        %v1706 = vpop.f32.mrb[0].mxu0
        %v1707 = vpop.f32.mrb[0].mxu0
        %v1708 = vpop.f32.mrb[0].mxu0
        %1709 = vdwg.mxu0
        %1711 = vrot.lane.b32.xlu0 %v1658, 96
        %v1712 = vpop.permute.xlu0 %1711
        %v1714 = vsel %vm702, %v1658, 0
        %v1717 = vsel %vm702, %v1712, 0
        %1719 = vmatprep.subr.bf16.mxu0 0
        %1720 = vmatpush1.bf16.xpose.msra.mxu0 %v1717
        %1721 = vmatprep.subr.bf16.mxu0 0
        %1722 = vmatpush1.bf16.xpose.msra.mxu0 0
        %1723 = vmatprep.subr.bf16.mxu0 0
        %1724 = vmatpush1.bf16.xpose.msra.mxu0 0
        %1725 = vmatprep.subr.bf16.mxu0 0
        %1726 = vmatpush1.bf16.xpose.msra.mxu0 0
        %1727 = vmatprep.subr.bf16.mxu0 0
        %1728 = vmatpush1.bf16.xpose.msra.mxu0 0
        %1729 = vmatprep.subr.bf16.mxu0 0
        %1730 = vmatpush1.bf16.xpose.msra.mxu0 0
        %1731 = vmatprep.subr.bf16.mxu0 0
        %1732 = vmatpush1.bf16.xpose.msra.mxu0 0
        %1733 = vmatprep.subr.bf16.mxu0 0
        %1734 = vmatpush1.bf16.xpose.msra.mxu0 0
        %1735 = vmatprep.subr.bf16.mxu0 0
        %1736 = vmatpush1.bf16.xpose.msra.mxu0 0
        %1737 = vmatprep.subr.bf16.mxu0 0
        %1738 = vmatpush1.bf16.xpose.msra.mxu0 0
        %1739 = vmatprep.subr.bf16.mxu0 0
        %1740 = vmatpush1.bf16.xpose.msra.mxu0 0
        %1741 = vmatprep.subr.bf16.mxu0 0
        %1742 = vmatpush1.bf16.xpose.msra.mxu0 0
        %1743 = vmatprep.subr.bf16.mxu0 0
        %1744 = vmatpush1.bf16.xpose.msra.mxu0 0
        %1745 = vmatprep.subr.bf16.mxu0 0
        %1746 = vmatpush1.bf16.xpose.msra.mxu0 0
        %1747 = vmatprep.subr.bf16.mxu0 0
        %1748 = vmatpush1.bf16.xpose.msra.mxu0 0
        %1749 = vmatprep.subr.bf16.mxu0 0
        %1750 = vmatpush1.bf16.xpose.msra.mxu0 0
        %1751 = vmatprep.mubr.bf16.mxu0 0
        %1752 = vmatmul.mubr.bf16.gmra.mrb[0].mxu0 %v1714
        %v1753 = vpop.f32.mrb[0].mxu0
        %v1754 = vadd.f32 0.0, %v1753
        %v1755 = vpop.f32.mrb[0].mxu0
        %v1756 = vpop.f32.mrb[0].mxu0
        %v1757 = vpop.f32.mrb[0].mxu0
        %1758 = vdwg.mxu0
        %1760 = vrot.lane.b32.xlu0 %v1659, 96
        %v1761 = vpop.permute.xlu0 %1760
        %v1763 = vsel %vm702, %v1659, 0
        %v1766 = vsel %vm702, %v1761, 0
        %1768 = vmatprep.subr.bf16.mxu0 0
        %1769 = vmatpush1.bf16.xpose.msra.mxu0 %v1766
        %1770 = vmatprep.subr.bf16.mxu0 0
        %1771 = vmatpush1.bf16.xpose.msra.mxu0 0
        %1772 = vmatprep.subr.bf16.mxu0 0
        %1773 = vmatpush1.bf16.xpose.msra.mxu0 0
        %1774 = vmatprep.subr.bf16.mxu0 0
        %1775 = vmatpush1.bf16.xpose.msra.mxu0 0
        %1776 = vmatprep.subr.bf16.mxu0 0
        %1777 = vmatpush1.bf16.xpose.msra.mxu0 0
        %1778 = vmatprep.subr.bf16.mxu0 0
        %1779 = vmatpush1.bf16.xpose.msra.mxu0 0
        %1780 = vmatprep.subr.bf16.mxu0 0
        %1781 = vmatpush1.bf16.xpose.msra.mxu0 0
        %1782 = vmatprep.subr.bf16.mxu0 0
        %1783 = vmatpush1.bf16.xpose.msra.mxu0 0
        %1784 = vmatprep.subr.bf16.mxu0 0
        %1785 = vmatpush1.bf16.xpose.msra.mxu0 0
        %1786 = vmatprep.subr.bf16.mxu0 0
        %1787 = vmatpush1.bf16.xpose.msra.mxu0 0
        %1788 = vmatprep.subr.bf16.mxu0 0
        %1789 = vmatpush1.bf16.xpose.msra.mxu0 0
        %1790 = vmatprep.subr.bf16.mxu0 0
        %1791 = vmatpush1.bf16.xpose.msra.mxu0 0
        %1792 = vmatprep.subr.bf16.mxu0 0
        %1793 = vmatpush1.bf16.xpose.msra.mxu0 0
        %1794 = vmatprep.subr.bf16.mxu0 0
        %1795 = vmatpush1.bf16.xpose.msra.mxu0 0
        %1796 = vmatprep.subr.bf16.mxu0 0
        %1797 = vmatpush1.bf16.xpose.msra.mxu0 0
        %1798 = vmatprep.subr.bf16.mxu0 0
        %1799 = vmatpush1.bf16.xpose.msra.mxu0 0
        %1800 = vmatprep.mubr.bf16.mxu0 0
        %1801 = vmatmul.mubr.bf16.gmra.mrb[0].mxu0 %v1763
        %v1802 = vpop.f32.mrb[0].mxu0
        %v1803 = vadd.f32 0.0, %v1802
        %v1804 = vpop.f32.mrb[0].mxu0
        %v1805 = vpop.f32.mrb[0].mxu0
        %v1806 = vpop.f32.mrb[0].mxu0
        %1807 = vdwg.mxu0
        %1809 = vrot.lane.b32.xlu0 %v1660, 96
        %v1810 = vpop.permute.xlu0 %1809
        %v1812 = vsel %vm702, %v1660, 0
        %v1815 = vsel %vm702, %v1810, 0
        %1817 = vmatprep.subr.bf16.mxu0 0
        %1818 = vmatpush1.bf16.xpose.msra.mxu0 %v1815
        %1819 = vmatprep.subr.bf16.mxu0 0
        %1820 = vmatpush1.bf16.xpose.msra.mxu0 0
        %1821 = vmatprep.subr.bf16.mxu0 0
        %1822 = vmatpush1.bf16.xpose.msra.mxu0 0
        %1823 = vmatprep.subr.bf16.mxu0 0
        %1824 = vmatpush1.bf16.xpose.msra.mxu0 0
        %1825 = vmatprep.subr.bf16.mxu0 0
        %1826 = vmatpush1.bf16.xpose.msra.mxu0 0
        %1827 = vmatprep.subr.bf16.mxu0 0
        %1828 = vmatpush1.bf16.xpose.msra.mxu0 0
        %1829 = vmatprep.subr.bf16.mxu0 0
        %1830 = vmatpush1.bf16.xpose.msra.mxu0 0
        %1831 = vmatprep.subr.bf16.mxu0 0
        %1832 = vmatpush1.bf16.xpose.msra.mxu0 0
        %1833 = vmatprep.subr.bf16.mxu0 0
        %1834 = vmatpush1.bf16.xpose.msra.mxu0 0
        %1835 = vmatprep.subr.bf16.mxu0 0
        %1836 = vmatpush1.bf16.xpose.msra.mxu0 0
        %1837 = vmatprep.subr.bf16.mxu0 0
        %1838 = vmatpush1.bf16.xpose.msra.mxu0 0
        %1839 = vmatprep.subr.bf16.mxu0 0
        %1840 = vmatpush1.bf16.xpose.msra.mxu0 0
        %1841 = vmatprep.subr.bf16.mxu0 0
        %1842 = vmatpush1.bf16.xpose.msra.mxu0 0
        %1843 = vmatprep.subr.bf16.mxu0 0
        %1844 = vmatpush1.bf16.xpose.msra.mxu0 0
        %1845 = vmatprep.subr.bf16.mxu0 0
        %1846 = vmatpush1.bf16.xpose.msra.mxu0 0
        %1847 = vmatprep.subr.bf16.mxu0 0
        %1848 = vmatpush1.bf16.xpose.msra.mxu0 0
        %1849 = vmatprep.mubr.bf16.mxu0 0
        %1850 = vmatmul.mubr.bf16.gmra.mrb[0].mxu0 %v1812
        %v1851 = vpop.f32.mrb[0].mxu0
        %v1852 = vadd.f32 0.0, %v1851
        %v1853 = vpop.f32.mrb[0].mxu0
        %v1854 = vpop.f32.mrb[0].mxu0
        %v1855 = vpop.f32.mrb[0].mxu0
        %1856 = vdwg.mxu0
        %v1857 = vmul.f32 %v1705, 0.35355338
        %v1858 = vmul.f32 %v1754, 0.35355338
        %v1859 = vmul.f32 %v1803, 0.35355338
        %v1860 = vmul.f32 %v1852, 0.35355338
        %v1861 = vadd.f32 %v1857, %v904
        %v1862 = vadd.f32 %v1858, %v904
        %v1863 = vadd.f32 %v1859, %v904
        %v1864 = vadd.f32 %v1860, %v904
        %v1865 = vsel %vm702, %v1861, -inf
        %1866 = vmax.xlane.f32.xlu0 %v1865
        %v1867 = vpop.xlane.xlu0 %1866
        %v1868 = vsel %vm702, %v1862, -inf
        %1869 = vmax.xlane.f32.xlu0 %v1868
        %v1870 = vpop.xlane.xlu0 %1869
        %v1871 = vsel %vm702, %v1863, -inf
        %1872 = vmax.xlane.f32.xlu0 %v1871
        %v1873 = vpop.xlane.xlu0 %1872
        %v1874 = vsel %vm702, %v1864, -inf
        %1875 = vmax.xlane.f32.xlu0 %v1874
        %v1876 = vpop.xlane.xlu0 %1875
        %v1877 = vsub.f32 %v1861, %v1867
        %v1878 = vsub.f32 %v1862, %v1870
        %v1879 = vsub.f32 %v1863, %v1873
        %v1880 = vsub.f32 %v1864, %v1876
        %v1881 = vmul.f32 %v1877, 1.442695
        %v1882 = vpow.pop %v1881
        %v1883 = vmul.f32 %v1878, 1.442695
        %v1884 = vpow.pop %v1883
        %v1885 = vmul.f32 %v1879, 1.442695
        %v1886 = vpow.pop %v1885
        %v1887 = vmul.f32 %v1880, 1.442695
        %v1888 = vpow.pop %v1887
        %v1889 = vsel %vm702, %v1882, 0.0
        %1890 = vadd.xlane.f32.xlu0 %v1889
        %v1891 = vpop.xlane.xlu0 %1890
        %v1892 = vsel %vm702, %v1884, 0.0
        %1893 = vadd.xlane.f32.xlu0 %v1892
        %v1894 = vpop.xlane.xlu0 %1893
        %v1895 = vsel %vm702, %v1886, 0.0
        %1896 = vadd.xlane.f32.xlu0 %v1895
        %v1897 = vpop.xlane.xlu0 %1896
        %v1898 = vsel %vm702, %v1888, 0.0
        %1899 = vadd.xlane.f32.xlu0 %v1898
        %v1900 = vpop.xlane.xlu0 %1899
        %v1901 = vrcp.pop %v1891
        %v1902 = vrcp.pop %v1894
        %v1903 = vrcp.pop %v1897
        %v1904 = vrcp.pop %v1900
        %v1905 = vmul.f32 %v1882, %v1901
        %v1906 = vmul.f32 %v1884, %v1902
        %v1907 = vmul.f32 %v1886, %v1903
        %v1908 = vmul.f32 %v1888, %v1904
        %v1909 = vpack.c.bf16 %v1905, %v1905
        %v1910 = vpack.c.bf16 %v1906, %v1906
        %v1911 = vpack.c.bf16 %v1907, %v1907
        %v1912 = vpack.c.bf16 %v1908, %v1908
        %1913 = vrot.lane.b32.xlu0 %v1657, 64
        %v1914 = vpop.permute.xlu0 %1913
        %v1916 = vsel %vm702, %v1909, 0
        %v1919 = vsel %vm963, %v1914, 0
        %1921 = vmatprep.subr.bf16.mxu0 0
        %1922 = vmatpush1.bf16.msra.mxu0 %v1919
        %1923 = vmatprep.subr.bf16.mxu0 0
        %1924 = vmatpush1.bf16.msra.mxu0 0
        %1925 = vmatprep.subr.bf16.mxu0 0
        %1926 = vmatpush1.bf16.msra.mxu0 0
        %1927 = vmatprep.subr.bf16.mxu0 0
        %1928 = vmatpush1.bf16.msra.mxu0 0
        %1929 = vmatprep.subr.bf16.mxu0 0
        %1930 = vmatpush1.bf16.msra.mxu0 0
        %1931 = vmatprep.subr.bf16.mxu0 0
        %1932 = vmatpush1.bf16.msra.mxu0 0
        %1933 = vmatprep.subr.bf16.mxu0 0
        %1934 = vmatpush1.bf16.msra.mxu0 0
        %1935 = vmatprep.subr.bf16.mxu0 0
        %1936 = vmatpush1.bf16.msra.mxu0 0
        %1937 = vmatprep.subr.bf16.mxu0 0
        %1938 = vmatpush1.bf16.msra.mxu0 0
        %1939 = vmatprep.subr.bf16.mxu0 0
        %1940 = vmatpush1.bf16.msra.mxu0 0
        %1941 = vmatprep.subr.bf16.mxu0 0
        %1942 = vmatpush1.bf16.msra.mxu0 0
        %1943 = vmatprep.subr.bf16.mxu0 0
        %1944 = vmatpush1.bf16.msra.mxu0 0
        %1945 = vmatprep.subr.bf16.mxu0 0
        %1946 = vmatpush1.bf16.msra.mxu0 0
        %1947 = vmatprep.subr.bf16.mxu0 0
        %1948 = vmatpush1.bf16.msra.mxu0 0
        %1949 = vmatprep.subr.bf16.mxu0 0
        %1950 = vmatpush1.bf16.msra.mxu0 0
        %1951 = vmatprep.subr.bf16.mxu0 0
        %1952 = vmatpush1.bf16.msra.mxu0 0
        %1953 = vmatprep.mubr.bf16.mxu0 0
        %1954 = vmatmul.mubr.bf16.gmra.mrb[0].mxu0 %v1916
        %v1955 = vpop.f32.mrb[0].mxu0
        %v1956 = vadd.f32 0.0, %v1955
        %v1957 = vpop.f32.mrb[0].mxu0
        %v1958 = vpop.f32.mrb[0].mxu0
        %v1959 = vpop.f32.mrb[0].mxu0
        %1960 = vdwg.mxu0
        %1961 = vrot.lane.b32.xlu0 %v1658, 64
        %v1962 = vpop.permute.xlu0 %1961
        %v1964 = vsel %vm702, %v1910, 0
        %v1967 = vsel %vm963, %v1962, 0
        %1969 = vmatprep.subr.bf16.mxu0 0
        %1970 = vmatpush1.bf16.msra.mxu0 %v1967
        %1971 = vmatprep.subr.bf16.mxu0 0
        %1972 = vmatpush1.bf16.msra.mxu0 0
        %1973 = vmatprep.subr.bf16.mxu0 0
        %1974 = vmatpush1.bf16.msra.mxu0 0
        %1975 = vmatprep.subr.bf16.mxu0 0
        %1976 = vmatpush1.bf16.msra.mxu0 0
        %1977 = vmatprep.subr.bf16.mxu0 0
        %1978 = vmatpush1.bf16.msra.mxu0 0
        %1979 = vmatprep.subr.bf16.mxu0 0
        %1980 = vmatpush1.bf16.msra.mxu0 0
        %1981 = vmatprep.subr.bf16.mxu0 0
        %1982 = vmatpush1.bf16.msra.mxu0 0
        %1983 = vmatprep.subr.bf16.mxu0 0
        %1984 = vmatpush1.bf16.msra.mxu0 0
        %1985 = vmatprep.subr.bf16.mxu0 0
        %1986 = vmatpush1.bf16.msra.mxu0 0
        %1987 = vmatprep.subr.bf16.mxu0 0
        %1988 = vmatpush1.bf16.msra.mxu0 0
        %1989 = vmatprep.subr.bf16.mxu0 0
        %1990 = vmatpush1.bf16.msra.mxu0 0
        %1991 = vmatprep.subr.bf16.mxu0 0
        %1992 = vmatpush1.bf16.msra.mxu0 0
        %1993 = vmatprep.subr.bf16.mxu0 0
        %1994 = vmatpush1.bf16.msra.mxu0 0
        %1995 = vmatprep.subr.bf16.mxu0 0
        %1996 = vmatpush1.bf16.msra.mxu0 0
        %1997 = vmatprep.subr.bf16.mxu0 0
        %1998 = vmatpush1.bf16.msra.mxu0 0
        %1999 = vmatprep.subr.bf16.mxu0 0
        %2000 = vmatpush1.bf16.msra.mxu0 0
        %2001 = vmatprep.mubr.bf16.mxu0 0
        %2002 = vmatmul.mubr.bf16.gmra.mrb[0].mxu0 %v1964
        %v2003 = vpop.f32.mrb[0].mxu0
        %v2004 = vadd.f32 0.0, %v2003
        %v2005 = vpop.f32.mrb[0].mxu0
        %v2006 = vpop.f32.mrb[0].mxu0
        %v2007 = vpop.f32.mrb[0].mxu0
        %2008 = vdwg.mxu0
        %2009 = vrot.lane.b32.xlu0 %v1659, 64
        %v2010 = vpop.permute.xlu0 %2009
        %v2012 = vsel %vm702, %v1911, 0
        %v2015 = vsel %vm963, %v2010, 0
        %2017 = vmatprep.subr.bf16.mxu0 0
        %2018 = vmatpush1.bf16.msra.mxu0 %v2015
        %2019 = vmatprep.subr.bf16.mxu0 0
        %2020 = vmatpush1.bf16.msra.mxu0 0
        %2021 = vmatprep.subr.bf16.mxu0 0
        %2022 = vmatpush1.bf16.msra.mxu0 0
        %2023 = vmatprep.subr.bf16.mxu0 0
        %2024 = vmatpush1.bf16.msra.mxu0 0
        %2025 = vmatprep.subr.bf16.mxu0 0
        %2026 = vmatpush1.bf16.msra.mxu0 0
        %2027 = vmatprep.subr.bf16.mxu0 0
        %2028 = vmatpush1.bf16.msra.mxu0 0
        %2029 = vmatprep.subr.bf16.mxu0 0
        %2030 = vmatpush1.bf16.msra.mxu0 0
        %2031 = vmatprep.subr.bf16.mxu0 0
        %2032 = vmatpush1.bf16.msra.mxu0 0
        %2033 = vmatprep.subr.bf16.mxu0 0
        %2034 = vmatpush1.bf16.msra.mxu0 0
        %2035 = vmatprep.subr.bf16.mxu0 0
        %2036 = vmatpush1.bf16.msra.mxu0 0
        %2037 = vmatprep.subr.bf16.mxu0 0
        %2038 = vmatpush1.bf16.msra.mxu0 0
        %2039 = vmatprep.subr.bf16.mxu0 0
        %2040 = vmatpush1.bf16.msra.mxu0 0
        %2041 = vmatprep.subr.bf16.mxu0 0
        %2042 = vmatpush1.bf16.msra.mxu0 0
        %2043 = vmatprep.subr.bf16.mxu0 0
        %2044 = vmatpush1.bf16.msra.mxu0 0
        %2045 = vmatprep.subr.bf16.mxu0 0
        %2046 = vmatpush1.bf16.msra.mxu0 0
        %2047 = vmatprep.subr.bf16.mxu0 0
        %2048 = vmatpush1.bf16.msra.mxu0 0
        %2049 = vmatprep.mubr.bf16.mxu0 0
        %2050 = vmatmul.mubr.bf16.gmra.mrb[0].mxu0 %v2012
        %v2051 = vpop.f32.mrb[0].mxu0
        %v2052 = vadd.f32 0.0, %v2051
        %v2053 = vpop.f32.mrb[0].mxu0
        %v2054 = vpop.f32.mrb[0].mxu0
        %v2055 = vpop.f32.mrb[0].mxu0
        %2056 = vdwg.mxu0
        %2057 = vrot.lane.b32.xlu0 %v1660, 64
        %v2058 = vpop.permute.xlu0 %2057
        %v2060 = vsel %vm702, %v1912, 0
        %v2063 = vsel %vm963, %v2058, 0
        %2065 = vmatprep.subr.bf16.mxu0 0
        %2066 = vmatpush1.bf16.msra.mxu0 %v2063
        %2067 = vmatprep.subr.bf16.mxu0 0
        %2068 = vmatpush1.bf16.msra.mxu0 0
        %2069 = vmatprep.subr.bf16.mxu0 0
        %2070 = vmatpush1.bf16.msra.mxu0 0
        %2071 = vmatprep.subr.bf16.mxu0 0
        %2072 = vmatpush1.bf16.msra.mxu0 0
        %2073 = vmatprep.subr.bf16.mxu0 0
        %2074 = vmatpush1.bf16.msra.mxu0 0
        %2075 = vmatprep.subr.bf16.mxu0 0
        %2076 = vmatpush1.bf16.msra.mxu0 0
        %2077 = vmatprep.subr.bf16.mxu0 0
        %2078 = vmatpush1.bf16.msra.mxu0 0
        %2079 = vmatprep.subr.bf16.mxu0 0
        %2080 = vmatpush1.bf16.msra.mxu0 0
        %2081 = vmatprep.subr.bf16.mxu0 0
        %2082 = vmatpush1.bf16.msra.mxu0 0
        %2083 = vmatprep.subr.bf16.mxu0 0
        %2084 = vmatpush1.bf16.msra.mxu0 0
        %2085 = vmatprep.subr.bf16.mxu0 0
        %2086 = vmatpush1.bf16.msra.mxu0 0
        %2087 = vmatprep.subr.bf16.mxu0 0
        %2088 = vmatpush1.bf16.msra.mxu0 0
        %2089 = vmatprep.subr.bf16.mxu0 0
        %2090 = vmatpush1.bf16.msra.mxu0 0
        %2091 = vmatprep.subr.bf16.mxu0 0
        %2092 = vmatpush1.bf16.msra.mxu0 0
        %2093 = vmatprep.subr.bf16.mxu0 0
        %2094 = vmatpush1.bf16.msra.mxu0 0
        %2095 = vmatprep.subr.bf16.mxu0 0
        %2096 = vmatpush1.bf16.msra.mxu0 0
        %2097 = vmatprep.mubr.bf16.mxu0 0
        %2098 = vmatmul.mubr.bf16.gmra.mrb[0].mxu0 %v2060
        %v2099 = vpop.f32.mrb[0].mxu0
        %v2100 = vadd.f32 0.0, %v2099
        %v2101 = vpop.f32.mrb[0].mxu0
        %v2102 = vpop.f32.mrb[0].mxu0
        %v2103 = vpop.f32.mrb[0].mxu0
        %2104 = vdwg.mxu0
        %v2105 = vpack.c.bf16 %v1956, %v1956
        %v2106 = vpack.c.bf16 %v2004, %v2004
        %v2107 = vpack.c.bf16 %v2052, %v2052
        %v2108 = vpack.c.bf16 %v2100, %v2100
        %s2109 = scalar_lea.vmem %s6, 16
        %v2110 = vld [vmem:[%s2109] sm:$0xf]
        %v2111 = vld [vmem:[%s2109 + $0x4] sm:$0xf]
        %v2112 = vld [vmem:[%s2109 + $0x8] sm:$0xf]
        %v2113 = vld [vmem:[%s2109 + $0xc] sm:$0xf]
        %v2115 = vsel %vm702, %v2105, 0
        %v2118 = vsel %vm963, %v2110, 0
        %2120 = vmatprep.subr.bf16.mxu0 0
        %2121 = vmatpush1.bf16.msra.mxu0 %v2118
        %2122 = vmatprep.subr.bf16.mxu0 0
        %2123 = vmatpush1.bf16.msra.mxu0 0
        %2124 = vmatprep.subr.bf16.mxu0 0
        %2125 = vmatpush1.bf16.msra.mxu0 0
        %2126 = vmatprep.subr.bf16.mxu0 0
        %2127 = vmatpush1.bf16.msra.mxu0 0
        %2128 = vmatprep.subr.bf16.mxu0 0
        %2129 = vmatpush1.bf16.msra.mxu0 0
        %2130 = vmatprep.subr.bf16.mxu0 0
        %2131 = vmatpush1.bf16.msra.mxu0 0
        %2132 = vmatprep.subr.bf16.mxu0 0
        %2133 = vmatpush1.bf16.msra.mxu0 0
        %2134 = vmatprep.subr.bf16.mxu0 0
        %2135 = vmatpush1.bf16.msra.mxu0 0
        %2136 = vmatprep.subr.bf16.mxu0 0
        %2137 = vmatpush1.bf16.msra.mxu0 0
        %2138 = vmatprep.subr.bf16.mxu0 0
        %2139 = vmatpush1.bf16.msra.mxu0 0
        %2140 = vmatprep.subr.bf16.mxu0 0
        %2141 = vmatpush1.bf16.msra.mxu0 0
        %2142 = vmatprep.subr.bf16.mxu0 0
        %2143 = vmatpush1.bf16.msra.mxu0 0
        %2144 = vmatprep.subr.bf16.mxu0 0
        %2145 = vmatpush1.bf16.msra.mxu0 0
        %2146 = vmatprep.subr.bf16.mxu0 0
        %2147 = vmatpush1.bf16.msra.mxu0 0
        %2148 = vmatprep.subr.bf16.mxu0 0
        %2149 = vmatpush1.bf16.msra.mxu0 0
        %2150 = vmatprep.subr.bf16.mxu0 0
        %2151 = vmatpush1.bf16.msra.mxu0 0
        %2152 = vmatprep.mubr.bf16.mxu0 0
        %2153 = vmatmul.mubr.bf16.gmra.mrb[0].mxu0 %v2115
        %v2154 = vpop.f32.mrb[0].mxu0
        %v2155 = vadd.f32 0.0, %v2154
        %v2156 = vpop.f32.mrb[0].mxu0
        %v2157 = vpop.f32.mrb[0].mxu0
        %v2158 = vpop.f32.mrb[0].mxu0
        %2159 = vdwg.mxu0
        %v2161 = vsel %vm702, %v2106, 0
        %v2164 = vsel %vm963, %v2111, 0
        %2166 = vmatprep.subr.bf16.mxu0 0
        %2167 = vmatpush1.bf16.msra.mxu0 %v2164
        %2168 = vmatprep.subr.bf16.mxu0 0
        %2169 = vmatpush1.bf16.msra.mxu0 0
        %2170 = vmatprep.subr.bf16.mxu0 0
        %2171 = vmatpush1.bf16.msra.mxu0 0
        %2172 = vmatprep.subr.bf16.mxu0 0
        %2173 = vmatpush1.bf16.msra.mxu0 0
        %2174 = vmatprep.subr.bf16.mxu0 0
        %2175 = vmatpush1.bf16.msra.mxu0 0
        %2176 = vmatprep.subr.bf16.mxu0 0
        %2177 = vmatpush1.bf16.msra.mxu0 0
        %2178 = vmatprep.subr.bf16.mxu0 0
        %2179 = vmatpush1.bf16.msra.mxu0 0
        %2180 = vmatprep.subr.bf16.mxu0 0
        %2181 = vmatpush1.bf16.msra.mxu0 0
        %2182 = vmatprep.subr.bf16.mxu0 0
        %2183 = vmatpush1.bf16.msra.mxu0 0
        %2184 = vmatprep.subr.bf16.mxu0 0
        %2185 = vmatpush1.bf16.msra.mxu0 0
        %2186 = vmatprep.subr.bf16.mxu0 0
        %2187 = vmatpush1.bf16.msra.mxu0 0
        %2188 = vmatprep.subr.bf16.mxu0 0
        %2189 = vmatpush1.bf16.msra.mxu0 0
        %2190 = vmatprep.subr.bf16.mxu0 0
        %2191 = vmatpush1.bf16.msra.mxu0 0
        %2192 = vmatprep.subr.bf16.mxu0 0
        %2193 = vmatpush1.bf16.msra.mxu0 0
        %2194 = vmatprep.subr.bf16.mxu0 0
        %2195 = vmatpush1.bf16.msra.mxu0 0
        %2196 = vmatprep.subr.bf16.mxu0 0
        %2197 = vmatpush1.bf16.msra.mxu0 0
        %2198 = vmatprep.mubr.bf16.mxu0 0
        %2199 = vmatmul.mubr.bf16.gmra.mrb[0].mxu0 %v2161
        %v2200 = vpop.f32.mrb[0].mxu0
        %v2201 = vadd.f32 0.0, %v2200
        %v2202 = vpop.f32.mrb[0].mxu0
        %v2203 = vpop.f32.mrb[0].mxu0
        %v2204 = vpop.f32.mrb[0].mxu0
        %2205 = vdwg.mxu0
        %v2207 = vsel %vm702, %v2107, 0
        %v2210 = vsel %vm963, %v2112, 0
        %2212 = vmatprep.subr.bf16.mxu0 0
        %2213 = vmatpush1.bf16.msra.mxu0 %v2210
        %2214 = vmatprep.subr.bf16.mxu0 0
        %2215 = vmatpush1.bf16.msra.mxu0 0
        %2216 = vmatprep.subr.bf16.mxu0 0
        %2217 = vmatpush1.bf16.msra.mxu0 0
        %2218 = vmatprep.subr.bf16.mxu0 0
        %2219 = vmatpush1.bf16.msra.mxu0 0
        %2220 = vmatprep.subr.bf16.mxu0 0
        %2221 = vmatpush1.bf16.msra.mxu0 0
        %2222 = vmatprep.subr.bf16.mxu0 0
        %2223 = vmatpush1.bf16.msra.mxu0 0
        %2224 = vmatprep.subr.bf16.mxu0 0
        %2225 = vmatpush1.bf16.msra.mxu0 0
        %2226 = vmatprep.subr.bf16.mxu0 0
        %2227 = vmatpush1.bf16.msra.mxu0 0
        %2228 = vmatprep.subr.bf16.mxu0 0
        %2229 = vmatpush1.bf16.msra.mxu0 0
        %2230 = vmatprep.subr.bf16.mxu0 0
        %2231 = vmatpush1.bf16.msra.mxu0 0
        %2232 = vmatprep.subr.bf16.mxu0 0
        %2233 = vmatpush1.bf16.msra.mxu0 0
        %2234 = vmatprep.subr.bf16.mxu0 0
        %2235 = vmatpush1.bf16.msra.mxu0 0
        %2236 = vmatprep.subr.bf16.mxu0 0
        %2237 = vmatpush1.bf16.msra.mxu0 0
        %2238 = vmatprep.subr.bf16.mxu0 0
        %2239 = vmatpush1.bf16.msra.mxu0 0
        %2240 = vmatprep.subr.bf16.mxu0 0
        %2241 = vmatpush1.bf16.msra.mxu0 0
        %2242 = vmatprep.subr.bf16.mxu0 0
        %2243 = vmatpush1.bf16.msra.mxu0 0
        %2244 = vmatprep.mubr.bf16.mxu0 0
        %2245 = vmatmul.mubr.bf16.gmra.mrb[0].mxu0 %v2207
        %v2246 = vpop.f32.mrb[0].mxu0
        %v2247 = vadd.f32 0.0, %v2246
        %v2248 = vpop.f32.mrb[0].mxu0
        %v2249 = vpop.f32.mrb[0].mxu0
        %v2250 = vpop.f32.mrb[0].mxu0
        %2251 = vdwg.mxu0
        %v2253 = vsel %vm702, %v2108, 0
        %v2256 = vsel %vm963, %v2113, 0
        %2258 = vmatprep.subr.bf16.mxu0 0
        %2259 = vmatpush1.bf16.msra.mxu0 %v2256
        %2260 = vmatprep.subr.bf16.mxu0 0
        %2261 = vmatpush1.bf16.msra.mxu0 0
        %2262 = vmatprep.subr.bf16.mxu0 0
        %2263 = vmatpush1.bf16.msra.mxu0 0
        %2264 = vmatprep.subr.bf16.mxu0 0
        %2265 = vmatpush1.bf16.msra.mxu0 0
        %2266 = vmatprep.subr.bf16.mxu0 0
        %2267 = vmatpush1.bf16.msra.mxu0 0
        %2268 = vmatprep.subr.bf16.mxu0 0
        %2269 = vmatpush1.bf16.msra.mxu0 0
        %2270 = vmatprep.subr.bf16.mxu0 0
        %2271 = vmatpush1.bf16.msra.mxu0 0
        %2272 = vmatprep.subr.bf16.mxu0 0
        %2273 = vmatpush1.bf16.msra.mxu0 0
        %2274 = vmatprep.subr.bf16.mxu0 0
        %2275 = vmatpush1.bf16.msra.mxu0 0
        %2276 = vmatprep.subr.bf16.mxu0 0
        %2277 = vmatpush1.bf16.msra.mxu0 0
        %2278 = vmatprep.subr.bf16.mxu0 0
        %2279 = vmatpush1.bf16.msra.mxu0 0
        %2280 = vmatprep.subr.bf16.mxu0 0
        %2281 = vmatpush1.bf16.msra.mxu0 0
        %2282 = vmatprep.subr.bf16.mxu0 0
        %2283 = vmatpush1.bf16.msra.mxu0 0
        %2284 = vmatprep.subr.bf16.mxu0 0
        %2285 = vmatpush1.bf16.msra.mxu0 0
        %2286 = vmatprep.subr.bf16.mxu0 0
        %2287 = vmatpush1.bf16.msra.mxu0 0
        %2288 = vmatprep.subr.bf16.mxu0 0
        %2289 = vmatpush1.bf16.msra.mxu0 0
        %2290 = vmatprep.mubr.bf16.mxu0 0
        %2291 = vmatmul.mubr.bf16.gmra.mrb[0].mxu0 %v2253
        %v2292 = vpop.f32.mrb[0].mxu0
        %v2293 = vadd.f32 0.0, %v2292
        %v2294 = vpop.f32.mrb[0].mxu0
        %v2295 = vpop.f32.mrb[0].mxu0
        %v2296 = vpop.f32.mrb[0].mxu0
        %2297 = vdwg.mxu0
        %v2298 = vsel %vm589, %v2155, 0.0
        %v2299 = vsel %vm589, %v2201, 0.0
        %v2300 = vadd.f32 %v2298, %v2299
        %v2301 = vsel %vm589, %v2247, 0.0
        %v2302 = vadd.f32 %v2300, %v2301
        %v2303 = vsel %vm589, %v2293, 0.0
        %v2304 = vadd.f32 %v2302, %v2303
        %s2305 = scalar_lea.vmem %s7, 1
        %v2306 = vld [vmem:[%s2305] sm:$0x1]
        %v2308 = vlaneseq
        %v2309 = vshrl.u32 %v2308, 7
        %v2310 = vsub.s32 0, %v2309
        %v2311 = vrot.slane %v2306, %v2310
        %v2313 = vadd.f32 %v2304, %v2311
        %v2314 = vadd.f32 %v2313, %v1577
        %s2315 = scalar_lea.vmem %s8, 1
        %v2316 = vld [vmem:[%s2315] sm:$0x1]
        %s2317 = scalar_lea.vmem %s9, 1
        %v2318 = vld [vmem:[%s2317] sm:$0x1]
        %v2319 = vsel %vm589, %v2314, 0.0
        %2320 = vadd.xlane.f32.xlu0 %v2319
        %v2321 = vpop.xlane.xlu0 %2320
        %v2322 = vmul.f32 %v2321, %v593
        %v2323 = vsub.f32 %v2314, %v2322
        %v2324 = vmul.f32 %v2323, %v2323
        %v2325 = vsel %vm589, %v2324, 0.0
        %2326 = vadd.xlane.f32.xlu0 %v2325
        %v2327 = vpop.xlane.xlu0 %2326
        %v2328 = vmul.f32 %v2327, %v593
        %v2329 = vadd.f32 %v2328, 1e-12
        %v2330 = vrsqrt.pop %v2329
        %v2331 = vmul.f32 %v2323, %v2330
        %v2333 = vlaneseq
        %v2334 = vshrl.u32 %v2333, 7
        %v2335 = vsub.s32 0, %v2334
        %v2336 = vrot.slane %v2316, %v2335
        %v2338 = vmul.f32 %v2331, %v2336
        %v2340 = vlaneseq
        %v2341 = vshrl.u32 %v2340, 7
        %v2342 = vsub.s32 0, %v2341
        %v2343 = vrot.slane %v2318, %v2342
        %v2345 = vadd.f32 %v2338, %v2343
        %v2346 = vpack.c.bf16 %v2345, %v2345
        %s2347 = scalar_lea.vmem %s10, 16
        %v2348 = vld [vmem:[%s2347] sm:$0xf]
        %v2349 = vld [vmem:[%s2347 + $0x4] sm:$0xf]
        %v2350 = vld [vmem:[%s2347 + $0x8] sm:$0xf]
        %v2351 = vld [vmem:[%s2347 + $0xc] sm:$0xf]
        %s2352 = scalar_lea.vmem %s11, 1
        %v2353 = vld [vmem:[%s2352] sm:$0x1]
        %v2355 = vlaneseq
        %v2356 = vshrl.u32 %v2355, 7
        %v2357 = vsub.s32 0, %v2356
        %v2358 = vrot.slane %v2353, %v2357
        %v2364 = vunpack.c.l.b16 %v2348
        %v2365 = vunpack.c.l.b16 %v2349
        %v2366 = vunpack.c.l.b16 %v2350
        %v2367 = vunpack.c.l.b16 %v2351
        %v2368 = vpack.c.b16 %v2365, %v2364
        %v2369 = vpack.c.b16 %v2367, %v2366
        %v2373 = vsel %vm589, %v2346, 0
        %2375 = vmatprep.subr.bf16.mxu0 0
        %2376 = vmatpush1.bf16.msra.mxu0 %v2368
        %2377 = vmatprep.subr.bf16.mxu0 0
        %2378 = vmatpush1.bf16.msra.mxu0 %v2369
        %2379 = vmatprep.subr.bf16.mxu0 0
        %2380 = vmatpush1.bf16.msra.mxu0 0
        %2381 = vmatprep.subr.bf16.mxu0 0
        %2382 = vmatpush1.bf16.msra.mxu0 0
        %2383 = vmatprep.subr.bf16.mxu0 0
        %2384 = vmatpush1.bf16.msra.mxu0 0
        %2385 = vmatprep.subr.bf16.mxu0 0
        %2386 = vmatpush1.bf16.msra.mxu0 0
        %2387 = vmatprep.subr.bf16.mxu0 0
        %2388 = vmatpush1.bf16.msra.mxu0 0
        %2389 = vmatprep.subr.bf16.mxu0 0
        %2390 = vmatpush1.bf16.msra.mxu0 0
        %2391 = vmatprep.subr.bf16.mxu0 0
        %2392 = vmatpush1.bf16.msra.mxu0 0
        %2393 = vmatprep.subr.bf16.mxu0 0
        %2394 = vmatpush1.bf16.msra.mxu0 0
        %2395 = vmatprep.subr.bf16.mxu0 0
        %2396 = vmatpush1.bf16.msra.mxu0 0
        %2397 = vmatprep.subr.bf16.mxu0 0
        %2398 = vmatpush1.bf16.msra.mxu0 0
        %2399 = vmatprep.subr.bf16.mxu0 0
        %2400 = vmatpush1.bf16.msra.mxu0 0
        %2401 = vmatprep.subr.bf16.mxu0 0
        %2402 = vmatpush1.bf16.msra.mxu0 0
        %2403 = vmatprep.subr.bf16.mxu0 0
        %2404 = vmatpush1.bf16.msra.mxu0 0
        %2405 = vmatprep.subr.bf16.mxu0 0
        %2406 = vmatpush1.bf16.msra.mxu0 0
        %2407 = vmatprep.mubr.bf16.mxu0 0
        %2408 = vmatmul.mubr.bf16.gmra.mrb[0].mxu0 %v2373
        %v2409 = vpop.f32.mrb[0].mxu0
        %v2410 = vadd.f32 %v2358, %v2409
        %v2411 = vpop.f32.mrb[0].mxu0
        %v2412 = vpop.f32.mrb[0].mxu0
        %v2413 = vpop.f32.mrb[0].mxu0
        %2414 = vdwg.mxu0
        %v2415 = vmul.f32 %v2410, 0.5
        %v2416 = vmul.f32 %v2410, 0.044715
        %v2417 = vmul.f32 %v2416, %v2410
        %v2418 = vmul.f32 %v2417, %v2410
        %v2419 = vadd.f32 %v2410, %v2418
        %v2420 = vmul.f32 %v2419, 0.7978846
        %v2421 = vtanh.pop %v2420
        %v2422 = vadd.f32 %v2421, 1.0
        %v2423 = vmul.f32 %v2415, %v2422
        %v2424 = vpack.c.bf16 %v2423, %v2423
        %s2425 = scalar_lea.vmem %s12, 32
        %v2426 = vld [vmem:[%s2425] sm:$0xf]
        %v2427 = vld [vmem:[%s2425 + $0x4] sm:$0xf]
        %v2428 = vld [vmem:[%s2425 + $0x8] sm:$0xf]
        %v2429 = vld [vmem:[%s2425 + $0xc] sm:$0xf]
        %v2430 = vld [vmem:[%s2425 + $0x10] sm:$0xf]
        %v2431 = vld [vmem:[%s2425 + $0x14] sm:$0xf]
        %v2432 = vld [vmem:[%s2425 + $0x18] sm:$0xf]
        %v2433 = vld [vmem:[%s2425 + $0x1c] sm:$0xf]
        %s2434 = scalar_lea.vmem %s13, 1
        %v2435 = vld [vmem:[%s2434] sm:$0x1]
        %v2437 = vlaneseq
        %v2438 = vshrl.u32 %v2437, 7
        %v2439 = vsub.s32 0, %v2438
        %v2440 = vrot.slane %v2435, %v2439
        %v2450 = vunpack.c.l.b16 %v2426
        %v2451 = vunpack.c.l.b16 %v2427
        %v2452 = vunpack.c.l.b16 %v2428
        %v2453 = vunpack.c.l.b16 %v2429
        %v2454 = vunpack.c.l.b16 %v2430
        %v2455 = vunpack.c.l.b16 %v2431
        %v2456 = vunpack.c.l.b16 %v2432
        %v2457 = vunpack.c.l.b16 %v2433
        %v2458 = vpack.c.b16 %v2451, %v2450
        %v2459 = vpack.c.b16 %v2453, %v2452
        %v2460 = vpack.c.b16 %v2455, %v2454
        %v2461 = vpack.c.b16 %v2457, %v2456
        %v2467 = vsel %vm1504, %v2424, 0
        %2469 = vmatprep.subr.bf16.mxu0 0
        %2470 = vmatpush1.bf16.msra.mxu0 %v2458
        %2471 = vmatprep.subr.bf16.mxu0 0
        %2472 = vmatpush1.bf16.msra.mxu0 %v2459
        %2473 = vmatprep.subr.bf16.mxu0 0
        %2474 = vmatpush1.bf16.msra.mxu0 %v2460
        %2475 = vmatprep.subr.bf16.mxu0 0
        %2476 = vmatpush1.bf16.msra.mxu0 %v2461
        %2477 = vmatprep.subr.bf16.mxu0 0
        %2478 = vmatpush1.bf16.msra.mxu0 0
        %2479 = vmatprep.subr.bf16.mxu0 0
        %2480 = vmatpush1.bf16.msra.mxu0 0
        %2481 = vmatprep.subr.bf16.mxu0 0
        %2482 = vmatpush1.bf16.msra.mxu0 0
        %2483 = vmatprep.subr.bf16.mxu0 0
        %2484 = vmatpush1.bf16.msra.mxu0 0
        %2485 = vmatprep.subr.bf16.mxu0 0
        %2486 = vmatpush1.bf16.msra.mxu0 0
        %2487 = vmatprep.subr.bf16.mxu0 0
        %2488 = vmatpush1.bf16.msra.mxu0 0
        %2489 = vmatprep.subr.bf16.mxu0 0
        %2490 = vmatpush1.bf16.msra.mxu0 0
        %2491 = vmatprep.subr.bf16.mxu0 0
        %2492 = vmatpush1.bf16.msra.mxu0 0
        %2493 = vmatprep.subr.bf16.mxu0 0
        %2494 = vmatpush1.bf16.msra.mxu0 0
        %2495 = vmatprep.subr.bf16.mxu0 0
        %2496 = vmatpush1.bf16.msra.mxu0 0
        %2497 = vmatprep.subr.bf16.mxu0 0
        %2498 = vmatpush1.bf16.msra.mxu0 0
        %2499 = vmatprep.subr.bf16.mxu0 0
        %2500 = vmatpush1.bf16.msra.mxu0 0
        %2501 = vmatprep.mubr.bf16.mxu0 0
        %2502 = vmatmul.mubr.bf16.gmra.mrb[0].mxu0 %v2467
        %v2503 = vpop.f32.mrb[0].mxu0
        %v2504 = vadd.f32 %v2440, %v2503
        %v2505 = vpop.f32.mrb[0].mxu0
        %v2506 = vpop.f32.mrb[0].mxu0
        %v2507 = vpop.f32.mrb[0].mxu0
        %2508 = vdwg.mxu0
        %v2509 = vadd.f32 %v2504, %v2345
        %s2510 = scalar_lea.vmem %s14, 1
        %v2511 = vld [vmem:[%s2510] sm:$0x1]
        %s2512 = scalar_lea.vmem %s15, 1
        %v2513 = vld [vmem:[%s2512] sm:$0x1]
        %v2514 = vsel %vm589, %v2509, 0.0
        %2515 = vadd.xlane.f32.xlu0 %v2514
        %v2516 = vpop.xlane.xlu0 %2515
        %v2517 = vmul.f32 %v2516, %v593
        %v2518 = vsub.f32 %v2509, %v2517
        %v2519 = vmul.f32 %v2518, %v2518
        %v2520 = vsel %vm589, %v2519, 0.0
        %2521 = vadd.xlane.f32.xlu0 %v2520
        %v2522 = vpop.xlane.xlu0 %2521
        %v2523 = vmul.f32 %v2522, %v593
        %v2524 = vadd.f32 %v2523, 1e-12
        %v2525 = vrsqrt.pop %v2524
        %v2526 = vmul.f32 %v2518, %v2525
        %v2528 = vlaneseq
        %v2529 = vshrl.u32 %v2528, 7
        %v2530 = vsub.s32 0, %v2529
        %v2531 = vrot.slane %v2511, %v2530
        %v2533 = vmul.f32 %v2526, %v2531
        %v2535 = vlaneseq
        %v2536 = vshrl.u32 %v2535, 7
        %v2537 = vsub.s32 0, %v2536
        %v2538 = vrot.slane %v2513, %v2537
        %v2540 = vadd.f32 %v2533, %v2538
        %v2541 = vsel %vm589, %v2540, 0.0
        %v2542 = vrot.slane %v2541, 4
        %v2543 = vadd.f32 %v2541, %v2542
        %v2544 = vrot.slane %v2543, 2
        %v2545 = vadd.f32 %v2543, %v2544
        %v2546 = vrot.slane %v2545, 1
        %v2547 = vadd.f32 %v2545, %v2546
        %v2548 = vrcp.pop 8.0
        %v2549 = vmul.f32 %v2547, %v2548
        %v2550 = vsel %vm589, %v1577, 0.0
        %v2551 = vrot.slane %v2550, 4
        %v2552 = vadd.f32 %v2550, %v2551
        %v2553 = vrot.slane %v2552, 2
        %v2554 = vadd.f32 %v2552, %v2553
        %v2555 = vrot.slane %v2554, 1
        %v2556 = vadd.f32 %v2554, %v2555
        %v2557 = vmul.f32 %v2556, %v2548
        %2559 = vrot.lane.b32.xlu0 %v2557, 32
        %v2560 = vpop.permute.xlu0 %2559
        %v2562 = vsel %vm589, %v2549, %v2560
        %v2563 = vpack.c.bf16 %v2562, %v2562
        %v2564 = vld [vmem:[%s16] sm:$0xf]
        %v2565 = vld [vmem:[%s16 + $0x4] sm:$0xf]
        %v2566 = vld [vmem:[%s16 + $0x8] sm:$0xf]
        %v2567 = vld [vmem:[%s16 + $0xc] sm:$0xf]
        %v2568 = vld [vmem:[%s16 + $0x10] sm:$0xf]
        %v2569 = vld [vmem:[%s16 + $0x14] sm:$0xf]
        %v2570 = vld [vmem:[%s16 + $0x18] sm:$0xf]
        %v2571 = vld [vmem:[%s16 + $0x1c] sm:$0xf]
        %v2572 = vld [vmem:[%s17] sm:$0x1]
        %v2581 = vunpack.c.l.b16 %v2564
        %v2582 = vunpack.c.l.b16 %v2565
        %v2583 = vunpack.c.l.b16 %v2566
        %v2584 = vunpack.c.l.b16 %v2567
        %v2585 = vunpack.c.l.b16 %v2568
        %v2586 = vunpack.c.l.b16 %v2569
        %v2587 = vunpack.c.l.b16 %v2570
        %v2588 = vunpack.c.l.b16 %v2571
        %v2589 = vpack.c.b16 %v2582, %v2581
        %v2590 = vpack.c.b16 %v2584, %v2583
        %v2591 = vpack.c.b16 %v2586, %v2585
        %v2592 = vpack.c.b16 %v2588, %v2587
        %v2598 = vsel %vm1504, %v2563, 0
        %2600 = vmatprep.subr.bf16.mxu0 0
        %2601 = vmatpush1.bf16.msra.mxu0 %v2589
        %2602 = vmatprep.subr.bf16.mxu0 0
        %2603 = vmatpush1.bf16.msra.mxu0 %v2590
        %2604 = vmatprep.subr.bf16.mxu0 0
        %2605 = vmatpush1.bf16.msra.mxu0 %v2591
        %2606 = vmatprep.subr.bf16.mxu0 0
        %2607 = vmatpush1.bf16.msra.mxu0 %v2592
        %2608 = vmatprep.subr.bf16.mxu0 0
        %2609 = vmatpush1.bf16.msra.mxu0 0
        %2610 = vmatprep.subr.bf16.mxu0 0
        %2611 = vmatpush1.bf16.msra.mxu0 0
        %2612 = vmatprep.subr.bf16.mxu0 0
        %2613 = vmatpush1.bf16.msra.mxu0 0
        %2614 = vmatprep.subr.bf16.mxu0 0
        %2615 = vmatpush1.bf16.msra.mxu0 0
        %2616 = vmatprep.subr.bf16.mxu0 0
        %2617 = vmatpush1.bf16.msra.mxu0 0
        %2618 = vmatprep.subr.bf16.mxu0 0
        %2619 = vmatpush1.bf16.msra.mxu0 0
        %2620 = vmatprep.subr.bf16.mxu0 0
        %2621 = vmatpush1.bf16.msra.mxu0 0
        %2622 = vmatprep.subr.bf16.mxu0 0
        %2623 = vmatpush1.bf16.msra.mxu0 0
        %2624 = vmatprep.subr.bf16.mxu0 0
        %2625 = vmatpush1.bf16.msra.mxu0 0
        %2626 = vmatprep.subr.bf16.mxu0 0
        %2627 = vmatpush1.bf16.msra.mxu0 0
        %2628 = vmatprep.subr.bf16.mxu0 0
        %2629 = vmatpush1.bf16.msra.mxu0 0
        %2630 = vmatprep.subr.bf16.mxu0 0
        %2631 = vmatpush1.bf16.msra.mxu0 0
        %2632 = vmatprep.mubr.bf16.mxu0 0
        %2633 = vmatmul.mubr.bf16.gmra.mrb[0].mxu0 %v2598
        %v2634 = vpop.f32.mrb[0].mxu0
        %v2635 = vadd.f32 %v2572, %v2634
        %v2636 = vpop.f32.mrb[0].mxu0
        %v2637 = vpop.f32.mrb[0].mxu0
        %v2638 = vpop.f32.mrb[0].mxu0
        %2639 = vdwg.mxu0
        %v2640 = vxor.u32 %v2635, 2147483648
        %v2641 = vmul.f32 %v2640, 1.442695
        %v2642 = vpow.pop %v2641
        %v2643 = vadd.f32 %v2642, 1.0
        %v2644 = vrcp.pop %v2643
        %v2645 = vmul.f32 1.0, %v2644
        %2646 = vst [vmem:[%s576] sm:$0x1] %v2645
        %s2647 = sand.u32 %s428, 1
        %s2648 = scalar_lea.sflag [#allocation3], %s2647
        %s2649 = sand.u32 %s428, 1
        %s2650 = scalar_lea.vmem [#allocation2], %s2649
        // Predicated region
        $region93: #{bert_forward.1} parent=91 // pred_check
          %p2651 = pneg %p438
        $region94: #{bert_forward.1} parent=91 // pred_check_branch
          %2653 = sbr.rel (%p2651) target = $region96
        $region95: #{bert_forward.1} parent=91 // pred_region
          %s2655 = ssub.s32 16, 16
          %2656 = vsyncadd %s2648, %s2655
          %s2657 = smul.addr %s32, 16
          %s2658 = scalar_lea.hbm %s18, %s2657
          %s2660 = sshll.u32 %s2650, 4
          %s2661 = int_to_ptr.vmem [resolvable:$true] %s2660
          %2663 = dma.vmem_to_hbm [thread:$0]  %s2661, 16, %s2658, %s2648
        $region96: #{bert_forward.1} parent=91 // pred_fallthru
          _
      $region92: #{bert_forward.1} parent=5 // pred_fallthru
        _
      %p2664 = scmp.le.s32.totalorder 2, %s27
      // Predicated region
      $region97: #{bert_forward.1} parent=5 // pred_check
        %p2665 = pneg %p2664
      $region98: #{bert_forward.1} parent=5 // pred_check_branch
        %2667 = sbr.rel (%p2665) target = $region100
      $region99: #{bert_forward.1} parent=5 // pred_region
        %s2668 = ssub.s32 %s27, 2
        // Predicated region
        $region101: #{bert_forward.1} parent=99 // pred_check
          %p2669 = pneg %p444
        $region102: #{bert_forward.1} parent=99 // pred_check_branch
          %2671 = sbr.rel (%p2669) target = $region104
        $region103: #{bert_forward.1} parent=99 // pred_region
          %s2672 = sand.u32 %s429, 1
          %s2673 = scalar_lea.sflag [#allocation3], %s2672
          %s2674 = sand.u32 %s429, 1
          %s2675 = scalar_lea.vmem [#allocation2], %s2674
          %2676 = dma.done %s2673, 16
        $region104: #{bert_forward.1} parent=99 // pred_fallthru
          _
      $region100: #{bert_forward.1} parent=5 // pred_fallthru
        _
    $region6: #{bert_forward.1} parent=1 // loop_footer
      %s31 = sadd.s32 1, %s27
    $region7: #{bert_forward.1} parent=1 // loop_footer_branch
      %26 = sbr.rel target = $region3
    $region8: #{bert_forward.1} parent=1 // loop_exit
      _
    %2677 = vsyncpa [#allocation3], 1
    %s2678 = scalar_lea.sflag [#allocation3], 1
    %2679 = vsyncpa %s2678, 1

</llo_original>
